<compile_context>
chip_gen: v6e
topology: v6e:2x2x1
jax: 0.10.0
libtpu: 0.0.40
codegen_flags: <defaults>
</compile_context>

<pallas_src>
import functools

import jax
import jax.numpy as jnp
from jax.experimental import pallas as pl
from jax.experimental.pallas import tpu as pltpu


def _attn_block_kernel(x_ref, gavg_ref, gamma_ref, beta_ref, wqkv_ref, bqkv_ref,
                       wp_ref, bp_ref, out_ref, qkv_scr, kT_scr,
                       *, num_heads, hw, tq, eps, approx_recip):
    C = x_ref.shape[2]
    Ch = C // num_heads
    HW_pad = qkv_scr.shape[1]
    n_qt = HW_pad // tq
    padded = HW_pad != hw
    cdtype = qkv_scr.dtype
    qi = pl.program_id(1)

    # ---- Phase 1 (once per batch element): GroupNorm + streamed QKV -----------------
    @pl.when(qi == 0)
    def _phase1():
        # Per-channel sums, streamed in tq-row chunks (host zero-pads extra rows).
        def _sum_body(i, acc):
            r0 = pl.multiple_of(i * tq, tq)
            return acc + jnp.sum(x_ref[0, pl.ds(r0, tq), :], axis=0, keepdims=True)
        csum = jax.lax.fori_loop(0, n_qt, _sum_body, jnp.zeros((1, C), jnp.float32))
        # Per-group mean broadcast back to channels via the host-built (C, C) matrix.
        mean_c = jnp.dot(csum, gavg_ref[...], preferred_element_type=jnp.float32)

        # Centered second moment (two-pass form: robust to large means).
        def _sq_body(i, acc):
            r0 = pl.multiple_of(i * tq, tq)
            d = x_ref[0, pl.ds(r0, tq), :] - mean_c
            if padded:
                rid = jax.lax.broadcasted_iota(jnp.int32, (tq, 1), 0) + r0
                d = jnp.where(rid < hw, d, 0.0)
            return acc + jnp.sum(d * d, axis=0, keepdims=True)
        csq = jax.lax.fori_loop(0, n_qt, _sq_body, jnp.zeros((1, C), jnp.float32))
        var_c = jnp.dot(csq, gavg_ref[...], preferred_element_type=jnp.float32)

        scale_c = jax.lax.rsqrt(var_c + eps) * gamma_ref[...]
        shift_c = beta_ref[...] - mean_c * scale_c

        # Streamed GroupNorm-normalize + per-head QKV 1x1 conv: only (tq, .)-sized
        # temporaries; results written straight into the per-head scratch slabs.
        def _fill_body(i, carry):
            r0 = pl.multiple_of(i * tq, tq)
            xn = (x_ref[0, pl.ds(r0, tq), :] * scale_c + shift_c).astype(cdtype)
            for h in range(num_heads):  # TODO(synk): use pl.loop when num_heads is large
                for s in range(3):      # 0: q (1/sqrt(Ch) pre-folded), 1: k, 2: v
                    y = (jnp.dot(xn, wqkv_ref[h, s, :, :],
                                 preferred_element_type=jnp.float32)
                         + bqkv_ref[h, s, :, :])
                    qkv_scr[3 * h + s, pl.ds(r0, tq), :] = y.astype(cdtype)
            return carry
        jax.lax.fori_loop(0, n_qt, _fill_body, 0)

        # Pre-transpose K once per head so every score matmul is (tq, Ch) @ (Ch, HW).
        for h in range(num_heads):
            k_nat = qkv_scr[3 * h + 1, :, :].astype(jnp.float32)
            kT_scr[h, :, :] = jnp.transpose(k_nat).astype(cdtype)

    # ---- Phase 2 (every grid step): attention + projection + residual for one tile --
    r0 = pl.multiple_of(qi * tq, tq)
    acc = x_ref[0, pl.ds(r0, tq), :] + bp_ref[...]            # residual + proj bias (f32)
    for h in range(num_heads):
        q_t = qkv_scr[3 * h, pl.ds(r0, tq), :]                # (tq, Ch)
        s = jnp.dot(q_t, kT_scr[h, :, :],
                    preferred_element_type=jnp.float32)       # (tq, HW_pad)
        if padded:
            col = jax.lax.broadcasted_iota(jnp.int32, s.shape, 1)
            s = jnp.where(col < hw, s, -1e30)                 # mask padded keys
        s = s - jnp.max(s, axis=-1, keepdims=True)
        p = jnp.exp(s)
        denom = jnp.sum(p, axis=-1, keepdims=True)            # (tq, 1)
        a_h = jnp.dot(p.astype(cdtype), qkv_scr[3 * h + 2, :, :],
                      preferred_element_type=jnp.float32)     # (tq, Ch), un-normalized
        a_h = a_h * pl.reciprocal(denom, approx=approx_recip)  # deferred softmax norm
        acc = acc + jnp.dot(a_h.astype(cdtype), wp_ref[h, :, :],
                            preferred_element_type=jnp.float32)
    out_ref[0] = acc


def attn_block_pallas(x, params, *, num_heads=1, eps=1e-6,
                      compute_dtype=jnp.bfloat16, q_tile=256):
    """Forward pass of AttnBlock.  x: (N, C, H, W) -> (N, C, H, W)."""
    N, C, H, W = x.shape
    HW = H * W
    Ch = C // num_heads
    G = min(C // 4, 32)
    cg = C // G
    cdtype = jnp.dtype(compute_dtype)

    # Query/row tile: prefer an exact divisor of HW (>= 64 where possible); otherwise
    # zero-pad the spatial axis to a tq multiple (padded keys masked in-kernel) so a
    # non-divisible HW never degenerates into a full (HW, HW) score slab.
    q_tile = max(8, (int(q_tile) // 8) * 8)
    cands = [t for t in (q_tile, 512, 256, 128, 64, 32, 16, 8) if t <= max(HW, 8)]
    tq = next((t for t in cands if HW % t == 0 and t >= min(HW, 64)), None)
    if tq is None:
        tq = min(max(q_tile, 64), ((HW + 7) // 8) * 8)
    n_qt = int(pl.cdiv(HW, tq))
    HW_pad = n_qt * tq

    # ---- host-side parameter prep ----------------------------------------------------
    # PyTorch's `.reshape(N*nh, C//nh, 3, -1)` selects interleaved qkv output channels
    # (o = h*Ch*3 + c*3 + s): de-interleave into per-head (C, Ch) slabs and fold the
    # 1/sqrt(Ch) attention scale into the q weights/bias.
    scale = 1.0 / float(Ch) ** 0.5
    w_qkv = jnp.asarray(params["qkv_w"]).reshape(3 * C, C).astype(jnp.float32)
    b_qkv = jnp.asarray(params["qkv_b"]).astype(jnp.float32)
    w4 = w_qkv.reshape(num_heads, Ch, 3, C)
    w_per = jnp.transpose(w4, (0, 2, 3, 1))                      # (nh, 3, C_in, Ch)
    w_per = w_per.at[:, 0].multiply(scale).astype(cdtype)
    b4 = b_qkv.reshape(num_heads, Ch, 3)
    b_per = jnp.transpose(b4, (0, 2, 1)).reshape(num_heads, 3, 1, Ch)
    b_per = b_per.at[:, 0].multiply(scale).astype(jnp.float32)

    wp_per = (jnp.asarray(params["proj_w"]).reshape(C, C).T      # (C_in, C_out)
              .reshape(num_heads, Ch, C).astype(cdtype))
    bp = jnp.asarray(params["proj_b"]).reshape(1, C).astype(jnp.float32)
    gamma = jnp.asarray(params["gamma"]).reshape(1, C).astype(jnp.float32)
    beta = jnp.asarray(params["beta"]).reshape(1, C).astype(jnp.float32)

    # Group-average matrix (per-channel sums -> per-group mean on channels). Uses the
    # real HW so zero-padded rows never bias the statistics.
    gid = jnp.arange(C, dtype=jnp.int32) // cg
    gavg = (gid[:, None] == gid[None, :]).astype(jnp.float32) / float(cg * HW)

    # (N, C, H, W) -> (N, HW, C): spatial on sublanes, channels lane-dense.
    # TODO(synk): keep activations NHWC (and bf16) across the surrounding model to
    # avoid these full-tensor HBM transposes around the kernel.
    xf = x.astype(jnp.float32).transpose(0, 2, 3, 1).reshape(N, HW, C)
    if HW_pad != HW:
        xf = jnp.pad(xf, ((0, 0), (0, HW_pad - HW), (0, 0)))

    # ---- explicit VMEM budget ----------------------------------------------------------
    isz = cdtype.itemsize
    est = (2 * HW_pad * C * 4              # x block (constant over qi, 2 buffers, f32)
           + 2 * tq * C * 4                # out block (2 buffers)
           + 2 * 3 * C * C * isz           # qkv weights (worst case 2 buffers)
           + 2 * C * C * isz               # proj weights
           + 2 * C * C * 4                 # group-average matrix
           + 3 * HW_pad * C * isz          # q | k | v per-head scratch slabs
           + HW_pad * C * isz              # pre-transposed K scratch
           + 2 * tq * HW_pad * 4           # score + exp temporaries
           + 2 * HW_pad * Ch * 4           # one-time K-transpose transient (f32)
           + 8 * tq * C * 4)               # misc chunk temporaries
    try:
        phys_vmem = int(pltpu.get_tpu_info().vmem_capacity_bytes)
    except Exception:
        phys_vmem = 64 << 20               # conservative (v7x per-core VMEM)
    vmem_limit = int(min(max(int(est * 1.25) + (2 << 20), 32 << 20),
                         int(phys_vmem * 0.9)))

    kernel = functools.partial(
        _attn_block_kernel, num_heads=num_heads, hw=HW, tq=tq, eps=eps,
        approx_recip=(cdtype != jnp.dtype(jnp.float32)))

    def build(single_buffer_consts):
        def cspec(shape):
            zeros = (0,) * len(shape)
            imap = lambda n, qi, _z=zeros: _z
            if single_buffer_consts:
                return pl.BlockSpec(shape, imap, pipeline_mode=pl.Buffered(1))
            return pl.BlockSpec(shape, imap)

        return pl.pallas_call(
            kernel,
            out_shape=jax.ShapeDtypeStruct((N, HW_pad, C), jnp.float32),
            grid_spec=pltpu.PrefetchScalarGridSpec(
                num_scalar_prefetch=0,
                grid=(N, n_qt),
                in_specs=[
                    pl.BlockSpec((1, HW_pad, C), lambda n, qi: (n, 0, 0)),  # x, per batch
                    cspec((C, C)),                     # group-average matrix
                    cspec((1, C)),                     # gamma
                    cspec((1, C)),                     # beta
                    cspec((num_heads, 3, C, Ch)),      # per-head qkv weights (q scaled)
                    cspec((num_heads, 3, 1, Ch)),      # per-head qkv bias
                    cspec((num_heads, Ch, C)),         # per-head proj weights
                    cspec((1, C)),                     # proj bias
                ],
                out_specs=pl.BlockSpec((1, tq, C), lambda n, qi: (n, qi, 0)),
                scratch_shapes=[
                    pltpu.VMEM((3 * num_heads, HW_pad, Ch), cdtype),  # q | k | v slabs
                    pltpu.VMEM((num_heads, Ch, HW_pad), cdtype),      # K^T per head
                ],
            ),
            # TODO(synk): on v7x with N == 1 the batch-parallel axis leaves one
            # TensorCore idle; splitting the q-tile axis across cores would need the
            # GroupNorm/QKV pre-pass replicated per core.
            compiler_params=pltpu.CompilerParams(
                dimension_semantics=("parallel", "arbitrary"),
                vmem_limit_bytes=vmem_limit),
        )

    args = (xf, gavg, gamma, beta, w_per, b_per, wp_per, bp)
    try:
        out = build(True)(*args)           # single-buffer the constant operands
    except Exception:
        out = build(False)(*args)          # fallback: default double buffering

    out = out[:, :HW, :]
    return out.reshape(N, H, W, C).transpose(0, 3, 1, 2).astype(x.dtype)


def attn_block_ref(x, params, *, num_heads=1, eps=1e-6):
    """Pure-JAX reference mirroring the PyTorch forward exactly (f32)."""
    N, C, H, W = x.shape
    G = min(C // 4, 32)
    xg = x.reshape(N, G, -1)
    mean = xg.mean(axis=2, keepdims=True)
    var = ((xg - mean) ** 2).mean(axis=2, keepdims=True)
    xn = ((xg - mean) / jnp.sqrt(var + eps)).reshape(N, C, H, W)
    xn = xn * params["gamma"].reshape(1, C, 1, 1) + params["beta"].reshape(1, C, 1, 1)
    qkv = (jnp.einsum("oc,nchw->nohw", params["qkv_w"].reshape(3 * C, C), xn)
           + params["qkv_b"].reshape(1, 3 * C, 1, 1))
    qkv = qkv.reshape(N * num_heads, C // num_heads, 3, H * W)
    q, k, v = qkv[:, :, 0, :], qkv[:, :, 1, :], qkv[:, :, 2, :]
    w = jax.nn.softmax(
        jnp.einsum("ncq,nck->nqk", q, k / jnp.sqrt(1.0 * k.shape[1])), axis=2)
    a = jnp.einsum("nqk,nck->ncq", w, v).reshape(N, C, H, W)
    out = (jnp.einsum("oc,nchw->nohw", params["proj_w"].reshape(C, C), a)
           + params["proj_b"].reshape(1, C, 1, 1) + x)
    return out


def init_params(key, channels):
    # Shapes follow AttnBlock.__init__ (qkv: Conv2d(C, 3C, 1), proj: Conv2d(C, C, 1)).
    # proj weight gets a small nonzero init (original uses init_weight=0) so the
    # projection path is actually exercised.
    C = channels
    k = jax.random.split(key, 6)
    fan_qkv = C
    return {
        "gamma": 1.0 + 0.1 * jax.random.normal(k[0], (C,), jnp.float32),
        "beta": 0.1 * jax.random.normal(k[1], (C,), jnp.float32),
        "qkv_w": (1.0 / jnp.sqrt(1.0 * fan_qkv))
                 * jax.random.normal(k[2], (3 * C, C, 1, 1), jnp.float32),
        "qkv_b": 0.1 * jax.random.normal(k[3], (3 * C,), jnp.float32),
        "proj_w": 0.1 * jax.random.normal(k[4], (C, C, 1, 1), jnp.float32),
        "proj_b": 0.05 * jax.random.normal(k[5], (C,), jnp.float32),
    }


if __name__ == "__main__":
    key = jax.random.PRNGKey(0)

    # Case 1: f32 compute, two query tiles per batch element (q_tile=128, HW=256).
    N, C, H, W = 2, 4, 16, 16
    kx, kp, key = jax.random.split(key, 3)
    x = jax.random.normal(kx, (N, C, H, W), jnp.float32)
    params = init_params(kp, C)
    out = jax.block_until_ready(
        attn_block_pallas(x, params, num_heads=1,
                          compute_dtype=jnp.float32, q_tile=128))
    ref = attn_block_ref(x, params, num_heads=1)
    assert out.shape == (N, C, H, W)
    assert jnp.allclose(out, ref, rtol=1e-4, atol=1e-4), (
        float(jnp.max(jnp.abs(out - ref))))

    # Case 2: multi-head / multi-group, f32 path, single query tile.
    N2, C2, H2, W2 = 2, 8, 8, 8
    kx2, kp2, key = jax.random.split(key, 3)
    x2 = jax.random.normal(kx2, (N2, C2, H2, W2), jnp.float32)
    params2 = init_params(kp2, C2)
    out2 = jax.block_until_ready(
        attn_block_pallas(x2, params2, num_heads=2, compute_dtype=jnp.float32))
    ref2 = attn_block_ref(x2, params2, num_heads=2)
    assert jnp.allclose(out2, ref2, rtol=1e-4, atol=1e-4), (
        float(jnp.max(jnp.abs(out2 - ref2))))

    # Case 3: non-divisible spatial size (HW=36 -> padded to 40, masked keys), f32.
    N3, C3, H3, W3 = 1, 4, 6, 6
    kx3, kp3, key = jax.random.split(key, 3)
    x3 = jax.random.normal(kx3, (N3, C3, H3, W3), jnp.float32)
    params3 = init_params(kp3, C3)
    out3 = jax.block_until_ready(
        attn_block_pallas(x3, params3, num_heads=1, compute_dtype=jnp.float32))
    ref3 = attn_block_ref(x3, params3, num_heads=1)
    assert jnp.allclose(out3, ref3, rtol=1e-4, atol=1e-4), (
        float(jnp.max(jnp.abs(out3 - ref3))))

    # Case 4: default bf16-MXU production path -> looser tolerance.
    out_bf = jax.block_until_ready(attn_block_pallas(x, params, num_heads=1))
    assert jnp.allclose(out_bf, ref, rtol=5e-2, atol=5e-2), (
        float(jnp.max(jnp.abs(out_bf - ref))))

    print("KERNEL_OK")
</pallas_src>

<mosaic_0001>
module attributes {stable_mosaic.version = 11 : i64} {
  func.func @_attn_block_kernel(%arg0: i32, %arg1: i32, %arg2: memref<1x256x4xf32, #tpu.memory_space<vmem>>, %arg3: memref<4x4xf32, #tpu.memory_space<vmem>>, %arg4: memref<1x4xf32, #tpu.memory_space<vmem>>, %arg5: memref<1x4xf32, #tpu.memory_space<vmem>>, %arg6: memref<1x3x4x4xf32, #tpu.memory_space<vmem>>, %arg7: memref<1x3x1x4xf32, #tpu.memory_space<vmem>>, %arg8: memref<1x4x4xf32, #tpu.memory_space<vmem>>, %arg9: memref<1x4xf32, #tpu.memory_space<vmem>>, %arg10: memref<1x128x4xf32, #tpu.memory_space<vmem>>, %arg11: memref<3x256x4xf32, #tpu.memory_space<vmem>>, %arg12: memref<1x4x256xf32, #tpu.memory_space<vmem>>) attributes {dimension_semantics = [#tpu.dimension_semantics<parallel>, #tpu.dimension_semantics<arbitrary>], iteration_bounds = array<i64: 2, 2>, scalar_prefetch = 0 : i64, scratch_operands = 2 : i64, tpu.core_type = #tpu.core_type<tc>, window_params = [{transform_indices = @transform_0, window_bounds = array<i64: 1, 256, 4>}, {pipeline_mode = #tpu.pipeline_mode<synchronous>, transform_indices = @transform_1, window_bounds = array<i64: 4, 4>}, {pipeline_mode = #tpu.pipeline_mode<synchronous>, transform_indices = @transform_2, window_bounds = array<i64: 1, 4>}, {pipeline_mode = #tpu.pipeline_mode<synchronous>, transform_indices = @transform_3, window_bounds = array<i64: 1, 4>}, {pipeline_mode = #tpu.pipeline_mode<synchronous>, transform_indices = @transform_4, window_bounds = array<i64: 1, 3, 4, 4>}, {pipeline_mode = #tpu.pipeline_mode<synchronous>, transform_indices = @transform_5, window_bounds = array<i64: 1, 3, 1, 4>}, {pipeline_mode = #tpu.pipeline_mode<synchronous>, transform_indices = @transform_6, window_bounds = array<i64: 1, 4, 4>}, {pipeline_mode = #tpu.pipeline_mode<synchronous>, transform_indices = @transform_7, window_bounds = array<i64: 1, 4>}, {transform_indices = @transform_8, window_bounds = array<i64: 1, 128, 4>}]} {
    %c0_i32 = arith.constant 0 : i32
    %0 = arith.cmpi eq, %arg1, %c0_i32 : i32
    %1 = arith.extui %0 : i1 to i32
    %c0_i32_0 = arith.constant 0 : i32
    %2 = arith.cmpi ne, %1, %c0_i32_0 : i32
    scf.if %2 {
      %cst_21 = arith.constant 0.000000e+00 : f32
      %37 = vector.broadcast %cst_21 : f32 to vector<1x4xf32>
      %c0_i32_22 = arith.constant 0 : i32
      %c2_i32 = arith.constant 2 : i32
      %38 = arith.addi %c0_i32_22, %c2_i32 : i32
      %c1_i32 = arith.constant 1 : i32
      %39 = scf.for %arg13 = %c0_i32_22 to %38 step %c1_i32 iter_args(%arg14 = %37) -> (vector<1x4xf32>)  : i32 {
        %c128_i32_49 = arith.constant 128 : i32
        %62 = arith.muli %arg13, %c128_i32_49 : i32
        %63 = tpu.assume_multiple %62, 128 : i32
        %c0_50 = arith.constant 0 : index
        %64 = arith.index_cast %63 : i32 to index
        %c0_51 = arith.constant 0 : index
        %65 = vector.load %arg2[%c0_50, %64, %c0_51] : memref<1x256x4xf32, #tpu.memory_space<vmem>>, vector<1x128x4xf32>
        %66 = vector.shape_cast %65 : vector<1x128x4xf32> to vector<128x4xf32>
        %cst_52 = arith.constant dense<0.000000e+00> : vector<4xf32>
        %67 = vector.multi_reduction <add>, %66, %cst_52 [0] : vector<128x4xf32> to vector<4xf32>
        %68 = vector.shape_cast %67 : vector<4xf32> to vector<1x4xf32>
        %69 = arith.addf %arg14, %68 : vector<1x4xf32>
        scf.yield %69 : vector<1x4xf32>
      }
      %c2_i32_23 = arith.constant 2 : i32
      %c0_24 = arith.constant 0 : index
      %c0_25 = arith.constant 0 : index
      %40 = vector.load %arg3[%c0_24, %c0_25] : memref<4x4xf32, #tpu.memory_space<vmem>>, vector<4x4xf32>
      %cst_26 = arith.constant dense<0.000000e+00> : vector<1x4xf32>
      %41 = tpu.matmul %39, %40, %cst_26 {dimension_numbers = #tpu.dot_dimension_numbers<[1], [0], [0], [1], [0, 0, 1, 1], [], []>} : vector<1x4xf32>, vector<4x4xf32>, vector<1x4xf32> -> vector<1x4xf32>
      %cst_27 = arith.constant 0.000000e+00 : f32
      %42 = vector.broadcast %cst_27 : f32 to vector<1x4xf32>
      %c0_i32_28 = arith.constant 0 : i32
      %c2_i32_29 = arith.constant 2 : i32
      %43 = arith.addi %c0_i32_28, %c2_i32_29 : i32
      %c1_i32_30 = arith.constant 1 : i32
      %44 = scf.for %arg13 = %c0_i32_28 to %43 step %c1_i32_30 iter_args(%arg14 = %42) -> (vector<1x4xf32>)  : i32 {
        %c128_i32_49 = arith.constant 128 : i32
        %62 = arith.muli %arg13, %c128_i32_49 : i32
        %63 = tpu.assume_multiple %62, 128 : i32
        %c0_50 = arith.constant 0 : index
        %64 = arith.index_cast %63 : i32 to index
        %c0_51 = arith.constant 0 : index
        %65 = vector.load %arg2[%c0_50, %64, %c0_51] : memref<1x256x4xf32, #tpu.memory_space<vmem>>, vector<1x128x4xf32>
        %66 = vector.shape_cast %65 : vector<1x128x4xf32> to vector<128x4xf32>
        %67 = vector.broadcast %41 : vector<1x4xf32> to vector<128x4xf32>
        %68 = arith.subf %66, %67 : vector<128x4xf32>
        %69 = arith.mulf %68, %68 : vector<128x4xf32>
        %cst_52 = arith.constant dense<0.000000e+00> : vector<4xf32>
        %70 = vector.multi_reduction <add>, %69, %cst_52 [0] : vector<128x4xf32> to vector<4xf32>
        %71 = vector.shape_cast %70 : vector<4xf32> to vector<1x4xf32>
        %72 = arith.addf %arg14, %71 : vector<1x4xf32>
        scf.yield %72 : vector<1x4xf32>
      }
      %c2_i32_31 = arith.constant 2 : i32
      %c0_32 = arith.constant 0 : index
      %c0_33 = arith.constant 0 : index
      %45 = vector.load %arg3[%c0_32, %c0_33] : memref<4x4xf32, #tpu.memory_space<vmem>>, vector<4x4xf32>
      %cst_34 = arith.constant dense<0.000000e+00> : vector<1x4xf32>
      %46 = tpu.matmul %44, %45, %cst_34 {dimension_numbers = #tpu.dot_dimension_numbers<[1], [0], [0], [1], [0, 0, 1, 1], [], []>} : vector<1x4xf32>, vector<4x4xf32>, vector<1x4xf32> -> vector<1x4xf32>
      %cst_35 = arith.constant 9.99999997E-7 : f32
      %47 = vector.broadcast %cst_35 : f32 to vector<1x4xf32>
      %48 = arith.addf %46, %47 : vector<1x4xf32>
      %49 = math.rsqrt %48 : vector<1x4xf32>
      %c0_36 = arith.constant 0 : index
      %c0_37 = arith.constant 0 : index
      %50 = vector.load %arg4[%c0_36, %c0_37] : memref<1x4xf32, #tpu.memory_space<vmem>>, vector<1x4xf32>
      %51 = arith.mulf %49, %50 : vector<1x4xf32>
      %c0_38 = arith.constant 0 : index
      %c0_39 = arith.constant 0 : index
      %52 = vector.load %arg5[%c0_38, %c0_39] : memref<1x4xf32, #tpu.memory_space<vmem>>, vector<1x4xf32>
      %53 = arith.mulf %41, %51 : vector<1x4xf32>
      %54 = arith.subf %52, %53 : vector<1x4xf32>
      %c0_i32_40 = arith.constant 0 : i32
      %c2_i32_41 = arith.constant 2 : i32
      %55 = arith.addi %c0_i32_40, %c2_i32_41 : i32
      %c1_i32_42 = arith.constant 1 : i32
      scf.for %arg13 = %c0_i32_40 to %55 step %c1_i32_42  : i32 {
        %c128_i32_49 = arith.constant 128 : i32
        %62 = arith.muli %arg13, %c128_i32_49 : i32
        %63 = tpu.assume_multiple %62, 128 : i32
        %c0_50 = arith.constant 0 : index
        %64 = arith.index_cast %63 : i32 to index
        %c0_51 = arith.constant 0 : index
        %65 = vector.load %arg2[%c0_50, %64, %c0_51] : memref<1x256x4xf32, #tpu.memory_space<vmem>>, vector<1x128x4xf32>
        %66 = vector.shape_cast %65 : vector<1x128x4xf32> to vector<128x4xf32>
        %67 = vector.broadcast %51 : vector<1x4xf32> to vector<128x4xf32>
        %68 = arith.mulf %66, %67 : vector<128x4xf32>
        %69 = vector.broadcast %54 : vector<1x4xf32> to vector<128x4xf32>
        %70 = arith.addf %68, %69 : vector<128x4xf32>
        %c0_52 = arith.constant 0 : index
        %c0_53 = arith.constant 0 : index
        %c0_54 = arith.constant 0 : index
        %c0_55 = arith.constant 0 : index
        %71 = vector.load %arg6[%c0_52, %c0_53, %c0_54, %c0_55] : memref<1x3x4x4xf32, #tpu.memory_space<vmem>>, vector<1x1x4x4xf32>
        %72 = vector.shape_cast %71 : vector<1x1x4x4xf32> to vector<4x4xf32>
        %cst_56 = arith.constant dense<0.000000e+00> : vector<128x4xf32>
        %73 = tpu.matmul %70, %72, %cst_56 {dimension_numbers = #tpu.dot_dimension_numbers<[1], [0], [0], [1], [0, 0, 1, 1], [], []>} : vector<128x4xf32>, vector<4x4xf32>, vector<128x4xf32> -> vector<128x4xf32>
        %c0_57 = arith.constant 0 : index
        %c0_58 = arith.constant 0 : index
        %c0_59 = arith.constant 0 : index
        %c0_60 = arith.constant 0 : index
        %74 = vector.load %arg7[%c0_57, %c0_58, %c0_59, %c0_60] : memref<1x3x1x4xf32, #tpu.memory_space<vmem>>, vector<1x1x1x4xf32>
        %75 = vector.shape_cast %74 : vector<1x1x1x4xf32> to vector<1x4xf32>
        %76 = vector.broadcast %75 : vector<1x4xf32> to vector<128x4xf32>
        %77 = arith.addf %73, %76 : vector<128x4xf32>
        %c0_61 = arith.constant 0 : index
        %78 = arith.index_cast %63 : i32 to index
        %c0_62 = arith.constant 0 : index
        %79 = vector.load %arg11[%c0_61, %78, %c0_62] : memref<3x256x4xf32, #tpu.memory_space<vmem>>, vector<1x128x4xf32>
        %80 = vector.shape_cast %79 : vector<1x128x4xf32> to vector<128x4xf32>
        %81 = vector.shape_cast %77 : vector<128x4xf32> to vector<1x128x4xf32>
        tpu.vector_store %arg11[%c0_61, %78, %c0_62], %81 {strides = array<i32>} : memref<3x256x4xf32, #tpu.memory_space<vmem>>, vector<1x128x4xf32>,
        %c0_63 = arith.constant 0 : index
        %c1_64 = arith.constant 1 : index
        %c0_65 = arith.constant 0 : index
        %c0_66 = arith.constant 0 : index
        %82 = vector.load %arg6[%c0_63, %c1_64, %c0_65, %c0_66] : memref<1x3x4x4xf32, #tpu.memory_space<vmem>>, vector<1x1x4x4xf32>
        %83 = vector.shape_cast %82 : vector<1x1x4x4xf32> to vector<4x4xf32>
        %cst_67 = arith.constant dense<0.000000e+00> : vector<128x4xf32>
        %84 = tpu.matmul %70, %83, %cst_67 {dimension_numbers = #tpu.dot_dimension_numbers<[1], [0], [0], [1], [0, 0, 1, 1], [], []>} : vector<128x4xf32>, vector<4x4xf32>, vector<128x4xf32> -> vector<128x4xf32>
        %c0_68 = arith.constant 0 : index
        %c1_69 = arith.constant 1 : index
        %c0_70 = arith.constant 0 : index
        %c0_71 = arith.constant 0 : index
        %85 = vector.load %arg7[%c0_68, %c1_69, %c0_70, %c0_71] : memref<1x3x1x4xf32, #tpu.memory_space<vmem>>, vector<1x1x1x4xf32>
        %86 = vector.shape_cast %85 : vector<1x1x1x4xf32> to vector<1x4xf32>
        %87 = vector.broadcast %86 : vector<1x4xf32> to vector<128x4xf32>
        %88 = arith.addf %84, %87 : vector<128x4xf32>
        %c1_72 = arith.constant 1 : index
        %89 = arith.index_cast %63 : i32 to index
        %c0_73 = arith.constant 0 : index
        %90 = vector.load %arg11[%c1_72, %89, %c0_73] : memref<3x256x4xf32, #tpu.memory_space<vmem>>, vector<1x128x4xf32>
        %91 = vector.shape_cast %90 : vector<1x128x4xf32> to vector<128x4xf32>
        %92 = vector.shape_cast %88 : vector<128x4xf32> to vector<1x128x4xf32>
        tpu.vector_store %arg11[%c1_72, %89, %c0_73], %92 {strides = array<i32>} : memref<3x256x4xf32, #tpu.memory_space<vmem>>, vector<1x128x4xf32>,
        %c0_74 = arith.constant 0 : index
        %c2_75 = arith.constant 2 : index
        %c0_76 = arith.constant 0 : index
        %c0_77 = arith.constant 0 : index
        %93 = vector.load %arg6[%c0_74, %c2_75, %c0_76, %c0_77] : memref<1x3x4x4xf32, #tpu.memory_space<vmem>>, vector<1x1x4x4xf32>
        %94 = vector.shape_cast %93 : vector<1x1x4x4xf32> to vector<4x4xf32>
        %cst_78 = arith.constant dense<0.000000e+00> : vector<128x4xf32>
        %95 = tpu.matmul %70, %94, %cst_78 {dimension_numbers = #tpu.dot_dimension_numbers<[1], [0], [0], [1], [0, 0, 1, 1], [], []>} : vector<128x4xf32>, vector<4x4xf32>, vector<128x4xf32> -> vector<128x4xf32>
        %c0_79 = arith.constant 0 : index
        %c2_80 = arith.constant 2 : index
        %c0_81 = arith.constant 0 : index
        %c0_82 = arith.constant 0 : index
        %96 = vector.load %arg7[%c0_79, %c2_80, %c0_81, %c0_82] : memref<1x3x1x4xf32, #tpu.memory_space<vmem>>, vector<1x1x1x4xf32>
        %97 = vector.shape_cast %96 : vector<1x1x1x4xf32> to vector<1x4xf32>
        %98 = vector.broadcast %97 : vector<1x4xf32> to vector<128x4xf32>
        %99 = arith.addf %95, %98 : vector<128x4xf32>
        %c2_83 = arith.constant 2 : index
        %100 = arith.index_cast %63 : i32 to index
        %c0_84 = arith.constant 0 : index
        %101 = vector.load %arg11[%c2_83, %100, %c0_84] : memref<3x256x4xf32, #tpu.memory_space<vmem>>, vector<1x128x4xf32>
        %102 = vector.shape_cast %101 : vector<1x128x4xf32> to vector<128x4xf32>
        %103 = vector.shape_cast %99 : vector<128x4xf32> to vector<1x128x4xf32>
        tpu.vector_store %arg11[%c2_83, %100, %c0_84], %103 {strides = array<i32>} : memref<3x256x4xf32, #tpu.memory_space<vmem>>, vector<1x128x4xf32>,
      }
      %c2_i32_43 = arith.constant 2 : i32
      %c1 = arith.constant 1 : index
      %c0_44 = arith.constant 0 : index
      %c0_45 = arith.constant 0 : index
      %56 = vector.load %arg11[%c1, %c0_44, %c0_45] : memref<3x256x4xf32, #tpu.memory_space<vmem>>, vector<1x256x4xf32>
      %57 = vector.shape_cast %56 : vector<1x256x4xf32> to vector<256x4xf32>
      %58 = tpu.transpose %57, [1, 0] : vector<256x4xf32> -> vector<4x256xf32>
      %c0_46 = arith.constant 0 : index
      %c0_47 = arith.constant 0 : index
      %c0_48 = arith.constant 0 : index
      %59 = vector.load %arg12[%c0_46, %c0_47, %c0_48] : memref<1x4x256xf32, #tpu.memory_space<vmem>>, vector<1x4x256xf32>
      %60 = vector.shape_cast %59 : vector<1x4x256xf32> to vector<4x256xf32>
      %61 = vector.shape_cast %58 : vector<4x256xf32> to vector<1x4x256xf32>
      tpu.vector_store %arg12[%c0_46, %c0_47, %c0_48], %61 {strides = array<i32>} : memref<1x4x256xf32, #tpu.memory_space<vmem>>, vector<1x4x256xf32>,
    } else {
    }
    %c128_i32 = arith.constant 128 : i32
    %3 = arith.muli %arg1, %c128_i32 : i32
    %4 = tpu.assume_multiple %3, 128 : i32
    %c0 = arith.constant 0 : index
    %5 = arith.index_cast %4 : i32 to index
    %c0_1 = arith.constant 0 : index
    %6 = vector.load %arg2[%c0, %5, %c0_1] : memref<1x256x4xf32, #tpu.memory_space<vmem>>, vector<1x128x4xf32>
    %7 = vector.shape_cast %6 : vector<1x128x4xf32> to vector<128x4xf32>
    %c0_2 = arith.constant 0 : index
    %c0_3 = arith.constant 0 : index
    %8 = vector.load %arg9[%c0_2, %c0_3] : memref<1x4xf32, #tpu.memory_space<vmem>>, vector<1x4xf32>
    %9 = vector.broadcast %8 : vector<1x4xf32> to vector<128x4xf32>
    %10 = arith.addf %7, %9 : vector<128x4xf32>
    %c0_4 = arith.constant 0 : index
    %11 = arith.index_cast %4 : i32 to index
    %c0_5 = arith.constant 0 : index
    %12 = vector.load %arg11[%c0_4, %11, %c0_5] : memref<3x256x4xf32, #tpu.memory_space<vmem>>, vector<1x128x4xf32>
    %13 = vector.shape_cast %12 : vector<1x128x4xf32> to vector<128x4xf32>
    %c0_6 = arith.constant 0 : index
    %c0_7 = arith.constant 0 : index
    %c0_8 = arith.constant 0 : index
    %14 = vector.load %arg12[%c0_6, %c0_7, %c0_8] : memref<1x4x256xf32, #tpu.memory_space<vmem>>, vector<1x4x256xf32>
    %15 = vector.shape_cast %14 : vector<1x4x256xf32> to vector<4x256xf32>
    %cst = arith.constant dense<0.000000e+00> : vector<128x256xf32>
    %16 = tpu.matmul %13, %15, %cst {dimension_numbers = #tpu.dot_dimension_numbers<[1], [0], [0], [1], [0, 0, 1, 1], [], []>} : vector<128x4xf32>, vector<4x256xf32>, vector<128x256xf32> -> vector<128x256xf32>
    %cst_9 = arith.constant dense<0xFF800000> : vector<128xf32>
    %17 = vector.multi_reduction <maximumf>, %16, %cst_9 [1] : vector<128x256xf32> to vector<128xf32>
    %18 = vector.shape_cast %17 : vector<128xf32> to vector<128x1xf32>
    %19 = vector.broadcast %18 : vector<128x1xf32> to vector<128x256xf32>
    %20 = arith.subf %16, %19 : vector<128x256xf32>
    %21 = math.exp %20 : vector<128x256xf32>
    %cst_10 = arith.constant dense<0.000000e+00> : vector<128xf32>
    %22 = vector.multi_reduction <add>, %21, %cst_10 [1] : vector<128x256xf32> to vector<128xf32>
    %23 = vector.shape_cast %22 : vector<128xf32> to vector<128x1xf32>
    %c2 = arith.constant 2 : index
    %c0_11 = arith.constant 0 : index
    %c0_12 = arith.constant 0 : index
    %24 = vector.load %arg11[%c2, %c0_11, %c0_12] : memref<3x256x4xf32, #tpu.memory_space<vmem>>, vector<1x256x4xf32>
    %25 = vector.shape_cast %24 : vector<1x256x4xf32> to vector<256x4xf32>
    %cst_13 = arith.constant dense<0.000000e+00> : vector<128x4xf32>
    %26 = tpu.matmul %21, %25, %cst_13 {dimension_numbers = #tpu.dot_dimension_numbers<[1], [0], [0], [1], [0, 0, 1, 1], [], []>} : vector<128x256xf32>, vector<256x4xf32>, vector<128x4xf32> -> vector<128x4xf32>
    %27 = tpu.reciprocal %23 : vector<128x1xf32> -> vector<128x1xf32>
    %28 = vector.broadcast %27 : vector<128x1xf32> to vector<128x4xf32>
    %29 = arith.mulf %26, %28 : vector<128x4xf32>
    %c0_14 = arith.constant 0 : index
    %c0_15 = arith.constant 0 : index
    %c0_16 = arith.constant 0 : index
    %30 = vector.load %arg8[%c0_14, %c0_15, %c0_16] : memref<1x4x4xf32, #tpu.memory_space<vmem>>, vector<1x4x4xf32>
    %31 = vector.shape_cast %30 : vector<1x4x4xf32> to vector<4x4xf32>
    %cst_17 = arith.constant dense<0.000000e+00> : vector<128x4xf32>
    %32 = tpu.matmul %29, %31, %cst_17 {dimension_numbers = #tpu.dot_dimension_numbers<[1], [0], [0], [1], [0, 0, 1, 1], [], []>} : vector<128x4xf32>, vector<4x4xf32>, vector<128x4xf32> -> vector<128x4xf32>
    %33 = arith.addf %10, %32 : vector<128x4xf32>
    %c0_18 = arith.constant 0 : index
    %c0_19 = arith.constant 0 : index
    %c0_20 = arith.constant 0 : index
    %34 = vector.load %arg10[%c0_18, %c0_19, %c0_20] : memref<1x128x4xf32, #tpu.memory_space<vmem>>, vector<1x128x4xf32>
    %35 = vector.shape_cast %34 : vector<1x128x4xf32> to vector<128x4xf32>
    %36 = vector.shape_cast %33 : vector<128x4xf32> to vector<1x128x4xf32>
    tpu.vector_store %arg10[%c0_18, %c0_19, %c0_20], %36 {strides = array<i32>} : memref<1x128x4xf32, #tpu.memory_space<vmem>>, vector<1x128x4xf32>,
    return
  }
  func.func @transform_0(%arg0: i32, %arg1: i32) -> (i32, i32, i32) {
    %c0_i32 = arith.constant 0 : i32
    %c0_i32_0 = arith.constant 0 : i32
    %c0_i32_1 = arith.constant 0 : i32
    return %arg0, %c0_i32, %c0_i32_0 : i32, i32, i32
  }
  func.func @transform_1(%arg0: i32, %arg1: i32) -> (i32, i32) {
    %c0_i32 = arith.constant 0 : i32
    %c0_i32_0 = arith.constant 0 : i32
    %c0_i32_1 = arith.constant 0 : i32
    return %c0_i32, %c0_i32_0 : i32, i32
  }
  func.func @transform_2(%arg0: i32, %arg1: i32) -> (i32, i32) {
    %c0_i32 = arith.constant 0 : i32
    %c0_i32_0 = arith.constant 0 : i32
    %c0_i32_1 = arith.constant 0 : i32
    return %c0_i32, %c0_i32_0 : i32, i32
  }
  func.func @transform_3(%arg0: i32, %arg1: i32) -> (i32, i32) {
    %c0_i32 = arith.constant 0 : i32
    %c0_i32_0 = arith.constant 0 : i32
    %c0_i32_1 = arith.constant 0 : i32
    return %c0_i32, %c0_i32_0 : i32, i32
  }
  func.func @transform_4(%arg0: i32, %arg1: i32) -> (i32, i32, i32, i32) {
    %c0_i32 = arith.constant 0 : i32
    %c0_i32_0 = arith.constant 0 : i32
    %c0_i32_1 = arith.constant 0 : i32
    %c0_i32_2 = arith.constant 0 : i32
    %c0_i32_3 = arith.constant 0 : i32
    return %c0_i32, %c0_i32_0, %c0_i32_1, %c0_i32_2 : i32, i32, i32, i32
  }
  func.func @transform_5(%arg0: i32, %arg1: i32) -> (i32, i32, i32, i32) {
    %c0_i32 = arith.constant 0 : i32
    %c0_i32_0 = arith.constant 0 : i32
    %c0_i32_1 = arith.constant 0 : i32
    %c0_i32_2 = arith.constant 0 : i32
    %c0_i32_3 = arith.constant 0 : i32
    return %c0_i32, %c0_i32_0, %c0_i32_1, %c0_i32_2 : i32, i32, i32, i32
  }
  func.func @transform_6(%arg0: i32, %arg1: i32) -> (i32, i32, i32) {
    %c0_i32 = arith.constant 0 : i32
    %c0_i32_0 = arith.constant 0 : i32
    %c0_i32_1 = arith.constant 0 : i32
    %c0_i32_2 = arith.constant 0 : i32
    return %c0_i32, %c0_i32_0, %c0_i32_1 : i32, i32, i32
  }
  func.func @transform_7(%arg0: i32, %arg1: i32) -> (i32, i32) {
    %c0_i32 = arith.constant 0 : i32
    %c0_i32_0 = arith.constant 0 : i32
    %c0_i32_1 = arith.constant 0 : i32
    return %c0_i32, %c0_i32_0 : i32, i32
  }
  func.func @transform_8(%arg0: i32, %arg1: i32) -> (i32, i32, i32) {
    %c0_i32 = arith.constant 0 : i32
    %c0_i32_0 = arith.constant 0 : i32
    return %arg0, %arg1, %c0_i32 : i32, i32, i32
  }
}

module attributes {stable_mosaic.version = 11 : i64} {
  func.func @_attn_block_kernel(%arg0: i32, %arg1: i32, %arg2: memref<1x256x4xf32, #tpu.memory_space<vmem>>, %arg3: memref<4x4xf32, #tpu.memory_space<vmem>>, %arg4: memref<1x4xf32, #tpu.memory_space<vmem>>, %arg5: memref<1x4xf32, #tpu.memory_space<vmem>>, %arg6: memref<1x3x4x4xf32, #tpu.memory_space<vmem>>, %arg7: memref<1x3x1x4xf32, #tpu.memory_space<vmem>>, %arg8: memref<1x4x4xf32, #tpu.memory_space<vmem>>, %arg9: memref<1x4xf32, #tpu.memory_space<vmem>>, %arg10: memref<1x128x4xf32, #tpu.memory_space<vmem>>, %arg11: memref<3x256x4xf32, #tpu.memory_space<vmem>>, %arg12: memref<1x4x256xf32, #tpu.memory_space<vmem>>) attributes {dimension_semantics = [#tpu.dimension_semantics<parallel>, #tpu.dimension_semantics<arbitrary>], iteration_bounds = array<i64: 2, 2>, scalar_prefetch = 0 : i64, scratch_operands = 2 : i64, tpu.core_type = #tpu.core_type<tc>, window_params = [{transform_indices = @transform_0, window_bounds = array<i64: 1, 256, 4>}, {pipeline_mode = #tpu.pipeline_mode<synchronous>, transform_indices = @transform_1, window_bounds = array<i64: 4, 4>}, {pipeline_mode = #tpu.pipeline_mode<synchronous>, transform_indices = @transform_2, window_bounds = array<i64: 1, 4>}, {pipeline_mode = #tpu.pipeline_mode<synchronous>, transform_indices = @transform_3, window_bounds = array<i64: 1, 4>}, {pipeline_mode = #tpu.pipeline_mode<synchronous>, transform_indices = @transform_4, window_bounds = array<i64: 1, 3, 4, 4>}, {pipeline_mode = #tpu.pipeline_mode<synchronous>, transform_indices = @transform_5, window_bounds = array<i64: 1, 3, 1, 4>}, {pipeline_mode = #tpu.pipeline_mode<synchronous>, transform_indices = @transform_6, window_bounds = array<i64: 1, 4, 4>}, {pipeline_mode = #tpu.pipeline_mode<synchronous>, transform_indices = @transform_7, window_bounds = array<i64: 1, 4>}, {transform_indices = @transform_8, window_bounds = array<i64: 1, 128, 4>}]} {
    %c0_i32 = arith.constant 0 : i32
    %0 = arith.cmpi eq, %arg1, %c0_i32 : i32
    %1 = arith.extui %0 : i1 to i32
    %c0_i32_0 = arith.constant 0 : i32
    %2 = arith.cmpi ne, %1, %c0_i32_0 : i32
    scf.if %2 {
      %cst_21 = arith.constant 0.000000e+00 : f32
      %37 = vector.broadcast %cst_21 : f32 to vector<1x4xf32>
      %c0_i32_22 = arith.constant 0 : i32
      %c2_i32 = arith.constant 2 : i32
      %38 = arith.addi %c0_i32_22, %c2_i32 : i32
      %c1_i32 = arith.constant 1 : i32
      %39 = scf.for %arg13 = %c0_i32_22 to %38 step %c1_i32 iter_args(%arg14 = %37) -> (vector<1x4xf32>)  : i32 {
        %c128_i32_49 = arith.constant 128 : i32
        %62 = arith.muli %arg13, %c128_i32_49 : i32
        %63 = tpu.assume_multiple %62, 128 : i32
        %c0_50 = arith.constant 0 : index
        %64 = arith.index_cast %63 : i32 to index
        %c0_51 = arith.constant 0 : index
        %65 = vector.load %arg2[%c0_50, %64, %c0_51] : memref<1x256x4xf32, #tpu.memory_space<vmem>>, vector<1x128x4xf32>
        %66 = vector.shape_cast %65 : vector<1x128x4xf32> to vector<128x4xf32>
        %cst_52 = arith.constant dense<0.000000e+00> : vector<4xf32>
        %67 = vector.multi_reduction <add>, %66, %cst_52 [0] : vector<128x4xf32> to vector<4xf32>
        %68 = vector.shape_cast %67 : vector<4xf32> to vector<1x4xf32>
        %69 = arith.addf %arg14, %68 : vector<1x4xf32>
        scf.yield %69 : vector<1x4xf32>
      }
      %c2_i32_23 = arith.constant 2 : i32
      %c0_24 = arith.constant 0 : index
      %c0_25 = arith.constant 0 : index
      %40 = vector.load %arg3[%c0_24, %c0_25] : memref<4x4xf32, #tpu.memory_space<vmem>>, vector<4x4xf32>
      %cst_26 = arith.constant dense<0.000000e+00> : vector<1x4xf32>
      %41 = tpu.matmul %39, %40, %cst_26 {dimension_numbers = #tpu.dot_dimension_numbers<[1], [0], [0], [1], [0, 0, 1, 1], [], []>} : vector<1x4xf32>, vector<4x4xf32>, vector<1x4xf32> -> vector<1x4xf32>
      %cst_27 = arith.constant 0.000000e+00 : f32
      %42 = vector.broadcast %cst_27 : f32 to vector<1x4xf32>
      %c0_i32_28 = arith.constant 0 : i32
      %c2_i32_29 = arith.constant 2 : i32
      %43 = arith.addi %c0_i32_28, %c2_i32_29 : i32
      %c1_i32_30 = arith.constant 1 : i32
      %44 = scf.for %arg13 = %c0_i32_28 to %43 step %c1_i32_30 iter_args(%arg14 = %42) -> (vector<1x4xf32>)  : i32 {
        %c128_i32_49 = arith.constant 128 : i32
        %62 = arith.muli %arg13, %c128_i32_49 : i32
        %63 = tpu.assume_multiple %62, 128 : i32
        %c0_50 = arith.constant 0 : index
        %64 = arith.index_cast %63 : i32 to index
        %c0_51 = arith.constant 0 : index
        %65 = vector.load %arg2[%c0_50, %64, %c0_51] : memref<1x256x4xf32, #tpu.memory_space<vmem>>, vector<1x128x4xf32>
        %66 = vector.shape_cast %65 : vector<1x128x4xf32> to vector<128x4xf32>
        %67 = vector.broadcast %41 : vector<1x4xf32> to vector<128x4xf32>
        %68 = arith.subf %66, %67 : vector<128x4xf32>
        %69 = arith.mulf %68, %68 : vector<128x4xf32>
        %cst_52 = arith.constant dense<0.000000e+00> : vector<4xf32>
        %70 = vector.multi_reduction <add>, %69, %cst_52 [0] : vector<128x4xf32> to vector<4xf32>
        %71 = vector.shape_cast %70 : vector<4xf32> to vector<1x4xf32>
        %72 = arith.addf %arg14, %71 : vector<1x4xf32>
        scf.yield %72 : vector<1x4xf32>
      }
      %c2_i32_31 = arith.constant 2 : i32
      %c0_32 = arith.constant 0 : index
      %c0_33 = arith.constant 0 : index
      %45 = vector.load %arg3[%c0_32, %c0_33] : memref<4x4xf32, #tpu.memory_space<vmem>>, vector<4x4xf32>
      %cst_34 = arith.constant dense<0.000000e+00> : vector<1x4xf32>
      %46 = tpu.matmul %44, %45, %cst_34 {dimension_numbers = #tpu.dot_dimension_numbers<[1], [0], [0], [1], [0, 0, 1, 1], [], []>} : vector<1x4xf32>, vector<4x4xf32>, vector<1x4xf32> -> vector<1x4xf32>
      %cst_35 = arith.constant 9.99999997E-7 : f32
      %47 = vector.broadcast %cst_35 : f32 to vector<1x4xf32>
      %48 = arith.addf %46, %47 : vector<1x4xf32>
      %49 = math.rsqrt %48 : vector<1x4xf32>
      %c0_36 = arith.constant 0 : index
      %c0_37 = arith.constant 0 : index
      %50 = vector.load %arg4[%c0_36, %c0_37] : memref<1x4xf32, #tpu.memory_space<vmem>>, vector<1x4xf32>
      %51 = arith.mulf %49, %50 : vector<1x4xf32>
      %c0_38 = arith.constant 0 : index
      %c0_39 = arith.constant 0 : index
      %52 = vector.load %arg5[%c0_38, %c0_39] : memref<1x4xf32, #tpu.memory_space<vmem>>, vector<1x4xf32>
      %53 = arith.mulf %41, %51 : vector<1x4xf32>
      %54 = arith.subf %52, %53 : vector<1x4xf32>
      %c0_i32_40 = arith.constant 0 : i32
      %c2_i32_41 = arith.constant 2 : i32
      %55 = arith.addi %c0_i32_40, %c2_i32_41 : i32
      %c1_i32_42 = arith.constant 1 : i32
      scf.for %arg13 = %c0_i32_40 to %55 step %c1_i32_42  : i32 {
        %c128_i32_49 = arith.constant 128 : i32
        %62 = arith.muli %arg13, %c128_i32_49 : i32
        %63 = tpu.assume_multiple %62, 128 : i32
        %c0_50 = arith.constant 0 : index
        %64 = arith.index_cast %63 : i32 to index
        %c0_51 = arith.constant 0 : index
        %65 = vector.load %arg2[%c0_50, %64, %c0_51] : memref<1x256x4xf32, #tpu.memory_space<vmem>>, vector<1x128x4xf32>
        %66 = vector.shape_cast %65 : vector<1x128x4xf32> to vector<128x4xf32>
        %67 = vector.broadcast %51 : vector<1x4xf32> to vector<128x4xf32>
        %68 = arith.mulf %66, %67 : vector<128x4xf32>
        %69 = vector.broadcast %54 : vector<1x4xf32> to vector<128x4xf32>
        %70 = arith.addf %68, %69 : vector<128x4xf32>
        %c0_52 = arith.constant 0 : index
        %c0_53 = arith.constant 0 : index
        %c0_54 = arith.constant 0 : index
        %c0_55 = arith.constant 0 : index
        %71 = vector.load %arg6[%c0_52, %c0_53, %c0_54, %c0_55] : memref<1x3x4x4xf32, #tpu.memory_space<vmem>>, vector<1x1x4x4xf32>
        %72 = vector.shape_cast %71 : vector<1x1x4x4xf32> to vector<4x4xf32>
        %cst_56 = arith.constant dense<0.000000e+00> : vector<128x4xf32>
        %73 = tpu.matmul %70, %72, %cst_56 {dimension_numbers = #tpu.dot_dimension_numbers<[1], [0], [0], [1], [0, 0, 1, 1], [], []>} : vector<128x4xf32>, vector<4x4xf32>, vector<128x4xf32> -> vector<128x4xf32>
        %c0_57 = arith.constant 0 : index
        %c0_58 = arith.constant 0 : index
        %c0_59 = arith.constant 0 : index
        %c0_60 = arith.constant 0 : index
        %74 = vector.load %arg7[%c0_57, %c0_58, %c0_59, %c0_60] : memref<1x3x1x4xf32, #tpu.memory_space<vmem>>, vector<1x1x1x4xf32>
        %75 = vector.shape_cast %74 : vector<1x1x1x4xf32> to vector<1x4xf32>
        %76 = vector.broadcast %75 : vector<1x4xf32> to vector<128x4xf32>
        %77 = arith.addf %73, %76 : vector<128x4xf32>
        %c0_61 = arith.constant 0 : index
        %78 = arith.index_cast %63 : i32 to index
        %c0_62 = arith.constant 0 : index
        %79 = vector.load %arg11[%c0_61, %78, %c0_62] : memref<3x256x4xf32, #tpu.memory_space<vmem>>, vector<1x128x4xf32>
        %80 = vector.shape_cast %79 : vector<1x128x4xf32> to vector<128x4xf32>
        %81 = vector.shape_cast %77 : vector<128x4xf32> to vector<1x128x4xf32>
        tpu.vector_store %arg11[%c0_61, %78, %c0_62], %81 {strides = array<i32>} : memref<3x256x4xf32, #tpu.memory_space<vmem>>, vector<1x128x4xf32>,
        %c0_63 = arith.constant 0 : index
        %c1_64 = arith.constant 1 : index
        %c0_65 = arith.constant 0 : index
        %c0_66 = arith.constant 0 : index
        %82 = vector.load %arg6[%c0_63, %c1_64, %c0_65, %c0_66] : memref<1x3x4x4xf32, #tpu.memory_space<vmem>>, vector<1x1x4x4xf32>
        %83 = vector.shape_cast %82 : vector<1x1x4x4xf32> to vector<4x4xf32>
        %cst_67 = arith.constant dense<0.000000e+00> : vector<128x4xf32>
        %84 = tpu.matmul %70, %83, %cst_67 {dimension_numbers = #tpu.dot_dimension_numbers<[1], [0], [0], [1], [0, 0, 1, 1], [], []>} : vector<128x4xf32>, vector<4x4xf32>, vector<128x4xf32> -> vector<128x4xf32>
        %c0_68 = arith.constant 0 : index
        %c1_69 = arith.constant 1 : index
        %c0_70 = arith.constant 0 : index
        %c0_71 = arith.constant 0 : index
        %85 = vector.load %arg7[%c0_68, %c1_69, %c0_70, %c0_71] : memref<1x3x1x4xf32, #tpu.memory_space<vmem>>, vector<1x1x1x4xf32>
        %86 = vector.shape_cast %85 : vector<1x1x1x4xf32> to vector<1x4xf32>
        %87 = vector.broadcast %86 : vector<1x4xf32> to vector<128x4xf32>
        %88 = arith.addf %84, %87 : vector<128x4xf32>
        %c1_72 = arith.constant 1 : index
        %89 = arith.index_cast %63 : i32 to index
        %c0_73 = arith.constant 0 : index
        %90 = vector.load %arg11[%c1_72, %89, %c0_73] : memref<3x256x4xf32, #tpu.memory_space<vmem>>, vector<1x128x4xf32>
        %91 = vector.shape_cast %90 : vector<1x128x4xf32> to vector<128x4xf32>
        %92 = vector.shape_cast %88 : vector<128x4xf32> to vector<1x128x4xf32>
        tpu.vector_store %arg11[%c1_72, %89, %c0_73], %92 {strides = array<i32>} : memref<3x256x4xf32, #tpu.memory_space<vmem>>, vector<1x128x4xf32>,
        %c0_74 = arith.constant 0 : index
        %c2_75 = arith.constant 2 : index
        %c0_76 = arith.constant 0 : index
        %c0_77 = arith.constant 0 : index
        %93 = vector.load %arg6[%c0_74, %c2_75, %c0_76, %c0_77] : memref<1x3x4x4xf32, #tpu.memory_space<vmem>>, vector<1x1x4x4xf32>
        %94 = vector.shape_cast %93 : vector<1x1x4x4xf32> to vector<4x4xf32>
        %cst_78 = arith.constant dense<0.000000e+00> : vector<128x4xf32>
        %95 = tpu.matmul %70, %94, %cst_78 {dimension_numbers = #tpu.dot_dimension_numbers<[1], [0], [0], [1], [0, 0, 1, 1], [], []>} : vector<128x4xf32>, vector<4x4xf32>, vector<128x4xf32> -> vector<128x4xf32>
        %c0_79 = arith.constant 0 : index
        %c2_80 = arith.constant 2 : index
        %c0_81 = arith.constant 0 : index
        %c0_82 = arith.constant 0 : index
        %96 = vector.load %arg7[%c0_79, %c2_80, %c0_81, %c0_82] : memref<1x3x1x4xf32, #tpu.memory_space<vmem>>, vector<1x1x1x4xf32>
        %97 = vector.shape_cast %96 : vector<1x1x1x4xf32> to vector<1x4xf32>
        %98 = vector.broadcast %97 : vector<1x4xf32> to vector<128x4xf32>
        %99 = arith.addf %95, %98 : vector<128x4xf32>
        %c2_83 = arith.constant 2 : index
        %100 = arith.index_cast %63 : i32 to index
        %c0_84 = arith.constant 0 : index
        %101 = vector.load %arg11[%c2_83, %100, %c0_84] : memref<3x256x4xf32, #tpu.memory_space<vmem>>, vector<1x128x4xf32>
        %102 = vector.shape_cast %101 : vector<1x128x4xf32> to vector<128x4xf32>
        %103 = vector.shape_cast %99 : vector<128x4xf32> to vector<1x128x4xf32>
        tpu.vector_store %arg11[%c2_83, %100, %c0_84], %103 {strides = array<i32>} : memref<3x256x4xf32, #tpu.memory_space<vmem>>, vector<1x128x4xf32>,
      }
      %c2_i32_43 = arith.constant 2 : i32
      %c1 = arith.constant 1 : index
      %c0_44 = arith.constant 0 : index
      %c0_45 = arith.constant 0 : index
      %56 = vector.load %arg11[%c1, %c0_44, %c0_45] : memref<3x256x4xf32, #tpu.memory_space<vmem>>, vector<1x256x4xf32>
      %57 = vector.shape_cast %56 : vector<1x256x4xf32> to vector<256x4xf32>
      %58 = tpu.transpose %57, [1, 0] : vector<256x4xf32> -> vector<4x256xf32>
      %c0_46 = arith.constant 0 : index
      %c0_47 = arith.constant 0 : index
      %c0_48 = arith.constant 0 : index
      %59 = vector.load %arg12[%c0_46, %c0_47, %c0_48] : memref<1x4x256xf32, #tpu.memory_space<vmem>>, vector<1x4x256xf32>
      %60 = vector.shape_cast %59 : vector<1x4x256xf32> to vector<4x256xf32>
      %61 = vector.shape_cast %58 : vector<4x256xf32> to vector<1x4x256xf32>
      tpu.vector_store %arg12[%c0_46, %c0_47, %c0_48], %61 {strides = array<i32>} : memref<1x4x256xf32, #tpu.memory_space<vmem>>, vector<1x4x256xf32>,
    } else {
    }
    %c128_i32 = arith.constant 128 : i32
    %3 = arith.muli %arg1, %c128_i32 : i32
    %4 = tpu.assume_multiple %3, 128 : i32
    %c0 = arith.constant 0 : index
    %5 = arith.index_cast %4 : i32 to index
    %c0_1 = arith.constant 0 : index
    %6 = vector.load %arg2[%c0, %5, %c0_1] : memref<1x256x4xf32, #tpu.memory_space<vmem>>, vector<1x128x4xf32>
    %7 = vector.shape_cast %6 : vector<1x128x4xf32> to vector<128x4xf32>
    %c0_2 = arith.constant 0 : index
    %c0_3 = arith.constant 0 : index
    %8 = vector.load %arg9[%c0_2, %c0_3] : memref<1x4xf32, #tpu.memory_space<vmem>>, vector<1x4xf32>
    %9 = vector.broadcast %8 : vector<1x4xf32> to vector<128x4xf32>
    %10 = arith.addf %7, %9 : vector<128x4xf32>
    %c0_4 = arith.constant 0 : index
    %11 = arith.index_cast %4 : i32 to index
    %c0_5 = arith.constant 0 : index
    %12 = vector.load %arg11[%c0_4, %11, %c0_5] : memref<3x256x4xf32, #tpu.memory_space<vmem>>, vector<1x128x4xf32>
    %13 = vector.shape_cast %12 : vector<1x128x4xf32> to vector<128x4xf32>
    %c0_6 = arith.constant 0 : index
    %c0_7 = arith.constant 0 : index
    %c0_8 = arith.constant 0 : index
    %14 = vector.load %arg12[%c0_6, %c0_7, %c0_8] : memref<1x4x256xf32, #tpu.memory_space<vmem>>, vector<1x4x256xf32>
    %15 = vector.shape_cast %14 : vector<1x4x256xf32> to vector<4x256xf32>
    %cst = arith.constant dense<0.000000e+00> : vector<128x256xf32>
    %16 = tpu.matmul %13, %15, %cst {dimension_numbers = #tpu.dot_dimension_numbers<[1], [0], [0], [1], [0, 0, 1, 1], [], []>} : vector<128x4xf32>, vector<4x256xf32>, vector<128x256xf32> -> vector<128x256xf32>
    %cst_9 = arith.constant dense<0xFF800000> : vector<128xf32>
    %17 = vector.multi_reduction <maximumf>, %16, %cst_9 [1] : vector<128x256xf32> to vector<128xf32>
    %18 = vector.shape_cast %17 : vector<128xf32> to vector<128x1xf32>
    %19 = vector.broadcast %18 : vector<128x1xf32> to vector<128x256xf32>
    %20 = arith.subf %16, %19 : vector<128x256xf32>
    %21 = math.exp %20 : vector<128x256xf32>
    %cst_10 = arith.constant dense<0.000000e+00> : vector<128xf32>
    %22 = vector.multi_reduction <add>, %21, %cst_10 [1] : vector<128x256xf32> to vector<128xf32>
    %23 = vector.shape_cast %22 : vector<128xf32> to vector<128x1xf32>
    %c2 = arith.constant 2 : index
    %c0_11 = arith.constant 0 : index
    %c0_12 = arith.constant 0 : index
    %24 = vector.load %arg11[%c2, %c0_11, %c0_12] : memref<3x256x4xf32, #tpu.memory_space<vmem>>, vector<1x256x4xf32>
    %25 = vector.shape_cast %24 : vector<1x256x4xf32> to vector<256x4xf32>
    %cst_13 = arith.constant dense<0.000000e+00> : vector<128x4xf32>
    %26 = tpu.matmul %21, %25, %cst_13 {dimension_numbers = #tpu.dot_dimension_numbers<[1], [0], [0], [1], [0, 0, 1, 1], [], []>} : vector<128x256xf32>, vector<256x4xf32>, vector<128x4xf32> -> vector<128x4xf32>
    %27 = tpu.reciprocal %23 : vector<128x1xf32> -> vector<128x1xf32>
    %28 = vector.broadcast %27 : vector<128x1xf32> to vector<128x4xf32>
    %29 = arith.mulf %26, %28 : vector<128x4xf32>
    %c0_14 = arith.constant 0 : index
    %c0_15 = arith.constant 0 : index
    %c0_16 = arith.constant 0 : index
    %30 = vector.load %arg8[%c0_14, %c0_15, %c0_16] : memref<1x4x4xf32, #tpu.memory_space<vmem>>, vector<1x4x4xf32>
    %31 = vector.shape_cast %30 : vector<1x4x4xf32> to vector<4x4xf32>
    %cst_17 = arith.constant dense<0.000000e+00> : vector<128x4xf32>
    %32 = tpu.matmul %29, %31, %cst_17 {dimension_numbers = #tpu.dot_dimension_numbers<[1], [0], [0], [1], [0, 0, 1, 1], [], []>} : vector<128x4xf32>, vector<4x4xf32>, vector<128x4xf32> -> vector<128x4xf32>
    %33 = arith.addf %10, %32 : vector<128x4xf32>
    %c0_18 = arith.constant 0 : index
    %c0_19 = arith.constant 0 : index
    %c0_20 = arith.constant 0 : index
    %34 = vector.load %arg10[%c0_18, %c0_19, %c0_20] : memref<1x128x4xf32, #tpu.memory_space<vmem>>, vector<1x128x4xf32>
    %35 = vector.shape_cast %34 : vector<1x128x4xf32> to vector<128x4xf32>
    %36 = vector.shape_cast %33 : vector<128x4xf32> to vector<1x128x4xf32>
    tpu.vector_store %arg10[%c0_18, %c0_19, %c0_20], %36 {strides = array<i32>} : memref<1x128x4xf32, #tpu.memory_space<vmem>>, vector<1x128x4xf32>,
    return
  }
  func.func @transform_0(%arg0: i32, %arg1: i32) -> (i32, i32, i32) {
    %c0_i32 = arith.constant 0 : i32
    %c0_i32_0 = arith.constant 0 : i32
    %c0_i32_1 = arith.constant 0 : i32
    return %arg0, %c0_i32, %c0_i32_0 : i32, i32, i32
  }
  func.func @transform_1(%arg0: i32, %arg1: i32) -> (i32, i32) {
    %c0_i32 = arith.constant 0 : i32
    %c0_i32_0 = arith.constant 0 : i32
    %c0_i32_1 = arith.constant 0 : i32
    return %c0_i32, %c0_i32_0 : i32, i32
  }
  func.func @transform_2(%arg0: i32, %arg1: i32) -> (i32, i32) {
    %c0_i32 = arith.constant 0 : i32
    %c0_i32_0 = arith.constant 0 : i32
    %c0_i32_1 = arith.constant 0 : i32
    return %c0_i32, %c0_i32_0 : i32, i32
  }
  func.func @transform_3(%arg0: i32, %arg1: i32) -> (i32, i32) {
    %c0_i32 = arith.constant 0 : i32
    %c0_i32_0 = arith.constant 0 : i32
    %c0_i32_1 = arith.constant 0 : i32
    return %c0_i32, %c0_i32_0 : i32, i32
  }
  func.func @transform_4(%arg0: i32, %arg1: i32) -> (i32, i32, i32, i32) {
    %c0_i32 = arith.constant 0 : i32
    %c0_i32_0 = arith.constant 0 : i32
    %c0_i32_1 = arith.constant 0 : i32
    %c0_i32_2 = arith.constant 0 : i32
    %c0_i32_3 = arith.constant 0 : i32
    return %c0_i32, %c0_i32_0, %c0_i32_1, %c0_i32_2 : i32, i32, i32, i32
  }
  func.func @transform_5(%arg0: i32, %arg1: i32) -> (i32, i32, i32, i32) {
    %c0_i32 = arith.constant 0 : i32
    %c0_i32_0 = arith.constant 0 : i32
    %c0_i32_1 = arith.constant 0 : i32
    %c0_i32_2 = arith.constant 0 : i32
    %c0_i32_3 = arith.constant 0 : i32
    return %c0_i32, %c0_i32_0, %c0_i32_1, %c0_i32_2 : i32, i32, i32, i32
  }
  func.func @transform_6(%arg0: i32, %arg1: i32) -> (i32, i32, i32) {
    %c0_i32 = arith.constant 0 : i32
    %c0_i32_0 = arith.constant 0 : i32
    %c0_i32_1 = arith.constant 0 : i32
    %c0_i32_2 = arith.constant 0 : i32
    return %c0_i32, %c0_i32_0, %c0_i32_1 : i32, i32, i32
  }
  func.func @transform_7(%arg0: i32, %arg1: i32) -> (i32, i32) {
    %c0_i32 = arith.constant 0 : i32
    %c0_i32_0 = arith.constant 0 : i32
    %c0_i32_1 = arith.constant 0 : i32
    return %c0_i32, %c0_i32_0 : i32, i32
  }
  func.func @transform_8(%arg0: i32, %arg1: i32) -> (i32, i32, i32) {
    %c0_i32 = arith.constant 0 : i32
    %c0_i32_0 = arith.constant 0 : i32
    return %arg0, %arg1, %c0_i32 : i32, i32, i32
  }
}

</mosaic_0001>

<llo_original>
// kernel: tpu_custom_call.1
$region0: #{tpu_custom_call.1}
  #allocation0 [shape = 'u32[]', space=smem, size = 0x4, offset = 0x4, fixed_abs, tag = 'smem constant byte address 0x4 - core index']
  #allocation1 [shape = 'u32[144,128]{1,0:T(1,128)}', space=vmem, size = 0x12000, scoped, tag = 'internal scratch']
  #allocation2 [shape = 'f32[3,256,4]{2,1,0:T(8,128)}', space=vmem, size = 0x60000, scoped, tag = 'scratch operand']
  #allocation3 [shape = 'f32[1,4,256]{2,1,0:T(4,128)}', space=vmem, size = 0x1000, scoped, tag = 'scratch operand']
  %s0 = inlined_call_operand.vmem [shape: f32[2,256,4], index: 0, kind: input, shape index: {}]
  %s1 = inlined_call_operand.vmem [shape: f32[4,4], index: 1, kind: input, shape index: {}]
  %s2 = inlined_call_operand.vmem [shape: f32[1,4], index: 2, kind: input, shape index: {}]
  %s3 = inlined_call_operand.vmem [shape: f32[1,4], index: 3, kind: input, shape index: {}]
  %s4 = inlined_call_operand.vmem [shape: f32[1,3,4,4], index: 4, kind: input, shape index: {}]
  %s5 = inlined_call_operand.vmem [shape: f32[1,3,1,4], index: 5, kind: input, shape index: {}]
  %s6 = inlined_call_operand.vmem [shape: f32[1,4,4], index: 6, kind: input, shape index: {}]
  %s7 = inlined_call_operand.vmem [shape: f32[1,4], index: 7, kind: input, shape index: {}]
  %s8 = inlined_call_operand.vmem [shape: f32[2,256,4], index: 8, kind: output, shape index: {}]
  %s9 = sld [smem:[#allocation0]]
  $region90: #{tpu_custom_call.1} parent=0
    _
  %s11 = ssub.s32 1, %s9
  %s12 = scalar_select 0, %s11, %s9
  loop: start=0, step=1, limit=6
  $region2: #{tpu_custom_call.1} parent=0 // loop_pre_header
    _
  $region3: #{tpu_custom_call.1} parent=0 // loop_header
    %s14 = sphi 0, %s18
    %p15 = scmp.ge.s32.totalorder %s14, 6
    %s21 = sphi 0, %s33
    %s22 = sphi 0, %s29
    %s23 = sphi 0, %s21
    %s24 = sphi 0, %s22
    %s25 = sphi 0, %s23
    %s26 = sphi 0, %s24
    %s36 = sphi 0, %s38
    %s39 = sphi 0, %s36
    %s40 = sphi 0, %s39
    %s56 = sphi 0, %s40
    %s60 = sphi 0, %s60
    %s62 = sphi 0, %s60
    %s63 = sphi 0, %s62
    %s77 = sphi 0, %s63
    %s81 = sphi 0, %s81
    %s83 = sphi 0, %s81
    %s84 = sphi 0, %s83
    %s98 = sphi 0, %s84
    %s102 = sphi 0, %s102
    %s104 = sphi 0, %s102
    %s105 = sphi 0, %s104
    %s119 = sphi 0, %s105
    %s123 = sphi 0, %s123
    %s125 = sphi 0, %s123
    %s126 = sphi 0, %s125
    %s140 = sphi 0, %s126
    %s144 = sphi 0, %s144
    %s146 = sphi 0, %s144
    %s147 = sphi 0, %s146
    %s161 = sphi 0, %s147
    %s165 = sphi 0, %s165
    %s167 = sphi 0, %s165
    %s168 = sphi 0, %s167
    %s182 = sphi 0, %s168
    %s186 = sphi 0, %s186
    %s188 = sphi 0, %s186
    %s189 = sphi 0, %s188
    %s203 = sphi 0, %s189
    %s211 = sphi 0, %s213
    %s214 = sphi 0, %s211
    %s215 = sphi 0, %s214
    %s231 = sphi 0, %s215
  $region4: #{tpu_custom_call.1} parent=0 // loop_header_branch
    %17 = sbr.rel (%p15) target = $region8
  $region5: #{tpu_custom_call.1} parent=0 // loop_body
    %s19 = ssub.s32 %s14, 1
    %s20 = ssub.s32 %s14, 2
    %s27 = sadd.s32 1, %s22
    %p28 = scmp.ge.s32.totalorder %s27, 2
    %s29 = scalar_select %p28, 0, %s27
    %s30 = sadd.s32 1, %s21
    %s31 = scalar_select %p28, %s30, %s21
    %p32 = scmp.ge.s32.totalorder %s31, 2
    %s33 = scalar_select %p32, 0, %s31
    %s34 = ssub.s32 %s21, %s33
    %p35 = scmp.eq.s32.totalorder %s34, 0
    %s37 = sadd.s32 %s36, 1
    %s38 = scalar_select %p35, %s36, %s37
    %p41 = pneg %p35
    %p42 = scmp.eq.s32.totalorder %s14, 3
    %p43 = por %p41, %p42
    %p44 = scmp.ne.s32.totalorder %s36, %s39
    %p45 = scmp.eq.s32.totalorder %s14, 0
    %p46 = por %p44, %p45
    %p47 = scmp.ne.s32.totalorder %s36, %s39
    %p48 = scmp.eq.s32.totalorder %s19, 3
    %p49 = por %p47, %p48
    %p50 = scmp.ne.s32.totalorder %s39, %s40
    %p51 = scmp.eq.s32.totalorder %s19, 0
    %p52 = por %p50, %p51
    %p53 = scmp.ne.s32.totalorder %s39, %s40
    %p54 = scmp.eq.s32.totalorder %s20, 3
    %p55 = por %p53, %p54
    %p57 = scmp.ne.s32.totalorder %s40, %s56
    %p58 = scmp.eq.s32.totalorder %s20, 0
    %p59 = por %p57, %p58
    %s61 = sadd.s32 %s60, 1
    %p64 = scmp.eq.s32.totalorder %s14, 3
    %p65 = scmp.ne.s32.totalorder %s60, %s62
    %p66 = scmp.eq.s32.totalorder %s14, 0
    %p67 = por %p65, %p66
    %p68 = scmp.ne.s32.totalorder %s60, %s62
    %p69 = scmp.eq.s32.totalorder %s19, 3
    %p70 = por %p68, %p69
    %p71 = scmp.ne.s32.totalorder %s62, %s63
    %p72 = scmp.eq.s32.totalorder %s19, 0
    %p73 = por %p71, %p72
    %p74 = scmp.ne.s32.totalorder %s62, %s63
    %p75 = scmp.eq.s32.totalorder %s20, 3
    %p76 = por %p74, %p75
    %p78 = scmp.ne.s32.totalorder %s63, %s77
    %p79 = scmp.eq.s32.totalorder %s20, 0
    %p80 = por %p78, %p79
    %s82 = sadd.s32 %s81, 1
    %p85 = scmp.eq.s32.totalorder %s14, 3
    %p86 = scmp.ne.s32.totalorder %s81, %s83
    %p87 = scmp.eq.s32.totalorder %s14, 0
    %p88 = por %p86, %p87
    %p89 = scmp.ne.s32.totalorder %s81, %s83
    %p90 = scmp.eq.s32.totalorder %s19, 3
    %p91 = por %p89, %p90
    %p92 = scmp.ne.s32.totalorder %s83, %s84
    %p93 = scmp.eq.s32.totalorder %s19, 0
    %p94 = por %p92, %p93
    %p95 = scmp.ne.s32.totalorder %s83, %s84
    %p96 = scmp.eq.s32.totalorder %s20, 3
    %p97 = por %p95, %p96
    %p99 = scmp.ne.s32.totalorder %s84, %s98
    %p100 = scmp.eq.s32.totalorder %s20, 0
    %p101 = por %p99, %p100
    %s103 = sadd.s32 %s102, 1
    %p106 = scmp.eq.s32.totalorder %s14, 3
    %p107 = scmp.ne.s32.totalorder %s102, %s104
    %p108 = scmp.eq.s32.totalorder %s14, 0
    %p109 = por %p107, %p108
    %p110 = scmp.ne.s32.totalorder %s102, %s104
    %p111 = scmp.eq.s32.totalorder %s19, 3
    %p112 = por %p110, %p111
    %p113 = scmp.ne.s32.totalorder %s104, %s105
    %p114 = scmp.eq.s32.totalorder %s19, 0
    %p115 = por %p113, %p114
    %p116 = scmp.ne.s32.totalorder %s104, %s105
    %p117 = scmp.eq.s32.totalorder %s20, 3
    %p118 = por %p116, %p117
    %p120 = scmp.ne.s32.totalorder %s105, %s119
    %p121 = scmp.eq.s32.totalorder %s20, 0
    %p122 = por %p120, %p121
    %s124 = sadd.s32 %s123, 1
    %p127 = scmp.eq.s32.totalorder %s14, 3
    %p128 = scmp.ne.s32.totalorder %s123, %s125
    %p129 = scmp.eq.s32.totalorder %s14, 0
    %p130 = por %p128, %p129
    %p131 = scmp.ne.s32.totalorder %s123, %s125
    %p132 = scmp.eq.s32.totalorder %s19, 3
    %p133 = por %p131, %p132
    %p134 = scmp.ne.s32.totalorder %s125, %s126
    %p135 = scmp.eq.s32.totalorder %s19, 0
    %p136 = por %p134, %p135
    %p137 = scmp.ne.s32.totalorder %s125, %s126
    %p138 = scmp.eq.s32.totalorder %s20, 3
    %p139 = por %p137, %p138
    %p141 = scmp.ne.s32.totalorder %s126, %s140
    %p142 = scmp.eq.s32.totalorder %s20, 0
    %p143 = por %p141, %p142
    %s145 = sadd.s32 %s144, 1
    %p148 = scmp.eq.s32.totalorder %s14, 3
    %p149 = scmp.ne.s32.totalorder %s144, %s146
    %p150 = scmp.eq.s32.totalorder %s14, 0
    %p151 = por %p149, %p150
    %p152 = scmp.ne.s32.totalorder %s144, %s146
    %p153 = scmp.eq.s32.totalorder %s19, 3
    %p154 = por %p152, %p153
    %p155 = scmp.ne.s32.totalorder %s146, %s147
    %p156 = scmp.eq.s32.totalorder %s19, 0
    %p157 = por %p155, %p156
    %p158 = scmp.ne.s32.totalorder %s146, %s147
    %p159 = scmp.eq.s32.totalorder %s20, 3
    %p160 = por %p158, %p159
    %p162 = scmp.ne.s32.totalorder %s147, %s161
    %p163 = scmp.eq.s32.totalorder %s20, 0
    %p164 = por %p162, %p163
    %s166 = sadd.s32 %s165, 1
    %p169 = scmp.eq.s32.totalorder %s14, 3
    %p170 = scmp.ne.s32.totalorder %s165, %s167
    %p171 = scmp.eq.s32.totalorder %s14, 0
    %p172 = por %p170, %p171
    %p173 = scmp.ne.s32.totalorder %s165, %s167
    %p174 = scmp.eq.s32.totalorder %s19, 3
    %p175 = por %p173, %p174
    %p176 = scmp.ne.s32.totalorder %s167, %s168
    %p177 = scmp.eq.s32.totalorder %s19, 0
    %p178 = por %p176, %p177
    %p179 = scmp.ne.s32.totalorder %s167, %s168
    %p180 = scmp.eq.s32.totalorder %s20, 3
    %p181 = por %p179, %p180
    %p183 = scmp.ne.s32.totalorder %s168, %s182
    %p184 = scmp.eq.s32.totalorder %s20, 0
    %p185 = por %p183, %p184
    %s187 = sadd.s32 %s186, 1
    %p190 = scmp.eq.s32.totalorder %s14, 3
    %p191 = scmp.ne.s32.totalorder %s186, %s188
    %p192 = scmp.eq.s32.totalorder %s14, 0
    %p193 = por %p191, %p192
    %p194 = scmp.ne.s32.totalorder %s186, %s188
    %p195 = scmp.eq.s32.totalorder %s19, 3
    %p196 = por %p194, %p195
    %p197 = scmp.ne.s32.totalorder %s188, %s189
    %p198 = scmp.eq.s32.totalorder %s19, 0
    %p199 = por %p197, %p198
    %p200 = scmp.ne.s32.totalorder %s188, %s189
    %p201 = scmp.eq.s32.totalorder %s20, 3
    %p202 = por %p200, %p201
    %p204 = scmp.ne.s32.totalorder %s189, %s203
    %p205 = scmp.eq.s32.totalorder %s20, 0
    %p206 = por %p204, %p205
    %s207 = ssub.s32 %s21, %s33
    %s208 = ssub.s32 %s22, %s29
    %s209 = sor.u32 %s207, %s208
    %p210 = scmp.eq.s32.totalorder %s209, 0
    %s212 = sadd.s32 %s211, 1
    %s213 = scalar_select %p210, %s211, %s212
    %p216 = pneg %p210
    %p217 = scmp.eq.s32.totalorder %s14, 3
    %p218 = por %p216, %p217
    %p219 = scmp.ne.s32.totalorder %s211, %s214
    %p220 = scmp.eq.s32.totalorder %s14, 0
    %p221 = por %p219, %p220
    %p222 = scmp.ne.s32.totalorder %s211, %s214
    %p223 = scmp.eq.s32.totalorder %s19, 3
    %p224 = por %p222, %p223
    %p225 = scmp.ne.s32.totalorder %s214, %s215
    %p226 = scmp.eq.s32.totalorder %s19, 0
    %p227 = por %p225, %p226
    %p228 = scmp.ne.s32.totalorder %s214, %s215
    %p229 = scmp.eq.s32.totalorder %s20, 3
    %p230 = por %p228, %p229
    %p232 = scmp.ne.s32.totalorder %s215, %s231
    %p233 = scmp.eq.s32.totalorder %s20, 0
    %p234 = por %p232, %p233
    %p235 = scmp.le.s32.totalorder 1, %s14
    %p236 = scmp.lt.s32.totalorder %s14, 5
    %p237 = pnand %p235, %p236
    %p238 = pneg %p237
    // Predicated region
    $region9: #{tpu_custom_call.1} parent=5 // pred_check
      _
    $region10: #{tpu_custom_call.1} parent=5 // pred_check_branch
      %240 = sbr.rel (%p237) target = $region12
    $region11: #{tpu_custom_call.1} parent=5 // pred_region
      %s241 = ssub.s32 %s14, 1
      // Predicated region
      $region13: #{tpu_custom_call.1} parent=11 // pred_check
        %p242 = pneg %p73
      $region14: #{tpu_custom_call.1} parent=11 // pred_check_branch
        %244 = sbr.rel (%p242) target = $region16
      $region15: #{tpu_custom_call.1} parent=11 // pred_region
        _
      $region16: #{tpu_custom_call.1} parent=11 // pred_fallthru
        _
      // Predicated region
      $region17: #{tpu_custom_call.1} parent=11 // pred_check
        %p245 = pneg %p94
      $region18: #{tpu_custom_call.1} parent=11 // pred_check_branch
        %247 = sbr.rel (%p245) target = $region20
      $region19: #{tpu_custom_call.1} parent=11 // pred_region
        _
      $region20: #{tpu_custom_call.1} parent=11 // pred_fallthru
        _
      // Predicated region
      $region21: #{tpu_custom_call.1} parent=11 // pred_check
        %p248 = pneg %p115
      $region22: #{tpu_custom_call.1} parent=11 // pred_check_branch
        %250 = sbr.rel (%p248) target = $region24
      $region23: #{tpu_custom_call.1} parent=11 // pred_region
        _
      $region24: #{tpu_custom_call.1} parent=11 // pred_fallthru
        _
      // Predicated region
      $region25: #{tpu_custom_call.1} parent=11 // pred_check
        %p251 = pneg %p136
      $region26: #{tpu_custom_call.1} parent=11 // pred_check_branch
        %253 = sbr.rel (%p251) target = $region28
      $region27: #{tpu_custom_call.1} parent=11 // pred_region
        _
      $region28: #{tpu_custom_call.1} parent=11 // pred_fallthru
        _
      // Predicated region
      $region29: #{tpu_custom_call.1} parent=11 // pred_check
        %p254 = pneg %p157
      $region30: #{tpu_custom_call.1} parent=11 // pred_check_branch
        %256 = sbr.rel (%p254) target = $region32
      $region31: #{tpu_custom_call.1} parent=11 // pred_region
        _
      $region32: #{tpu_custom_call.1} parent=11 // pred_fallthru
        _
      // Predicated region
      $region33: #{tpu_custom_call.1} parent=11 // pred_check
        %p257 = pneg %p178
      $region34: #{tpu_custom_call.1} parent=11 // pred_check_branch
        %259 = sbr.rel (%p257) target = $region36
      $region35: #{tpu_custom_call.1} parent=11 // pred_region
        _
      $region36: #{tpu_custom_call.1} parent=11 // pred_fallthru
        _
      // Predicated region
      $region37: #{tpu_custom_call.1} parent=11 // pred_check
        %p260 = pneg %p199
      $region38: #{tpu_custom_call.1} parent=11 // pred_check_branch
        %262 = sbr.rel (%p260) target = $region40
      $region39: #{tpu_custom_call.1} parent=11 // pred_region
        _
      $region40: #{tpu_custom_call.1} parent=11 // pred_fallthru
        _
    $region12: #{tpu_custom_call.1} parent=5 // pred_fallthru
      _
    %p263 = scmp.lt.s32.totalorder %s14, 4
    // Predicated region
    $region41: #{tpu_custom_call.1} parent=5 // pred_check
      %p264 = pneg %p263
    $region42: #{tpu_custom_call.1} parent=5 // pred_check_branch
      %266 = sbr.rel (%p264) target = $region44
    $region43: #{tpu_custom_call.1} parent=5 // pred_region
      // Predicated region
      $region45: #{tpu_custom_call.1} parent=43 // pred_check
        %p267 = pneg %p46
      $region46: #{tpu_custom_call.1} parent=43 // pred_check_branch
        %269 = sbr.rel (%p267) target = $region48
      $region47: #{tpu_custom_call.1} parent=43 // pred_region
        %p270 = scmp.lt.s32.totalorder %s21, 1
        %s271 = scalar_select %p270, %s21, 1
        %s272 = smul.addr %s271, 32
        %s273 = smul.addr %s272, 8
        %s274 = scalar_lea.vmem %s0, %s273
      $region48: #{tpu_custom_call.1} parent=43 // pred_fallthru
        _
    $region44: #{tpu_custom_call.1} parent=5 // pred_fallthru
      _
    %p275 = scmp.le.s32.totalorder 1, %s14
    %p276 = scmp.lt.s32.totalorder %s14, 5
    %p277 = pnand %p275, %p276
    %p278 = pneg %p277
    // Predicated region
    $region49: #{tpu_custom_call.1} parent=5 // pred_check
      _
    $region50: #{tpu_custom_call.1} parent=5 // pred_check_branch
      %280 = sbr.rel (%p277) target = $region52
    $region51: #{tpu_custom_call.1} parent=5 // pred_region
      %s281 = ssub.s32 %s14, 1
      %p282 = scmp.lt.s32.totalorder %s23, 1
      %s283 = scalar_select %p282, %s23, 1
      %s284 = smul.addr %s283, 32
      %s285 = smul.addr %s284, 8
      %s286 = scalar_lea.vmem %s0, %s285
      %p287 = pneg %p52
      %p288 = pneg %p49
      %p289 = pneg %p73
      %p290 = pneg %p70
      %p291 = pneg %p94
      %p292 = pneg %p91
      %p293 = pneg %p115
      %p294 = pneg %p112
      %p295 = pneg %p136
      %p296 = pneg %p133
      %p297 = pneg %p157
      %p298 = pneg %p154
      %p299 = pneg %p178
      %p300 = pneg %p175
      %p301 = pneg %p199
      %p302 = pneg %p196
      %p303 = pneg %p227
      %p304 = pneg %p224
      %s305 = smul.u32 16, %s24
      %p306 = scmp.lt.s32.totalorder %s23, 1
      %s307 = scalar_select %p306, %s23, 1
      %p308 = scmp.lt.s32.totalorder %s305, 31
      %s309 = scalar_select %p308, %s305, 31
      %s310 = smul.addr %s307, 32
      %s311 = sadd.s32 %s309, %s310
      %s312 = smul.addr %s311, 8
      %s313 = scalar_lea.vmem %s8, %s312
      %p314 = scmp.lt.s32.totalorder %s23, 1
      %s315 = scalar_select %p314, %s23, 1
      %s316 = smul.addr %s315, 32
      %s317 = smul.addr %s316, 8
      %s318 = scalar_lea.vmem %s0, %s317
      %s319 = smul.u32 16, %s24
      %p320 = scmp.lt.s32.totalorder %s23, 1
      %s321 = scalar_select %p320, %s23, 1
      %p322 = scmp.lt.s32.totalorder %s319, 31
      %s323 = scalar_select %p322, %s319, 31
      %s324 = smul.addr %s321, 32
      %s325 = sadd.s32 %s323, %s324
      %s326 = smul.addr %s325, 8
      %s327 = scalar_lea.vmem %s8, %s326
      %s328 = smul.u32 16, %s24
      %p329 = scmp.eq.s32.totalorder %s24, 0
      // Predicated region
      $region53: #{tpu_custom_call.1} parent=51 // pred_check
        %p330 = pneg %p329
      $region54: #{tpu_custom_call.1} parent=51 // pred_check_branch
        %332 = sbr.rel (%p330) target = $region56
      $region55: #{tpu_custom_call.1} parent=51 // pred_region
        loop: start=0, step=1, limit=2
        $region57: #{tpu_custom_call.1} parent=55 // loop_pre_header
          _
        $region58: #{tpu_custom_call.1} parent=55 // loop_header
          %s334 = sphi 0, %s338
          %p335 = scmp.ge.s32.totalorder %s334, 2
          %v339 = vphi 0.0, %v396
        $region59: #{tpu_custom_call.1} parent=55 // loop_header_branch
          %337 = sbr.rel (%p335) target = $region63
        $region60: #{tpu_custom_call.1} parent=55 // loop_body
          %s340 = smul.u32 %s334, 128
          %s341 = scalar_lea.vmem %s318, %s340
          %v342 = vld [vmem:[%s341] sm:$0xff]
          %v343 = vld [vmem:[%s341 + $0x8] sm:$0xff]
          %v344 = vld [vmem:[%s341 + $0x10] sm:$0xff]
          %v345 = vld [vmem:[%s341 + $0x18] sm:$0xff]
          %v346 = vld [vmem:[%s341 + $0x20] sm:$0xff]
          %v347 = vld [vmem:[%s341 + $0x28] sm:$0xff]
          %v348 = vld [vmem:[%s341 + $0x30] sm:$0xff]
          %v349 = vld [vmem:[%s341 + $0x38] sm:$0xff]
          %v350 = vld [vmem:[%s341 + $0x40] sm:$0xff]
          %v351 = vld [vmem:[%s341 + $0x48] sm:$0xff]
          %v352 = vld [vmem:[%s341 + $0x50] sm:$0xff]
          %v353 = vld [vmem:[%s341 + $0x58] sm:$0xff]
          %v354 = vld [vmem:[%s341 + $0x60] sm:$0xff]
          %v355 = vld [vmem:[%s341 + $0x68] sm:$0xff]
          %v356 = vld [vmem:[%s341 + $0x70] sm:$0xff]
          %v357 = vld [vmem:[%s341 + $0x78] sm:$0xff]
          %vm358 = vcmask 31744
          %v359 = vsel %vm358, %v342, 0.0
          %v360 = vsel %vm358, %v343, 0.0
          %v361 = vadd.f32 %v359, %v360
          %v362 = vsel %vm358, %v344, 0.0
          %v363 = vadd.f32 %v361, %v362
          %v364 = vsel %vm358, %v345, 0.0
          %v365 = vadd.f32 %v363, %v364
          %v366 = vsel %vm358, %v346, 0.0
          %v367 = vadd.f32 %v365, %v366
          %v368 = vsel %vm358, %v347, 0.0
          %v369 = vadd.f32 %v367, %v368
          %v370 = vsel %vm358, %v348, 0.0
          %v371 = vadd.f32 %v369, %v370
          %v372 = vsel %vm358, %v349, 0.0
          %v373 = vadd.f32 %v371, %v372
          %v374 = vsel %vm358, %v350, 0.0
          %v375 = vadd.f32 %v373, %v374
          %v376 = vsel %vm358, %v351, 0.0
          %v377 = vadd.f32 %v375, %v376
          %v378 = vsel %vm358, %v352, 0.0
          %v379 = vadd.f32 %v377, %v378
          %v380 = vsel %vm358, %v353, 0.0
          %v381 = vadd.f32 %v379, %v380
          %v382 = vsel %vm358, %v354, 0.0
          %v383 = vadd.f32 %v381, %v382
          %v384 = vsel %vm358, %v355, 0.0
          %v385 = vadd.f32 %v383, %v384
          %v386 = vsel %vm358, %v356, 0.0
          %v387 = vadd.f32 %v385, %v386
          %v388 = vsel %vm358, %v357, 0.0
          %v389 = vadd.f32 %v387, %v388
          %v390 = vrot.slane %v389, 4
          %v391 = vadd.f32 %v389, %v390
          %v392 = vrot.slane %v391, 2
          %v393 = vadd.f32 %v391, %v392
          %v394 = vrot.slane %v393, 1
          %v395 = vadd.f32 %v393, %v394
          %v396 = vadd.f32 %v339, %v395
        $region61: #{tpu_custom_call.1} parent=55 // loop_footer
          %s338 = sadd.s32 1, %s334
        $region62: #{tpu_custom_call.1} parent=55 // loop_footer_branch
          %333 = sbr.rel target = $region58
        $region63: #{tpu_custom_call.1} parent=55 // loop_exit
          _
        %v397 = vld [vmem:[%s1] sm:$0xf]
        %vm398 = vcmask 31744
        %v400 = vsel %vm398, %v339, 0
        %vm402 = vcmask 1043456
        %v404 = vsel %vm402, %v397, 0
        %406 = vmatprep.subr.mxu0 0.0
        %407 = vmatpush1.msra.mxu0 0.0
        %408 = vmatprep.subr.mxu0 0.0
        %409 = vmatpush1.msra.mxu0 0.0
        %410 = vmatprep.subr.mxu0 0.0
        %411 = vmatpush1.msra.mxu0 0.0
        %412 = vmatprep.subr.mxu0 0.0
        %413 = vmatpush1.msra.mxu0 0.0
        %414 = vmatprep.subr.mxu0 0.0
        %415 = vmatpush1.msra.mxu0 0.0
        %416 = vmatprep.subr.mxu0 0.0
        %417 = vmatpush1.msra.mxu0 0.0
        %418 = vmatprep.subr.mxu0 0.0
        %419 = vmatpush1.msra.mxu0 0.0
        %420 = vmatprep.subr.mxu0 0.0
        %421 = vmatpush1.msra.mxu0 0.0
        %422 = vmatprep.subr.mxu0 0.0
        %423 = vmatpush1.msra.mxu0 0.0
        %424 = vmatprep.subr.mxu0 0.0
        %425 = vmatpush1.msra.mxu0 0.0
        %426 = vmatprep.subr.mxu0 0.0
        %427 = vmatpush1.msra.mxu0 0.0
        %428 = vmatprep.subr.mxu0 0.0
        %429 = vmatpush1.msra.mxu0 0.0
        %430 = vmatprep.subr.mxu0 0.0
        %431 = vmatpush1.msra.mxu0 0.0
        %432 = vmatprep.subr.mxu0 0.0
        %433 = vmatpush1.msra.mxu0 0.0
        %434 = vmatprep.subr.mxu0 0.0
        %435 = vmatpush1.msra.mxu0 0.0
        %436 = vmatprep.subr.mxu0 0.0
        %437 = vmatpush1.msra.mxu0 %v404
        %438 = vmatprep.subr.mxu0 0.0
        %439 = vmatpush2.msra.mxu0 0.0
        %440 = vmatprep.subr.mxu0 0.0
        %441 = vmatpush2.msra.mxu0 0.0
        %442 = vmatprep.subr.mxu0 0.0
        %443 = vmatpush2.msra.mxu0 0.0
        %444 = vmatprep.subr.mxu0 0.0
        %445 = vmatpush2.msra.mxu0 0.0
        %446 = vmatprep.subr.mxu0 0.0
        %447 = vmatpush2.msra.mxu0 0.0
        %448 = vmatprep.subr.mxu0 0.0
        %449 = vmatpush2.msra.mxu0 0.0
        %450 = vmatprep.subr.mxu0 0.0
        %451 = vmatpush2.msra.mxu0 0.0
        %452 = vmatprep.subr.mxu0 0.0
        %453 = vmatpush2.msra.mxu0 0.0
        %454 = vmatprep.subr.mxu0 0.0
        %455 = vmatpush2.msra.mxu0 0.0
        %456 = vmatprep.subr.mxu0 0.0
        %457 = vmatpush2.msra.mxu0 0.0
        %458 = vmatprep.subr.mxu0 0.0
        %459 = vmatpush2.msra.mxu0 0.0
        %460 = vmatprep.subr.mxu0 0.0
        %461 = vmatpush2.msra.mxu0 0.0
        %462 = vmatprep.subr.mxu0 0.0
        %463 = vmatpush2.msra.mxu0 0.0
        %464 = vmatprep.subr.mxu0 0.0
        %465 = vmatpush2.msra.mxu0 0.0
        %466 = vmatprep.subr.mxu0 0.0
        %467 = vmatpush2.msra.mxu0 0.0
        %468 = vmatprep.subr.mxu0 0.0
        %469 = vmatpush2.msra.mxu0 0.0
        %470 = vmatprep.mubr.f32.mxu0 0.0
        %471 = vmatmul.mubr.f32.gmra.mxu0 %v400
        %v472 = vpop.f32.mrf.mxu0
        %v473 = vadd.f32 0.0, %v472
        %v474 = vpop.f32.mrf.mxu0
        %475 = vdwg.mxu0
        loop: start=0, step=1, limit=2
        $region64: #{tpu_custom_call.1} parent=55 // loop_pre_header
          _
        $region65: #{tpu_custom_call.1} parent=55 // loop_header
          %s477 = sphi 0, %s481
          %p478 = scmp.ge.s32.totalorder %s477, 2
          %v482 = vphi 0.0, %v574
        $region66: #{tpu_custom_call.1} parent=55 // loop_header_branch
          %480 = sbr.rel (%p478) target = $region70
        $region67: #{tpu_custom_call.1} parent=55 // loop_body
          %s483 = smul.u32 %s477, 128
          %s484 = scalar_lea.vmem %s318, %s483
          %v485 = vld [vmem:[%s484] sm:$0xff]
          %v486 = vld [vmem:[%s484 + $0x8] sm:$0xff]
          %v487 = vld [vmem:[%s484 + $0x10] sm:$0xff]
          %v488 = vld [vmem:[%s484 + $0x18] sm:$0xff]
          %v489 = vld [vmem:[%s484 + $0x20] sm:$0xff]
          %v490 = vld [vmem:[%s484 + $0x28] sm:$0xff]
          %v491 = vld [vmem:[%s484 + $0x30] sm:$0xff]
          %v492 = vld [vmem:[%s484 + $0x38] sm:$0xff]
          %v493 = vld [vmem:[%s484 + $0x40] sm:$0xff]
          %v494 = vld [vmem:[%s484 + $0x48] sm:$0xff]
          %v495 = vld [vmem:[%s484 + $0x50] sm:$0xff]
          %v496 = vld [vmem:[%s484 + $0x58] sm:$0xff]
          %v497 = vld [vmem:[%s484 + $0x60] sm:$0xff]
          %v498 = vld [vmem:[%s484 + $0x68] sm:$0xff]
          %v499 = vld [vmem:[%s484 + $0x70] sm:$0xff]
          %v500 = vld [vmem:[%s484 + $0x78] sm:$0xff]
          %v501 = vlaneseq
          %v502 = vshrl.u32 %v501, 7
          %v503 = vsub.s32 0, %v502
          %v504 = vrot.slane %v473, %v503
          %v505 = vsub.f32 %v485, %v504
          %v506 = vsub.f32 %v486, %v504
          %v507 = vsub.f32 %v487, %v504
          %v508 = vsub.f32 %v488, %v504
          %v509 = vsub.f32 %v489, %v504
          %v510 = vsub.f32 %v490, %v504
          %v511 = vsub.f32 %v491, %v504
          %v512 = vsub.f32 %v492, %v504
          %v513 = vsub.f32 %v493, %v504
          %v514 = vsub.f32 %v494, %v504
          %v515 = vsub.f32 %v495, %v504
          %v516 = vsub.f32 %v496, %v504
          %v517 = vsub.f32 %v497, %v504
          %v518 = vsub.f32 %v498, %v504
          %v519 = vsub.f32 %v499, %v504
          %v520 = vsub.f32 %v500, %v504
          %v521 = vmul.f32 %v505, %v505
          %v522 = vmul.f32 %v506, %v506
          %v523 = vmul.f32 %v507, %v507
          %v524 = vmul.f32 %v508, %v508
          %v525 = vmul.f32 %v509, %v509
          %v526 = vmul.f32 %v510, %v510
          %v527 = vmul.f32 %v511, %v511
          %v528 = vmul.f32 %v512, %v512
          %v529 = vmul.f32 %v513, %v513
          %v530 = vmul.f32 %v514, %v514
          %v531 = vmul.f32 %v515, %v515
          %v532 = vmul.f32 %v516, %v516
          %v533 = vmul.f32 %v517, %v517
          %v534 = vmul.f32 %v518, %v518
          %v535 = vmul.f32 %v519, %v519
          %v536 = vmul.f32 %v520, %v520
          %v537 = vsel %vm398, %v521, 0.0
          %v538 = vsel %vm398, %v522, 0.0
          %v539 = vadd.f32 %v537, %v538
          %v540 = vsel %vm398, %v523, 0.0
          %v541 = vadd.f32 %v539, %v540
          %v542 = vsel %vm398, %v524, 0.0
          %v543 = vadd.f32 %v541, %v542
          %v544 = vsel %vm398, %v525, 0.0
          %v545 = vadd.f32 %v543, %v544
          %v546 = vsel %vm398, %v526, 0.0
          %v547 = vadd.f32 %v545, %v546
          %v548 = vsel %vm398, %v527, 0.0
          %v549 = vadd.f32 %v547, %v548
          %v550 = vsel %vm398, %v528, 0.0
          %v551 = vadd.f32 %v549, %v550
          %v552 = vsel %vm398, %v529, 0.0
          %v553 = vadd.f32 %v551, %v552
          %v554 = vsel %vm398, %v530, 0.0
          %v555 = vadd.f32 %v553, %v554
          %v556 = vsel %vm398, %v531, 0.0
          %v557 = vadd.f32 %v555, %v556
          %v558 = vsel %vm398, %v532, 0.0
          %v559 = vadd.f32 %v557, %v558
          %v560 = vsel %vm398, %v533, 0.0
          %v561 = vadd.f32 %v559, %v560
          %v562 = vsel %vm398, %v534, 0.0
          %v563 = vadd.f32 %v561, %v562
          %v564 = vsel %vm398, %v535, 0.0
          %v565 = vadd.f32 %v563, %v564
          %v566 = vsel %vm398, %v536, 0.0
          %v567 = vadd.f32 %v565, %v566
          %v568 = vrot.slane %v567, 4
          %v569 = vadd.f32 %v567, %v568
          %v570 = vrot.slane %v569, 2
          %v571 = vadd.f32 %v569, %v570
          %v572 = vrot.slane %v571, 1
          %v573 = vadd.f32 %v571, %v572
          %v574 = vadd.f32 %v482, %v573
        $region68: #{tpu_custom_call.1} parent=55 // loop_footer
          %s481 = sadd.s32 1, %s477
        $region69: #{tpu_custom_call.1} parent=55 // loop_footer_branch
          %476 = sbr.rel target = $region65
        $region70: #{tpu_custom_call.1} parent=55 // loop_exit
          _
        %v576 = vsel %vm398, %v482, 0
        %578 = vmatprep.subr.mxu0 0.0
        %579 = vmatpush1.msra.mxu0 0.0
        %580 = vmatprep.subr.mxu0 0.0
        %581 = vmatpush1.msra.mxu0 0.0
        %582 = vmatprep.subr.mxu0 0.0
        %583 = vmatpush1.msra.mxu0 0.0
        %584 = vmatprep.subr.mxu0 0.0
        %585 = vmatpush1.msra.mxu0 0.0
        %586 = vmatprep.subr.mxu0 0.0
        %587 = vmatpush1.msra.mxu0 0.0
        %588 = vmatprep.subr.mxu0 0.0
        %589 = vmatpush1.msra.mxu0 0.0
        %590 = vmatprep.subr.mxu0 0.0
        %591 = vmatpush1.msra.mxu0 0.0
        %592 = vmatprep.subr.mxu0 0.0
        %593 = vmatpush1.msra.mxu0 0.0
        %594 = vmatprep.subr.mxu0 0.0
        %595 = vmatpush1.msra.mxu0 0.0
        %596 = vmatprep.subr.mxu0 0.0
        %597 = vmatpush1.msra.mxu0 0.0
        %598 = vmatprep.subr.mxu0 0.0
        %599 = vmatpush1.msra.mxu0 0.0
        %600 = vmatprep.subr.mxu0 0.0
        %601 = vmatpush1.msra.mxu0 0.0
        %602 = vmatprep.subr.mxu0 0.0
        %603 = vmatpush1.msra.mxu0 0.0
        %604 = vmatprep.subr.mxu0 0.0
        %605 = vmatpush1.msra.mxu0 0.0
        %606 = vmatprep.subr.mxu0 0.0
        %607 = vmatpush1.msra.mxu0 0.0
        %608 = vmatprep.subr.mxu0 0.0
        %609 = vmatpush1.msra.mxu0 %v404
        %610 = vmatprep.subr.mxu0 0.0
        %611 = vmatpush2.msra.mxu0 0.0
        %612 = vmatprep.subr.mxu0 0.0
        %613 = vmatpush2.msra.mxu0 0.0
        %614 = vmatprep.subr.mxu0 0.0
        %615 = vmatpush2.msra.mxu0 0.0
        %616 = vmatprep.subr.mxu0 0.0
        %617 = vmatpush2.msra.mxu0 0.0
        %618 = vmatprep.subr.mxu0 0.0
        %619 = vmatpush2.msra.mxu0 0.0
        %620 = vmatprep.subr.mxu0 0.0
        %621 = vmatpush2.msra.mxu0 0.0
        %622 = vmatprep.subr.mxu0 0.0
        %623 = vmatpush2.msra.mxu0 0.0
        %624 = vmatprep.subr.mxu0 0.0
        %625 = vmatpush2.msra.mxu0 0.0
        %626 = vmatprep.subr.mxu0 0.0
        %627 = vmatpush2.msra.mxu0 0.0
        %628 = vmatprep.subr.mxu0 0.0
        %629 = vmatpush2.msra.mxu0 0.0
        %630 = vmatprep.subr.mxu0 0.0
        %631 = vmatpush2.msra.mxu0 0.0
        %632 = vmatprep.subr.mxu0 0.0
        %633 = vmatpush2.msra.mxu0 0.0
        %634 = vmatprep.subr.mxu0 0.0
        %635 = vmatpush2.msra.mxu0 0.0
        %636 = vmatprep.subr.mxu0 0.0
        %637 = vmatpush2.msra.mxu0 0.0
        %638 = vmatprep.subr.mxu0 0.0
        %639 = vmatpush2.msra.mxu0 0.0
        %640 = vmatprep.subr.mxu0 0.0
        %641 = vmatpush2.msra.mxu0 0.0
        %642 = vmatprep.mubr.f32.mxu0 0.0
        %643 = vmatmul.mubr.f32.gmra.mxu0 %v576
        %v644 = vpop.f32.mrf.mxu0
        %v645 = vadd.f32 1e-06, %v644
        %v646 = vpop.f32.mrf.mxu0
        %647 = vdwg.mxu0
        %v648 = vrsqrt.pop %v645
        %v649 = vld [vmem:[%s2] sm:$0x1]
        %v650 = vmul.f32 %v648, %v649
        %v651 = vld [vmem:[%s3] sm:$0x1]
        %v652 = vmul.f32 %v473, %v650
        %v653 = vsub.f32 %v651, %v652
        loop: start=0, step=1, limit=2
        $region71: #{tpu_custom_call.1} parent=55 // loop_pre_header
          _
        $region72: #{tpu_custom_call.1} parent=55 // loop_header
          %s655 = sphi 0, %s659
          %p656 = scmp.ge.s32.totalorder %s655, 2
        $region73: #{tpu_custom_call.1} parent=55 // loop_header_branch
          %658 = sbr.rel (%p656) target = $region77
        $region74: #{tpu_custom_call.1} parent=55 // loop_body
          %s660 = smul.u32 %s655, 128
          %s661 = scalar_lea.vmem %s318, %s660
          %v662 = vld [vmem:[%s661] sm:$0xff]
          %v663 = vld [vmem:[%s661 + $0x8] sm:$0xff]
          %v664 = vld [vmem:[%s661 + $0x10] sm:$0xff]
          %v665 = vld [vmem:[%s661 + $0x18] sm:$0xff]
          %v666 = vld [vmem:[%s661 + $0x20] sm:$0xff]
          %v667 = vld [vmem:[%s661 + $0x28] sm:$0xff]
          %v668 = vld [vmem:[%s661 + $0x30] sm:$0xff]
          %v669 = vld [vmem:[%s661 + $0x38] sm:$0xff]
          %v670 = vld [vmem:[%s661 + $0x40] sm:$0xff]
          %v671 = vld [vmem:[%s661 + $0x48] sm:$0xff]
          %v672 = vld [vmem:[%s661 + $0x50] sm:$0xff]
          %v673 = vld [vmem:[%s661 + $0x58] sm:$0xff]
          %v674 = vld [vmem:[%s661 + $0x60] sm:$0xff]
          %v675 = vld [vmem:[%s661 + $0x68] sm:$0xff]
          %v676 = vld [vmem:[%s661 + $0x70] sm:$0xff]
          %v677 = vld [vmem:[%s661 + $0x78] sm:$0xff]
          %v678 = vlaneseq
          %v679 = vshrl.u32 %v678, 7
          %v680 = vsub.s32 0, %v679
          %v681 = vrot.slane %v650, %v680
          %v682 = vmul.f32 %v662, %v681
          %v683 = vmul.f32 %v663, %v681
          %v684 = vmul.f32 %v664, %v681
          %v685 = vmul.f32 %v665, %v681
          %v686 = vmul.f32 %v666, %v681
          %v687 = vmul.f32 %v667, %v681
          %v688 = vmul.f32 %v668, %v681
          %v689 = vmul.f32 %v669, %v681
          %v690 = vmul.f32 %v670, %v681
          %v691 = vmul.f32 %v671, %v681
          %v692 = vmul.f32 %v672, %v681
          %v693 = vmul.f32 %v673, %v681
          %v694 = vmul.f32 %v674, %v681
          %v695 = vmul.f32 %v675, %v681
          %v696 = vmul.f32 %v676, %v681
          %v697 = vmul.f32 %v677, %v681
          %v699 = vlaneseq
          %v700 = vshrl.u32 %v699, 7
          %v701 = vsub.s32 0, %v700
          %v702 = vrot.slane %v653, %v701
          %v704 = vadd.f32 %v682, %v702
          %v705 = vadd.f32 %v683, %v702
          %v706 = vadd.f32 %v684, %v702
          %v707 = vadd.f32 %v685, %v702
          %v708 = vadd.f32 %v686, %v702
          %v709 = vadd.f32 %v687, %v702
          %v710 = vadd.f32 %v688, %v702
          %v711 = vadd.f32 %v689, %v702
          %v712 = vadd.f32 %v690, %v702
          %v713 = vadd.f32 %v691, %v702
          %v714 = vadd.f32 %v692, %v702
          %v715 = vadd.f32 %v693, %v702
          %v716 = vadd.f32 %v694, %v702
          %v717 = vadd.f32 %v695, %v702
          %v718 = vadd.f32 %v696, %v702
          %v719 = vadd.f32 %v697, %v702
          %v720 = vld [vmem:[%s4] sm:$0xf]
          %v721 = vld [vmem:[%s5] sm:$0x1]
          %v723 = vlaneseq
          %v724 = vshrl.u32 %v723, 7
          %v725 = vsub.s32 0, %v724
          %v726 = vrot.slane %v721, %v725
          %v729 = vsel %vm398, %v704, 0
          %v732 = vsel %vm398, %v705, 0
          %v735 = vsel %vm398, %v706, 0
          %v738 = vsel %vm398, %v707, 0
          %v741 = vsel %vm398, %v708, 0
          %v744 = vsel %vm398, %v709, 0
          %v747 = vsel %vm398, %v710, 0
          %v750 = vsel %vm398, %v711, 0
          %v753 = vsel %vm398, %v712, 0
          %v756 = vsel %vm398, %v713, 0
          %v759 = vsel %vm398, %v714, 0
          %v762 = vsel %vm398, %v715, 0
          %v765 = vsel %vm398, %v716, 0
          %v768 = vsel %vm398, %v717, 0
          %v771 = vsel %vm398, %v718, 0
          %v774 = vsel %vm398, %v719, 0
          %v777 = vsel %vm402, %v720, 0
          %779 = vmatprep.subr.mxu0 0.0
          %780 = vmatpush1.msra.mxu0 0.0
          %781 = vmatprep.subr.mxu0 0.0
          %782 = vmatpush1.msra.mxu0 0.0
          %783 = vmatprep.subr.mxu0 0.0
          %784 = vmatpush1.msra.mxu0 0.0
          %785 = vmatprep.subr.mxu0 0.0
          %786 = vmatpush1.msra.mxu0 0.0
          %787 = vmatprep.subr.mxu0 0.0
          %788 = vmatpush1.msra.mxu0 0.0
          %789 = vmatprep.subr.mxu0 0.0
          %790 = vmatpush1.msra.mxu0 0.0
          %791 = vmatprep.subr.mxu0 0.0
          %792 = vmatpush1.msra.mxu0 0.0
          %793 = vmatprep.subr.mxu0 0.0
          %794 = vmatpush1.msra.mxu0 0.0
          %795 = vmatprep.subr.mxu0 0.0
          %796 = vmatpush1.msra.mxu0 0.0
          %797 = vmatprep.subr.mxu0 0.0
          %798 = vmatpush1.msra.mxu0 0.0
          %799 = vmatprep.subr.mxu0 0.0
          %800 = vmatpush1.msra.mxu0 0.0
          %801 = vmatprep.subr.mxu0 0.0
          %802 = vmatpush1.msra.mxu0 0.0
          %803 = vmatprep.subr.mxu0 0.0
          %804 = vmatpush1.msra.mxu0 0.0
          %805 = vmatprep.subr.mxu0 0.0
          %806 = vmatpush1.msra.mxu0 0.0
          %807 = vmatprep.subr.mxu0 0.0
          %808 = vmatpush1.msra.mxu0 0.0
          %809 = vmatprep.subr.mxu0 0.0
          %810 = vmatpush1.msra.mxu0 %v777
          %811 = vmatprep.subr.mxu0 0.0
          %812 = vmatpush2.msra.mxu0 0.0
          %813 = vmatprep.subr.mxu0 0.0
          %814 = vmatpush2.msra.mxu0 0.0
          %815 = vmatprep.subr.mxu0 0.0
          %816 = vmatpush2.msra.mxu0 0.0
          %817 = vmatprep.subr.mxu0 0.0
          %818 = vmatpush2.msra.mxu0 0.0
          %819 = vmatprep.subr.mxu0 0.0
          %820 = vmatpush2.msra.mxu0 0.0
          %821 = vmatprep.subr.mxu0 0.0
          %822 = vmatpush2.msra.mxu0 0.0
          %823 = vmatprep.subr.mxu0 0.0
          %824 = vmatpush2.msra.mxu0 0.0
          %825 = vmatprep.subr.mxu0 0.0
          %826 = vmatpush2.msra.mxu0 0.0
          %827 = vmatprep.subr.mxu0 0.0
          %828 = vmatpush2.msra.mxu0 0.0
          %829 = vmatprep.subr.mxu0 0.0
          %830 = vmatpush2.msra.mxu0 0.0
          %831 = vmatprep.subr.mxu0 0.0
          %832 = vmatpush2.msra.mxu0 0.0
          %833 = vmatprep.subr.mxu0 0.0
          %834 = vmatpush2.msra.mxu0 0.0
          %835 = vmatprep.subr.mxu0 0.0
          %836 = vmatpush2.msra.mxu0 0.0
          %837 = vmatprep.subr.mxu0 0.0
          %838 = vmatpush2.msra.mxu0 0.0
          %839 = vmatprep.subr.mxu0 0.0
          %840 = vmatpush2.msra.mxu0 0.0
          %841 = vmatprep.subr.mxu0 0.0
          %842 = vmatpush2.msra.mxu0 0.0
          %843 = vmatprep.mubr.f32.mxu0 0.0
          %844 = vmatmul.mubr.f32.gmra.mxu0 %v729
          %v845 = vpop.f32.mrf.mxu0
          %v846 = vadd.f32 %v726, %v845
          %v847 = vpop.f32.mrf.mxu0
          %848 = vmatprep.mubr.f32.mxu0 0.0
          %849 = vmatmul.mubr.f32.gmra.mxu0 %v732
          %v850 = vpop.f32.mrf.mxu0
          %v851 = vadd.f32 %v726, %v850
          %v852 = vpop.f32.mrf.mxu0
          %853 = vmatprep.mubr.f32.mxu0 0.0
          %854 = vmatmul.mubr.f32.gmra.mxu0 %v735
          %v855 = vpop.f32.mrf.mxu0
          %v856 = vadd.f32 %v726, %v855
          %v857 = vpop.f32.mrf.mxu0
          %858 = vmatprep.mubr.f32.mxu0 0.0
          %859 = vmatmul.mubr.f32.gmra.mxu0 %v738
          %v860 = vpop.f32.mrf.mxu0
          %v861 = vadd.f32 %v726, %v860
          %v862 = vpop.f32.mrf.mxu0
          %863 = vmatprep.mubr.f32.mxu0 0.0
          %864 = vmatmul.mubr.f32.gmra.mxu0 %v741
          %v865 = vpop.f32.mrf.mxu0
          %v866 = vadd.f32 %v726, %v865
          %v867 = vpop.f32.mrf.mxu0
          %868 = vmatprep.mubr.f32.mxu0 0.0
          %869 = vmatmul.mubr.f32.gmra.mxu0 %v744
          %v870 = vpop.f32.mrf.mxu0
          %v871 = vadd.f32 %v726, %v870
          %v872 = vpop.f32.mrf.mxu0
          %873 = vmatprep.mubr.f32.mxu0 0.0
          %874 = vmatmul.mubr.f32.gmra.mxu0 %v747
          %v875 = vpop.f32.mrf.mxu0
          %v876 = vadd.f32 %v726, %v875
          %v877 = vpop.f32.mrf.mxu0
          %878 = vmatprep.mubr.f32.mxu0 0.0
          %879 = vmatmul.mubr.f32.gmra.mxu0 %v750
          %v880 = vpop.f32.mrf.mxu0
          %v881 = vadd.f32 %v726, %v880
          %v882 = vpop.f32.mrf.mxu0
          %883 = vmatprep.mubr.f32.mxu0 0.0
          %884 = vmatmul.mubr.f32.gmra.mxu0 %v753
          %v885 = vpop.f32.mrf.mxu0
          %v886 = vadd.f32 %v726, %v885
          %v887 = vpop.f32.mrf.mxu0
          %888 = vmatprep.mubr.f32.mxu0 0.0
          %889 = vmatmul.mubr.f32.gmra.mxu0 %v756
          %v890 = vpop.f32.mrf.mxu0
          %v891 = vadd.f32 %v726, %v890
          %v892 = vpop.f32.mrf.mxu0
          %893 = vmatprep.mubr.f32.mxu0 0.0
          %894 = vmatmul.mubr.f32.gmra.mxu0 %v759
          %v895 = vpop.f32.mrf.mxu0
          %v896 = vadd.f32 %v726, %v895
          %v897 = vpop.f32.mrf.mxu0
          %898 = vmatprep.mubr.f32.mxu0 0.0
          %899 = vmatmul.mubr.f32.gmra.mxu0 %v762
          %v900 = vpop.f32.mrf.mxu0
          %v901 = vadd.f32 %v726, %v900
          %v902 = vpop.f32.mrf.mxu0
          %903 = vmatprep.mubr.f32.mxu0 0.0
          %904 = vmatmul.mubr.f32.gmra.mxu0 %v765
          %v905 = vpop.f32.mrf.mxu0
          %v906 = vadd.f32 %v726, %v905
          %v907 = vpop.f32.mrf.mxu0
          %908 = vmatprep.mubr.f32.mxu0 0.0
          %909 = vmatmul.mubr.f32.gmra.mxu0 %v768
          %v910 = vpop.f32.mrf.mxu0
          %v911 = vadd.f32 %v726, %v910
          %v912 = vpop.f32.mrf.mxu0
          %913 = vmatprep.mubr.f32.mxu0 0.0
          %914 = vmatmul.mubr.f32.gmra.mxu0 %v771
          %v915 = vpop.f32.mrf.mxu0
          %v916 = vadd.f32 %v726, %v915
          %v917 = vpop.f32.mrf.mxu0
          %918 = vmatprep.mubr.f32.mxu0 0.0
          %919 = vmatmul.mubr.f32.gmra.mxu0 %v774
          %v920 = vpop.f32.mrf.mxu0
          %v921 = vadd.f32 %v726, %v920
          %v922 = vpop.f32.mrf.mxu0
          %923 = vdwg.mxu0
          %s924 = scalar_lea.vmem [#allocation2], %s660
          %925 = vst.msk [vmem:[%s924] sm:$0xff] %vm398, %v846
          %926 = vst.msk [vmem:[%s924 + $0x8] sm:$0xff] %vm398, %v851
          %927 = vst.msk [vmem:[%s924 + $0x10] sm:$0xff] %vm398, %v856
          %928 = vst.msk [vmem:[%s924 + $0x18] sm:$0xff] %vm398, %v861
          %929 = vst.msk [vmem:[%s924 + $0x20] sm:$0xff] %vm398, %v866
          %930 = vst.msk [vmem:[%s924 + $0x28] sm:$0xff] %vm398, %v871
          %931 = vst.msk [vmem:[%s924 + $0x30] sm:$0xff] %vm398, %v876
          %932 = vst.msk [vmem:[%s924 + $0x38] sm:$0xff] %vm398, %v881
          %933 = vst.msk [vmem:[%s924 + $0x40] sm:$0xff] %vm398, %v886
          %934 = vst.msk [vmem:[%s924 + $0x48] sm:$0xff] %vm398, %v891
          %935 = vst.msk [vmem:[%s924 + $0x50] sm:$0xff] %vm398, %v896
          %936 = vst.msk [vmem:[%s924 + $0x58] sm:$0xff] %vm398, %v901
          %937 = vst.msk [vmem:[%s924 + $0x60] sm:$0xff] %vm398, %v906
          %938 = vst.msk [vmem:[%s924 + $0x68] sm:$0xff] %vm398, %v911
          %939 = vst.msk [vmem:[%s924 + $0x70] sm:$0xff] %vm398, %v916
          %940 = vst.msk [vmem:[%s924 + $0x78] sm:$0xff] %vm398, %v921
          %s941 = scalar_lea.vmem %s4, 4
          %v942 = vld [vmem:[%s941] sm:$0xf]
          %s943 = scalar_lea.vmem %s5, 1
          %v944 = vld [vmem:[%s943] sm:$0x1]
          %v946 = vlaneseq
          %v947 = vshrl.u32 %v946, 7
          %v948 = vsub.s32 0, %v947
          %v949 = vrot.slane %v944, %v948
          %v952 = vsel %vm402, %v942, 0
          %954 = vmatprep.subr.mxu0 0.0
          %955 = vmatpush1.msra.mxu0 0.0
          %956 = vmatprep.subr.mxu0 0.0
          %957 = vmatpush1.msra.mxu0 0.0
          %958 = vmatprep.subr.mxu0 0.0
          %959 = vmatpush1.msra.mxu0 0.0
          %960 = vmatprep.subr.mxu0 0.0
          %961 = vmatpush1.msra.mxu0 0.0
          %962 = vmatprep.subr.mxu0 0.0
          %963 = vmatpush1.msra.mxu0 0.0
          %964 = vmatprep.subr.mxu0 0.0
          %965 = vmatpush1.msra.mxu0 0.0
          %966 = vmatprep.subr.mxu0 0.0
          %967 = vmatpush1.msra.mxu0 0.0
          %968 = vmatprep.subr.mxu0 0.0
          %969 = vmatpush1.msra.mxu0 0.0
          %970 = vmatprep.subr.mxu0 0.0
          %971 = vmatpush1.msra.mxu0 0.0
          %972 = vmatprep.subr.mxu0 0.0
          %973 = vmatpush1.msra.mxu0 0.0
          %974 = vmatprep.subr.mxu0 0.0
          %975 = vmatpush1.msra.mxu0 0.0
          %976 = vmatprep.subr.mxu0 0.0
          %977 = vmatpush1.msra.mxu0 0.0
          %978 = vmatprep.subr.mxu0 0.0
          %979 = vmatpush1.msra.mxu0 0.0
          %980 = vmatprep.subr.mxu0 0.0
          %981 = vmatpush1.msra.mxu0 0.0
          %982 = vmatprep.subr.mxu0 0.0
          %983 = vmatpush1.msra.mxu0 0.0
          %984 = vmatprep.subr.mxu0 0.0
          %985 = vmatpush1.msra.mxu0 %v952
          %986 = vmatprep.subr.mxu0 0.0
          %987 = vmatpush2.msra.mxu0 0.0
          %988 = vmatprep.subr.mxu0 0.0
          %989 = vmatpush2.msra.mxu0 0.0
          %990 = vmatprep.subr.mxu0 0.0
          %991 = vmatpush2.msra.mxu0 0.0
          %992 = vmatprep.subr.mxu0 0.0
          %993 = vmatpush2.msra.mxu0 0.0
          %994 = vmatprep.subr.mxu0 0.0
          %995 = vmatpush2.msra.mxu0 0.0
          %996 = vmatprep.subr.mxu0 0.0
          %997 = vmatpush2.msra.mxu0 0.0
          %998 = vmatprep.subr.mxu0 0.0
          %999 = vmatpush2.msra.mxu0 0.0
          %1000 = vmatprep.subr.mxu0 0.0
          %1001 = vmatpush2.msra.mxu0 0.0
          %1002 = vmatprep.subr.mxu0 0.0
          %1003 = vmatpush2.msra.mxu0 0.0
          %1004 = vmatprep.subr.mxu0 0.0
          %1005 = vmatpush2.msra.mxu0 0.0
          %1006 = vmatprep.subr.mxu0 0.0
          %1007 = vmatpush2.msra.mxu0 0.0
          %1008 = vmatprep.subr.mxu0 0.0
          %1009 = vmatpush2.msra.mxu0 0.0
          %1010 = vmatprep.subr.mxu0 0.0
          %1011 = vmatpush2.msra.mxu0 0.0
          %1012 = vmatprep.subr.mxu0 0.0
          %1013 = vmatpush2.msra.mxu0 0.0
          %1014 = vmatprep.subr.mxu0 0.0
          %1015 = vmatpush2.msra.mxu0 0.0
          %1016 = vmatprep.subr.mxu0 0.0
          %1017 = vmatpush2.msra.mxu0 0.0
          %1018 = vmatprep.mubr.f32.mxu0 0.0
          %1019 = vmatmul.mubr.f32.gmra.mxu0 %v729
          %v1020 = vpop.f32.mrf.mxu0
          %v1021 = vadd.f32 %v949, %v1020
          %v1022 = vpop.f32.mrf.mxu0
          %1023 = vmatprep.mubr.f32.mxu0 0.0
          %1024 = vmatmul.mubr.f32.gmra.mxu0 %v732
          %v1025 = vpop.f32.mrf.mxu0
          %v1026 = vadd.f32 %v949, %v1025
          %v1027 = vpop.f32.mrf.mxu0
          %1028 = vmatprep.mubr.f32.mxu0 0.0
          %1029 = vmatmul.mubr.f32.gmra.mxu0 %v735
          %v1030 = vpop.f32.mrf.mxu0
          %v1031 = vadd.f32 %v949, %v1030
          %v1032 = vpop.f32.mrf.mxu0
          %1033 = vmatprep.mubr.f32.mxu0 0.0
          %1034 = vmatmul.mubr.f32.gmra.mxu0 %v738
          %v1035 = vpop.f32.mrf.mxu0
          %v1036 = vadd.f32 %v949, %v1035
          %v1037 = vpop.f32.mrf.mxu0
          %1038 = vmatprep.mubr.f32.mxu0 0.0
          %1039 = vmatmul.mubr.f32.gmra.mxu0 %v741
          %v1040 = vpop.f32.mrf.mxu0
          %v1041 = vadd.f32 %v949, %v1040
          %v1042 = vpop.f32.mrf.mxu0
          %1043 = vmatprep.mubr.f32.mxu0 0.0
          %1044 = vmatmul.mubr.f32.gmra.mxu0 %v744
          %v1045 = vpop.f32.mrf.mxu0
          %v1046 = vadd.f32 %v949, %v1045
          %v1047 = vpop.f32.mrf.mxu0
          %1048 = vmatprep.mubr.f32.mxu0 0.0
          %1049 = vmatmul.mubr.f32.gmra.mxu0 %v747
          %v1050 = vpop.f32.mrf.mxu0
          %v1051 = vadd.f32 %v949, %v1050
          %v1052 = vpop.f32.mrf.mxu0
          %1053 = vmatprep.mubr.f32.mxu0 0.0
          %1054 = vmatmul.mubr.f32.gmra.mxu0 %v750
          %v1055 = vpop.f32.mrf.mxu0
          %v1056 = vadd.f32 %v949, %v1055
          %v1057 = vpop.f32.mrf.mxu0
          %1058 = vmatprep.mubr.f32.mxu0 0.0
          %1059 = vmatmul.mubr.f32.gmra.mxu0 %v753
          %v1060 = vpop.f32.mrf.mxu0
          %v1061 = vadd.f32 %v949, %v1060
          %v1062 = vpop.f32.mrf.mxu0
          %1063 = vmatprep.mubr.f32.mxu0 0.0
          %1064 = vmatmul.mubr.f32.gmra.mxu0 %v756
          %v1065 = vpop.f32.mrf.mxu0
          %v1066 = vadd.f32 %v949, %v1065
          %v1067 = vpop.f32.mrf.mxu0
          %1068 = vmatprep.mubr.f32.mxu0 0.0
          %1069 = vmatmul.mubr.f32.gmra.mxu0 %v759
          %v1070 = vpop.f32.mrf.mxu0
          %v1071 = vadd.f32 %v949, %v1070
          %v1072 = vpop.f32.mrf.mxu0
          %1073 = vmatprep.mubr.f32.mxu0 0.0
          %1074 = vmatmul.mubr.f32.gmra.mxu0 %v762
          %v1075 = vpop.f32.mrf.mxu0
          %v1076 = vadd.f32 %v949, %v1075
          %v1077 = vpop.f32.mrf.mxu0
          %1078 = vmatprep.mubr.f32.mxu0 0.0
          %1079 = vmatmul.mubr.f32.gmra.mxu0 %v765
          %v1080 = vpop.f32.mrf.mxu0
          %v1081 = vadd.f32 %v949, %v1080
          %v1082 = vpop.f32.mrf.mxu0
          %1083 = vmatprep.mubr.f32.mxu0 0.0
          %1084 = vmatmul.mubr.f32.gmra.mxu0 %v768
          %v1085 = vpop.f32.mrf.mxu0
          %v1086 = vadd.f32 %v949, %v1085
          %v1087 = vpop.f32.mrf.mxu0
          %1088 = vmatprep.mubr.f32.mxu0 0.0
          %1089 = vmatmul.mubr.f32.gmra.mxu0 %v771
          %v1090 = vpop.f32.mrf.mxu0
          %v1091 = vadd.f32 %v949, %v1090
          %v1092 = vpop.f32.mrf.mxu0
          %1093 = vmatprep.mubr.f32.mxu0 0.0
          %1094 = vmatmul.mubr.f32.gmra.mxu0 %v774
          %v1095 = vpop.f32.mrf.mxu0
          %v1096 = vadd.f32 %v949, %v1095
          %v1097 = vpop.f32.mrf.mxu0
          %1098 = vdwg.mxu0
          %s1099 = sadd.s32 %s660, 256
          %s1100 = scalar_lea.vmem [#allocation2], %s1099
          %1101 = vst.msk [vmem:[%s1100] sm:$0xff] %vm398, %v1021
          %1102 = vst.msk [vmem:[%s1100 + $0x8] sm:$0xff] %vm398, %v1026
          %1103 = vst.msk [vmem:[%s1100 + $0x10] sm:$0xff] %vm398, %v1031
          %1104 = vst.msk [vmem:[%s1100 + $0x18] sm:$0xff] %vm398, %v1036
          %1105 = vst.msk [vmem:[%s1100 + $0x20] sm:$0xff] %vm398, %v1041
          %1106 = vst.msk [vmem:[%s1100 + $0x28] sm:$0xff] %vm398, %v1046
          %1107 = vst.msk [vmem:[%s1100 + $0x30] sm:$0xff] %vm398, %v1051
          %1108 = vst.msk [vmem:[%s1100 + $0x38] sm:$0xff] %vm398, %v1056
          %1109 = vst.msk [vmem:[%s1100 + $0x40] sm:$0xff] %vm398, %v1061
          %1110 = vst.msk [vmem:[%s1100 + $0x48] sm:$0xff] %vm398, %v1066
          %1111 = vst.msk [vmem:[%s1100 + $0x50] sm:$0xff] %vm398, %v1071
          %1112 = vst.msk [vmem:[%s1100 + $0x58] sm:$0xff] %vm398, %v1076
          %1113 = vst.msk [vmem:[%s1100 + $0x60] sm:$0xff] %vm398, %v1081
          %1114 = vst.msk [vmem:[%s1100 + $0x68] sm:$0xff] %vm398, %v1086
          %1115 = vst.msk [vmem:[%s1100 + $0x70] sm:$0xff] %vm398, %v1091
          %1116 = vst.msk [vmem:[%s1100 + $0x78] sm:$0xff] %vm398, %v1096
          %s1117 = scalar_lea.vmem %s4, 8
          %v1118 = vld [vmem:[%s1117] sm:$0xf]
          %s1119 = scalar_lea.vmem %s5, 2
          %v1120 = vld [vmem:[%s1119] sm:$0x1]
          %v1122 = vlaneseq
          %v1123 = vshrl.u32 %v1122, 7
          %v1124 = vsub.s32 0, %v1123
          %v1125 = vrot.slane %v1120, %v1124
          %v1128 = vsel %vm402, %v1118, 0
          %1130 = vmatprep.subr.mxu0 0.0
          %1131 = vmatpush1.msra.mxu0 0.0
          %1132 = vmatprep.subr.mxu0 0.0
          %1133 = vmatpush1.msra.mxu0 0.0
          %1134 = vmatprep.subr.mxu0 0.0
          %1135 = vmatpush1.msra.mxu0 0.0
          %1136 = vmatprep.subr.mxu0 0.0
          %1137 = vmatpush1.msra.mxu0 0.0
          %1138 = vmatprep.subr.mxu0 0.0
          %1139 = vmatpush1.msra.mxu0 0.0
          %1140 = vmatprep.subr.mxu0 0.0
          %1141 = vmatpush1.msra.mxu0 0.0
          %1142 = vmatprep.subr.mxu0 0.0
          %1143 = vmatpush1.msra.mxu0 0.0
          %1144 = vmatprep.subr.mxu0 0.0
          %1145 = vmatpush1.msra.mxu0 0.0
          %1146 = vmatprep.subr.mxu0 0.0
          %1147 = vmatpush1.msra.mxu0 0.0
          %1148 = vmatprep.subr.mxu0 0.0
          %1149 = vmatpush1.msra.mxu0 0.0
          %1150 = vmatprep.subr.mxu0 0.0
          %1151 = vmatpush1.msra.mxu0 0.0
          %1152 = vmatprep.subr.mxu0 0.0
          %1153 = vmatpush1.msra.mxu0 0.0
          %1154 = vmatprep.subr.mxu0 0.0
          %1155 = vmatpush1.msra.mxu0 0.0
          %1156 = vmatprep.subr.mxu0 0.0
          %1157 = vmatpush1.msra.mxu0 0.0
          %1158 = vmatprep.subr.mxu0 0.0
          %1159 = vmatpush1.msra.mxu0 0.0
          %1160 = vmatprep.subr.mxu0 0.0
          %1161 = vmatpush1.msra.mxu0 %v1128
          %1162 = vmatprep.subr.mxu0 0.0
          %1163 = vmatpush2.msra.mxu0 0.0
          %1164 = vmatprep.subr.mxu0 0.0
          %1165 = vmatpush2.msra.mxu0 0.0
          %1166 = vmatprep.subr.mxu0 0.0
          %1167 = vmatpush2.msra.mxu0 0.0
          %1168 = vmatprep.subr.mxu0 0.0
          %1169 = vmatpush2.msra.mxu0 0.0
          %1170 = vmatprep.subr.mxu0 0.0
          %1171 = vmatpush2.msra.mxu0 0.0
          %1172 = vmatprep.subr.mxu0 0.0
          %1173 = vmatpush2.msra.mxu0 0.0
          %1174 = vmatprep.subr.mxu0 0.0
          %1175 = vmatpush2.msra.mxu0 0.0
          %1176 = vmatprep.subr.mxu0 0.0
          %1177 = vmatpush2.msra.mxu0 0.0
          %1178 = vmatprep.subr.mxu0 0.0
          %1179 = vmatpush2.msra.mxu0 0.0
          %1180 = vmatprep.subr.mxu0 0.0
          %1181 = vmatpush2.msra.mxu0 0.0
          %1182 = vmatprep.subr.mxu0 0.0
          %1183 = vmatpush2.msra.mxu0 0.0
          %1184 = vmatprep.subr.mxu0 0.0
          %1185 = vmatpush2.msra.mxu0 0.0
          %1186 = vmatprep.subr.mxu0 0.0
          %1187 = vmatpush2.msra.mxu0 0.0
          %1188 = vmatprep.subr.mxu0 0.0
          %1189 = vmatpush2.msra.mxu0 0.0
          %1190 = vmatprep.subr.mxu0 0.0
          %1191 = vmatpush2.msra.mxu0 0.0
          %1192 = vmatprep.subr.mxu0 0.0
          %1193 = vmatpush2.msra.mxu0 0.0
          %1194 = vmatprep.mubr.f32.mxu0 0.0
          %1195 = vmatmul.mubr.f32.gmra.mxu0 %v729
          %v1196 = vpop.f32.mrf.mxu0
          %v1197 = vadd.f32 %v1125, %v1196
          %v1198 = vpop.f32.mrf.mxu0
          %1199 = vmatprep.mubr.f32.mxu0 0.0
          %1200 = vmatmul.mubr.f32.gmra.mxu0 %v732
          %v1201 = vpop.f32.mrf.mxu0
          %v1202 = vadd.f32 %v1125, %v1201
          %v1203 = vpop.f32.mrf.mxu0
          %1204 = vmatprep.mubr.f32.mxu0 0.0
          %1205 = vmatmul.mubr.f32.gmra.mxu0 %v735
          %v1206 = vpop.f32.mrf.mxu0
          %v1207 = vadd.f32 %v1125, %v1206
          %v1208 = vpop.f32.mrf.mxu0
          %1209 = vmatprep.mubr.f32.mxu0 0.0
          %1210 = vmatmul.mubr.f32.gmra.mxu0 %v738
          %v1211 = vpop.f32.mrf.mxu0
          %v1212 = vadd.f32 %v1125, %v1211
          %v1213 = vpop.f32.mrf.mxu0
          %1214 = vmatprep.mubr.f32.mxu0 0.0
          %1215 = vmatmul.mubr.f32.gmra.mxu0 %v741
          %v1216 = vpop.f32.mrf.mxu0
          %v1217 = vadd.f32 %v1125, %v1216
          %v1218 = vpop.f32.mrf.mxu0
          %1219 = vmatprep.mubr.f32.mxu0 0.0
          %1220 = vmatmul.mubr.f32.gmra.mxu0 %v744
          %v1221 = vpop.f32.mrf.mxu0
          %v1222 = vadd.f32 %v1125, %v1221
          %v1223 = vpop.f32.mrf.mxu0
          %1224 = vmatprep.mubr.f32.mxu0 0.0
          %1225 = vmatmul.mubr.f32.gmra.mxu0 %v747
          %v1226 = vpop.f32.mrf.mxu0
          %v1227 = vadd.f32 %v1125, %v1226
          %v1228 = vpop.f32.mrf.mxu0
          %1229 = vmatprep.mubr.f32.mxu0 0.0
          %1230 = vmatmul.mubr.f32.gmra.mxu0 %v750
          %v1231 = vpop.f32.mrf.mxu0
          %v1232 = vadd.f32 %v1125, %v1231
          %v1233 = vpop.f32.mrf.mxu0
          %1234 = vmatprep.mubr.f32.mxu0 0.0
          %1235 = vmatmul.mubr.f32.gmra.mxu0 %v753
          %v1236 = vpop.f32.mrf.mxu0
          %v1237 = vadd.f32 %v1125, %v1236
          %v1238 = vpop.f32.mrf.mxu0
          %1239 = vmatprep.mubr.f32.mxu0 0.0
          %1240 = vmatmul.mubr.f32.gmra.mxu0 %v756
          %v1241 = vpop.f32.mrf.mxu0
          %v1242 = vadd.f32 %v1125, %v1241
          %v1243 = vpop.f32.mrf.mxu0
          %1244 = vmatprep.mubr.f32.mxu0 0.0
          %1245 = vmatmul.mubr.f32.gmra.mxu0 %v759
          %v1246 = vpop.f32.mrf.mxu0
          %v1247 = vadd.f32 %v1125, %v1246
          %v1248 = vpop.f32.mrf.mxu0
          %1249 = vmatprep.mubr.f32.mxu0 0.0
          %1250 = vmatmul.mubr.f32.gmra.mxu0 %v762
          %v1251 = vpop.f32.mrf.mxu0
          %v1252 = vadd.f32 %v1125, %v1251
          %v1253 = vpop.f32.mrf.mxu0
          %1254 = vmatprep.mubr.f32.mxu0 0.0
          %1255 = vmatmul.mubr.f32.gmra.mxu0 %v765
          %v1256 = vpop.f32.mrf.mxu0
          %v1257 = vadd.f32 %v1125, %v1256
          %v1258 = vpop.f32.mrf.mxu0
          %1259 = vmatprep.mubr.f32.mxu0 0.0
          %1260 = vmatmul.mubr.f32.gmra.mxu0 %v768
          %v1261 = vpop.f32.mrf.mxu0
          %v1262 = vadd.f32 %v1125, %v1261
          %v1263 = vpop.f32.mrf.mxu0
          %1264 = vmatprep.mubr.f32.mxu0 0.0
          %1265 = vmatmul.mubr.f32.gmra.mxu0 %v771
          %v1266 = vpop.f32.mrf.mxu0
          %v1267 = vadd.f32 %v1125, %v1266
          %v1268 = vpop.f32.mrf.mxu0
          %1269 = vmatprep.mubr.f32.mxu0 0.0
          %1270 = vmatmul.mubr.f32.gmra.mxu0 %v774
          %v1271 = vpop.f32.mrf.mxu0
          %v1272 = vadd.f32 %v1125, %v1271
          %v1273 = vpop.f32.mrf.mxu0
          %1274 = vdwg.mxu0
          %s1275 = sadd.s32 %s660, 512
          %s1276 = scalar_lea.vmem [#allocation2], %s1275
          %1277 = vst.msk [vmem:[%s1276] sm:$0xff] %vm398, %v1197
          %1278 = vst.msk [vmem:[%s1276 + $0x8] sm:$0xff] %vm398, %v1202
          %1279 = vst.msk [vmem:[%s1276 + $0x10] sm:$0xff] %vm398, %v1207
          %1280 = vst.msk [vmem:[%s1276 + $0x18] sm:$0xff] %vm398, %v1212
          %1281 = vst.msk [vmem:[%s1276 + $0x20] sm:$0xff] %vm398, %v1217
          %1282 = vst.msk [vmem:[%s1276 + $0x28] sm:$0xff] %vm398, %v1222
          %1283 = vst.msk [vmem:[%s1276 + $0x30] sm:$0xff] %vm398, %v1227
          %1284 = vst.msk [vmem:[%s1276 + $0x38] sm:$0xff] %vm398, %v1232
          %1285 = vst.msk [vmem:[%s1276 + $0x40] sm:$0xff] %vm398, %v1237
          %1286 = vst.msk [vmem:[%s1276 + $0x48] sm:$0xff] %vm398, %v1242
          %1287 = vst.msk [vmem:[%s1276 + $0x50] sm:$0xff] %vm398, %v1247
          %1288 = vst.msk [vmem:[%s1276 + $0x58] sm:$0xff] %vm398, %v1252
          %1289 = vst.msk [vmem:[%s1276 + $0x60] sm:$0xff] %vm398, %v1257
          %1290 = vst.msk [vmem:[%s1276 + $0x68] sm:$0xff] %vm398, %v1262
          %1291 = vst.msk [vmem:[%s1276 + $0x70] sm:$0xff] %vm398, %v1267
          %1292 = vst.msk [vmem:[%s1276 + $0x78] sm:$0xff] %vm398, %v1272
        $region75: #{tpu_custom_call.1} parent=55 // loop_footer
          %s659 = sadd.s32 1, %s655
        $region76: #{tpu_custom_call.1} parent=55 // loop_footer_branch
          %654 = sbr.rel target = $region72
        $region77: #{tpu_custom_call.1} parent=55 // loop_exit
          _
        %s1293 = scalar_lea.vmem [#allocation2], 256
        %v1294 = vld [vmem:[%s1293] sm:$0xff]
        %v1295 = vld [vmem:[%s1293 + $0x8] sm:$0xff]
        %v1296 = vld [vmem:[%s1293 + $0x10] sm:$0xff]
        %v1297 = vld [vmem:[%s1293 + $0x18] sm:$0xff]
        %v1298 = vld [vmem:[%s1293 + $0x20] sm:$0xff]
        %v1299 = vld [vmem:[%s1293 + $0x28] sm:$0xff]
        %v1300 = vld [vmem:[%s1293 + $0x30] sm:$0xff]
        %v1301 = vld [vmem:[%s1293 + $0x38] sm:$0xff]
        %v1302 = vld [vmem:[%s1293 + $0x40] sm:$0xff]
        %v1303 = vld [vmem:[%s1293 + $0x48] sm:$0xff]
        %v1304 = vld [vmem:[%s1293 + $0x50] sm:$0xff]
        %v1305 = vld [vmem:[%s1293 + $0x58] sm:$0xff]
        %v1306 = vld [vmem:[%s1293 + $0x60] sm:$0xff]
        %v1307 = vld [vmem:[%s1293 + $0x68] sm:$0xff]
        %v1308 = vld [vmem:[%s1293 + $0x70] sm:$0xff]
        %v1309 = vld [vmem:[%s1293 + $0x78] sm:$0xff]
        %v1310 = vld [vmem:[%s1293 + $0x80] sm:$0xff]
        %v1311 = vld [vmem:[%s1293 + $0x88] sm:$0xff]
        %v1312 = vld [vmem:[%s1293 + $0x90] sm:$0xff]
        %v1313 = vld [vmem:[%s1293 + $0x98] sm:$0xff]
        %v1314 = vld [vmem:[%s1293 + $0xa0] sm:$0xff]
        %v1315 = vld [vmem:[%s1293 + $0xa8] sm:$0xff]
        %v1316 = vld [vmem:[%s1293 + $0xb0] sm:$0xff]
        %v1317 = vld [vmem:[%s1293 + $0xb8] sm:$0xff]
        %v1318 = vld [vmem:[%s1293 + $0xc0] sm:$0xff]
        %v1319 = vld [vmem:[%s1293 + $0xc8] sm:$0xff]
        %v1320 = vld [vmem:[%s1293 + $0xd0] sm:$0xff]
        %v1321 = vld [vmem:[%s1293 + $0xd8] sm:$0xff]
        %v1322 = vld [vmem:[%s1293 + $0xe0] sm:$0xff]
        %v1323 = vld [vmem:[%s1293 + $0xe8] sm:$0xff]
        %v1324 = vld [vmem:[%s1293 + $0xf0] sm:$0xff]
        %v1325 = vld [vmem:[%s1293 + $0xf8] sm:$0xff]
        %1326 = vxpose.xlu0.b32.start [1/16] %v1294, 128
        %1327 = vxpose.xlu0.b32.cont [2/16] %v1295, 128
        %1328 = vxpose.xlu0.b32.cont [3/16] %v1296, 128
        %1329 = vxpose.xlu0.b32.cont [4/16] %v1297, 128
        %1330 = vxpose.xlu0.b32.cont [5/16] %v1298, 128
        %1331 = vxpose.xlu0.b32.cont [6/16] %v1299, 128
        %1332 = vxpose.xlu0.b32.cont [7/16] %v1300, 128
        %1333 = vxpose.xlu0.b32.cont [8/16] %v1301, 128
        %1334 = vxpose.xlu0.b32.cont [9/16] %v1302, 128
        %1335 = vxpose.xlu0.b32.cont [10/16] %v1303, 128
        %1336 = vxpose.xlu0.b32.cont [11/16] %v1304, 128
        %1337 = vxpose.xlu0.b32.cont [12/16] %v1305, 128
        %1338 = vxpose.xlu0.b32.cont [13/16] %v1306, 128
        %1339 = vxpose.xlu0.b32.cont [14/16] %v1307, 128
        %1340 = vxpose.xlu0.b32.cont [15/16] %v1308, 128
        %1341 = vxpose.xlu0.b32.end [16/16] %v1309, 128
        %v1342 = vpop.trf.xlu0
        %v1343 = vpop.trf.xlu0
        %v1344 = vpop.trf.xlu0
        %v1345 = vpop.trf.xlu0
        %v1346 = vpop.trf.xlu0
        %v1347 = vpop.trf.xlu0
        %v1348 = vpop.trf.xlu0
        %v1349 = vpop.trf.xlu0
        %v1350 = vpop.trf.xlu0
        %v1351 = vpop.trf.xlu0
        %v1352 = vpop.trf.xlu0
        %v1353 = vpop.trf.xlu0
        %v1354 = vpop.trf.xlu0
        %v1355 = vpop.trf.xlu0
        %v1356 = vpop.trf.xlu0
        %v1357 = vpop.trf.xlu0
        %1358 = vxpose.xlu0.b32.start [1/16] %v1310, 128
        %1359 = vxpose.xlu0.b32.cont [2/16] %v1311, 128
        %1360 = vxpose.xlu0.b32.cont [3/16] %v1312, 128
        %1361 = vxpose.xlu0.b32.cont [4/16] %v1313, 128
        %1362 = vxpose.xlu0.b32.cont [5/16] %v1314, 128
        %1363 = vxpose.xlu0.b32.cont [6/16] %v1315, 128
        %1364 = vxpose.xlu0.b32.cont [7/16] %v1316, 128
        %1365 = vxpose.xlu0.b32.cont [8/16] %v1317, 128
        %1366 = vxpose.xlu0.b32.cont [9/16] %v1318, 128
        %1367 = vxpose.xlu0.b32.cont [10/16] %v1319, 128
        %1368 = vxpose.xlu0.b32.cont [11/16] %v1320, 128
        %1369 = vxpose.xlu0.b32.cont [12/16] %v1321, 128
        %1370 = vxpose.xlu0.b32.cont [13/16] %v1322, 128
        %1371 = vxpose.xlu0.b32.cont [14/16] %v1323, 128
        %1372 = vxpose.xlu0.b32.cont [15/16] %v1324, 128
        %1373 = vxpose.xlu0.b32.end [16/16] %v1325, 128
        %v1374 = vpop.trf.xlu0
        %v1375 = vpop.trf.xlu0
        %v1376 = vpop.trf.xlu0
        %v1377 = vpop.trf.xlu0
        %v1378 = vpop.trf.xlu0
        %v1379 = vpop.trf.xlu0
        %v1380 = vpop.trf.xlu0
        %v1381 = vpop.trf.xlu0
        %v1382 = vpop.trf.xlu0
        %v1383 = vpop.trf.xlu0
        %v1384 = vpop.trf.xlu0
        %v1385 = vpop.trf.xlu0
        %v1386 = vpop.trf.xlu0
        %v1387 = vpop.trf.xlu0
        %v1388 = vpop.trf.xlu0
        %v1389 = vpop.trf.xlu0
        %v1392 = vcombine.low %v1342, %v1374
        %1394 = vst [vmem:[#allocation3] sm:$0xff] %v1392
      $region56: #{tpu_custom_call.1} parent=51 // pred_fallthru
        _
      %s1395 = smul.u32 %s24, 128
      %s1396 = scalar_lea.vmem %s318, %s1395
      %v1397 = vld [vmem:[%s1396] sm:$0xff]
      %v1398 = vld [vmem:[%s1396 + $0x8] sm:$0xff]
      %v1399 = vld [vmem:[%s1396 + $0x10] sm:$0xff]
      %v1400 = vld [vmem:[%s1396 + $0x18] sm:$0xff]
      %v1401 = vld [vmem:[%s1396 + $0x20] sm:$0xff]
      %v1402 = vld [vmem:[%s1396 + $0x28] sm:$0xff]
      %v1403 = vld [vmem:[%s1396 + $0x30] sm:$0xff]
      %v1404 = vld [vmem:[%s1396 + $0x38] sm:$0xff]
      %v1405 = vld [vmem:[%s1396 + $0x40] sm:$0xff]
      %v1406 = vld [vmem:[%s1396 + $0x48] sm:$0xff]
      %v1407 = vld [vmem:[%s1396 + $0x50] sm:$0xff]
      %v1408 = vld [vmem:[%s1396 + $0x58] sm:$0xff]
      %v1409 = vld [vmem:[%s1396 + $0x60] sm:$0xff]
      %v1410 = vld [vmem:[%s1396 + $0x68] sm:$0xff]
      %v1411 = vld [vmem:[%s1396 + $0x70] sm:$0xff]
      %v1412 = vld [vmem:[%s1396 + $0x78] sm:$0xff]
      %v1413 = vld [vmem:[%s7] sm:$0x1]
      %v1415 = vlaneseq
      %v1416 = vshrl.u32 %v1415, 7
      %v1417 = vsub.s32 0, %v1416
      %v1418 = vrot.slane %v1413, %v1417
      %v1420 = vadd.f32 %v1397, %v1418
      %v1421 = vadd.f32 %v1398, %v1418
      %v1422 = vadd.f32 %v1399, %v1418
      %v1423 = vadd.f32 %v1400, %v1418
      %v1424 = vadd.f32 %v1401, %v1418
      %v1425 = vadd.f32 %v1402, %v1418
      %v1426 = vadd.f32 %v1403, %v1418
      %v1427 = vadd.f32 %v1404, %v1418
      %v1428 = vadd.f32 %v1405, %v1418
      %v1429 = vadd.f32 %v1406, %v1418
      %v1430 = vadd.f32 %v1407, %v1418
      %v1431 = vadd.f32 %v1408, %v1418
      %v1432 = vadd.f32 %v1409, %v1418
      %v1433 = vadd.f32 %v1410, %v1418
      %v1434 = vadd.f32 %v1411, %v1418
      %v1435 = vadd.f32 %v1412, %v1418
      %s1436 = scalar_lea.vmem [#allocation2], %s1395
      %v1437 = vld [vmem:[%s1436] sm:$0xff]
      %v1438 = vld [vmem:[%s1436 + $0x8] sm:$0xff]
      %v1439 = vld [vmem:[%s1436 + $0x10] sm:$0xff]
      %v1440 = vld [vmem:[%s1436 + $0x18] sm:$0xff]
      %v1441 = vld [vmem:[%s1436 + $0x20] sm:$0xff]
      %v1442 = vld [vmem:[%s1436 + $0x28] sm:$0xff]
      %v1443 = vld [vmem:[%s1436 + $0x30] sm:$0xff]
      %v1444 = vld [vmem:[%s1436 + $0x38] sm:$0xff]
      %v1445 = vld [vmem:[%s1436 + $0x40] sm:$0xff]
      %v1446 = vld [vmem:[%s1436 + $0x48] sm:$0xff]
      %v1447 = vld [vmem:[%s1436 + $0x50] sm:$0xff]
      %v1448 = vld [vmem:[%s1436 + $0x58] sm:$0xff]
      %v1449 = vld [vmem:[%s1436 + $0x60] sm:$0xff]
      %v1450 = vld [vmem:[%s1436 + $0x68] sm:$0xff]
      %v1451 = vld [vmem:[%s1436 + $0x70] sm:$0xff]
      %v1452 = vld [vmem:[%s1436 + $0x78] sm:$0xff]
      %v1453 = vld [vmem:[#allocation3] sm:$0xff]
      %v1455 = vcombine.high %v1453, %v1453
      %vm1456 = vcmask 31744
      %v1458 = vsel %vm1456, %v1437, 0
      %v1461 = vsel %vm1456, %v1438, 0
      %v1464 = vsel %vm1456, %v1439, 0
      %v1467 = vsel %vm1456, %v1440, 0
      %v1470 = vsel %vm1456, %v1441, 0
      %v1473 = vsel %vm1456, %v1442, 0
      %v1476 = vsel %vm1456, %v1443, 0
      %v1479 = vsel %vm1456, %v1444, 0
      %v1482 = vsel %vm1456, %v1445, 0
      %v1485 = vsel %vm1456, %v1446, 0
      %v1488 = vsel %vm1456, %v1447, 0
      %v1491 = vsel %vm1456, %v1448, 0
      %v1494 = vsel %vm1456, %v1449, 0
      %v1497 = vsel %vm1456, %v1450, 0
      %v1500 = vsel %vm1456, %v1451, 0
      %v1503 = vsel %vm1456, %v1452, 0
      %vm1505 = vcmask 1043456
      %v1506 = vsel %vm1505, %v1453, 0
      %v1508 = vsel %vm1505, %v1455, 0
      %1510 = vmatprep.subr.mxu0 0.0
      %1511 = vmatpush1.msra.mxu0 0.0
      %1512 = vmatprep.subr.mxu0 0.0
      %1513 = vmatpush1.msra.mxu0 0.0
      %1514 = vmatprep.subr.mxu0 0.0
      %1515 = vmatpush1.msra.mxu0 0.0
      %1516 = vmatprep.subr.mxu0 0.0
      %1517 = vmatpush1.msra.mxu0 0.0
      %1518 = vmatprep.subr.mxu0 0.0
      %1519 = vmatpush1.msra.mxu0 0.0
      %1520 = vmatprep.subr.mxu0 0.0
      %1521 = vmatpush1.msra.mxu0 0.0
      %1522 = vmatprep.subr.mxu0 0.0
      %1523 = vmatpush1.msra.mxu0 0.0
      %1524 = vmatprep.subr.mxu0 0.0
      %1525 = vmatpush1.msra.mxu0 0.0
      %1526 = vmatprep.subr.mxu0 0.0
      %1527 = vmatpush1.msra.mxu0 0.0
      %1528 = vmatprep.subr.mxu0 0.0
      %1529 = vmatpush1.msra.mxu0 0.0
      %1530 = vmatprep.subr.mxu0 0.0
      %1531 = vmatpush1.msra.mxu0 0.0
      %1532 = vmatprep.subr.mxu0 0.0
      %1533 = vmatpush1.msra.mxu0 0.0
      %1534 = vmatprep.subr.mxu0 0.0
      %1535 = vmatpush1.msra.mxu0 0.0
      %1536 = vmatprep.subr.mxu0 0.0
      %1537 = vmatpush1.msra.mxu0 0.0
      %1538 = vmatprep.subr.mxu0 0.0
      %1539 = vmatpush1.msra.mxu0 0.0
      %1540 = vmatprep.subr.mxu0 %v1508
      %1541 = vmatpush1.msra.mxu0 %v1506
      %1542 = vmatprep.subr.mxu0 0.0
      %1543 = vmatpush2.msra.mxu0 0.0
      %1544 = vmatprep.subr.mxu0 0.0
      %1545 = vmatpush2.msra.mxu0 0.0
      %1546 = vmatprep.subr.mxu0 0.0
      %1547 = vmatpush2.msra.mxu0 0.0
      %1548 = vmatprep.subr.mxu0 0.0
      %1549 = vmatpush2.msra.mxu0 0.0
      %1550 = vmatprep.subr.mxu0 0.0
      %1551 = vmatpush2.msra.mxu0 0.0
      %1552 = vmatprep.subr.mxu0 0.0
      %1553 = vmatpush2.msra.mxu0 0.0
      %1554 = vmatprep.subr.mxu0 0.0
      %1555 = vmatpush2.msra.mxu0 0.0
      %1556 = vmatprep.subr.mxu0 0.0
      %1557 = vmatpush2.msra.mxu0 0.0
      %1558 = vmatprep.subr.mxu0 0.0
      %1559 = vmatpush2.msra.mxu0 0.0
      %1560 = vmatprep.subr.mxu0 0.0
      %1561 = vmatpush2.msra.mxu0 0.0
      %1562 = vmatprep.subr.mxu0 0.0
      %1563 = vmatpush2.msra.mxu0 0.0
      %1564 = vmatprep.subr.mxu0 0.0
      %1565 = vmatpush2.msra.mxu0 0.0
      %1566 = vmatprep.subr.mxu0 0.0
      %1567 = vmatpush2.msra.mxu0 0.0
      %1568 = vmatprep.subr.mxu0 0.0
      %1569 = vmatpush2.msra.mxu0 0.0
      %1570 = vmatprep.subr.mxu0 0.0
      %1571 = vmatpush2.msra.mxu0 0.0
      %1572 = vmatprep.subr.mxu0 0.0
      %1573 = vmatpush2.msra.mxu0 0.0
      %1574 = vmatprep.mubr.f32.mxu0 0.0
      %1575 = vmatmul.mubr.f32.gmra.mxu0 %v1458
      %v1576 = vpop.f32.mrf.mxu0
      %v1577 = vadd.f32 0.0, %v1576
      %v1578 = vpop.f32.mrf.mxu0
      %v1579 = vadd.f32 0.0, %v1578
      %1580 = vmatprep.mubr.f32.mxu0 0.0
      %1581 = vmatmul.mubr.f32.gmra.mxu0 %v1461
      %v1582 = vpop.f32.mrf.mxu0
      %v1583 = vadd.f32 0.0, %v1582
      %v1584 = vpop.f32.mrf.mxu0
      %v1585 = vadd.f32 0.0, %v1584
      %1586 = vmatprep.mubr.f32.mxu0 0.0
      %1587 = vmatmul.mubr.f32.gmra.mxu0 %v1464
      %v1588 = vpop.f32.mrf.mxu0
      %v1589 = vadd.f32 0.0, %v1588
      %v1590 = vpop.f32.mrf.mxu0
      %v1591 = vadd.f32 0.0, %v1590
      %1592 = vmatprep.mubr.f32.mxu0 0.0
      %1593 = vmatmul.mubr.f32.gmra.mxu0 %v1467
      %v1594 = vpop.f32.mrf.mxu0
      %v1595 = vadd.f32 0.0, %v1594
      %v1596 = vpop.f32.mrf.mxu0
      %v1597 = vadd.f32 0.0, %v1596
      %1598 = vmatprep.mubr.f32.mxu0 0.0
      %1599 = vmatmul.mubr.f32.gmra.mxu0 %v1470
      %v1600 = vpop.f32.mrf.mxu0
      %v1601 = vadd.f32 0.0, %v1600
      %v1602 = vpop.f32.mrf.mxu0
      %v1603 = vadd.f32 0.0, %v1602
      %1604 = vmatprep.mubr.f32.mxu0 0.0
      %1605 = vmatmul.mubr.f32.gmra.mxu0 %v1473
      %v1606 = vpop.f32.mrf.mxu0
      %v1607 = vadd.f32 0.0, %v1606
      %v1608 = vpop.f32.mrf.mxu0
      %v1609 = vadd.f32 0.0, %v1608
      %1610 = vmatprep.mubr.f32.mxu0 0.0
      %1611 = vmatmul.mubr.f32.gmra.mxu0 %v1476
      %v1612 = vpop.f32.mrf.mxu0
      %v1613 = vadd.f32 0.0, %v1612
      %v1614 = vpop.f32.mrf.mxu0
      %v1615 = vadd.f32 0.0, %v1614
      %1616 = vmatprep.mubr.f32.mxu0 0.0
      %1617 = vmatmul.mubr.f32.gmra.mxu0 %v1479
      %v1618 = vpop.f32.mrf.mxu0
      %v1619 = vadd.f32 0.0, %v1618
      %v1620 = vpop.f32.mrf.mxu0
      %v1621 = vadd.f32 0.0, %v1620
      %1622 = vmatprep.mubr.f32.mxu0 0.0
      %1623 = vmatmul.mubr.f32.gmra.mxu0 %v1482
      %v1624 = vpop.f32.mrf.mxu0
      %v1625 = vadd.f32 0.0, %v1624
      %v1626 = vpop.f32.mrf.mxu0
      %v1627 = vadd.f32 0.0, %v1626
      %1628 = vmatprep.mubr.f32.mxu0 0.0
      %1629 = vmatmul.mubr.f32.gmra.mxu0 %v1485
      %v1630 = vpop.f32.mrf.mxu0
      %v1631 = vadd.f32 0.0, %v1630
      %v1632 = vpop.f32.mrf.mxu0
      %v1633 = vadd.f32 0.0, %v1632
      %1634 = vmatprep.mubr.f32.mxu0 0.0
      %1635 = vmatmul.mubr.f32.gmra.mxu0 %v1488
      %v1636 = vpop.f32.mrf.mxu0
      %v1637 = vadd.f32 0.0, %v1636
      %v1638 = vpop.f32.mrf.mxu0
      %v1639 = vadd.f32 0.0, %v1638
      %1640 = vmatprep.mubr.f32.mxu0 0.0
      %1641 = vmatmul.mubr.f32.gmra.mxu0 %v1491
      %v1642 = vpop.f32.mrf.mxu0
      %v1643 = vadd.f32 0.0, %v1642
      %v1644 = vpop.f32.mrf.mxu0
      %v1645 = vadd.f32 0.0, %v1644
      %1646 = vmatprep.mubr.f32.mxu0 0.0
      %1647 = vmatmul.mubr.f32.gmra.mxu0 %v1494
      %v1648 = vpop.f32.mrf.mxu0
      %v1649 = vadd.f32 0.0, %v1648
      %v1650 = vpop.f32.mrf.mxu0
      %v1651 = vadd.f32 0.0, %v1650
      %1652 = vmatprep.mubr.f32.mxu0 0.0
      %1653 = vmatmul.mubr.f32.gmra.mxu0 %v1497
      %v1654 = vpop.f32.mrf.mxu0
      %v1655 = vadd.f32 0.0, %v1654
      %v1656 = vpop.f32.mrf.mxu0
      %v1657 = vadd.f32 0.0, %v1656
      %1658 = vmatprep.mubr.f32.mxu0 0.0
      %1659 = vmatmul.mubr.f32.gmra.mxu0 %v1500
      %v1660 = vpop.f32.mrf.mxu0
      %v1661 = vadd.f32 0.0, %v1660
      %v1662 = vpop.f32.mrf.mxu0
      %v1663 = vadd.f32 0.0, %v1662
      %1664 = vmatprep.mubr.f32.mxu0 0.0
      %1665 = vmatmul.mubr.f32.gmra.mxu0 %v1503
      %v1666 = vpop.f32.mrf.mxu0
      %v1667 = vadd.f32 0.0, %v1666
      %v1668 = vpop.f32.mrf.mxu0
      %v1669 = vadd.f32 0.0, %v1668
      %1670 = vdwg.mxu0
      %v1671 = vmax.f32 %v1577, %v1579
      %1672 = vmax.xlane.f32.xlu0 %v1671
      %v1673 = vpop.xlane.xlu0 %1672
      %v1674 = vmax.f32 %v1583, %v1585
      %1675 = vmax.xlane.f32.xlu0 %v1674
      %v1676 = vpop.xlane.xlu0 %1675
      %v1677 = vmax.f32 %v1589, %v1591
      %1678 = vmax.xlane.f32.xlu0 %v1677
      %v1679 = vpop.xlane.xlu0 %1678
      %v1680 = vmax.f32 %v1595, %v1597
      %1681 = vmax.xlane.f32.xlu0 %v1680
      %v1682 = vpop.xlane.xlu0 %1681
      %v1683 = vmax.f32 %v1601, %v1603
      %1684 = vmax.xlane.f32.xlu0 %v1683
      %v1685 = vpop.xlane.xlu0 %1684
      %v1686 = vmax.f32 %v1607, %v1609
      %1687 = vmax.xlane.f32.xlu0 %v1686
      %v1688 = vpop.xlane.xlu0 %1687
      %v1689 = vmax.f32 %v1613, %v1615
      %1690 = vmax.xlane.f32.xlu0 %v1689
      %v1691 = vpop.xlane.xlu0 %1690
      %v1692 = vmax.f32 %v1619, %v1621
      %1693 = vmax.xlane.f32.xlu0 %v1692
      %v1694 = vpop.xlane.xlu0 %1693
      %v1695 = vmax.f32 %v1625, %v1627
      %1696 = vmax.xlane.f32.xlu0 %v1695
      %v1697 = vpop.xlane.xlu0 %1696
      %v1698 = vmax.f32 %v1631, %v1633
      %1699 = vmax.xlane.f32.xlu0 %v1698
      %v1700 = vpop.xlane.xlu0 %1699
      %v1701 = vmax.f32 %v1637, %v1639
      %1702 = vmax.xlane.f32.xlu0 %v1701
      %v1703 = vpop.xlane.xlu0 %1702
      %v1704 = vmax.f32 %v1643, %v1645
      %1705 = vmax.xlane.f32.xlu0 %v1704
      %v1706 = vpop.xlane.xlu0 %1705
      %v1707 = vmax.f32 %v1649, %v1651
      %1708 = vmax.xlane.f32.xlu0 %v1707
      %v1709 = vpop.xlane.xlu0 %1708
      %v1710 = vmax.f32 %v1655, %v1657
      %1711 = vmax.xlane.f32.xlu0 %v1710
      %v1712 = vpop.xlane.xlu0 %1711
      %v1713 = vmax.f32 %v1661, %v1663
      %1714 = vmax.xlane.f32.xlu0 %v1713
      %v1715 = vpop.xlane.xlu0 %1714
      %v1716 = vmax.f32 %v1667, %v1669
      %1717 = vmax.xlane.f32.xlu0 %v1716
      %v1718 = vpop.xlane.xlu0 %1717
      %v1719 = vsub.f32 %v1577, %v1673
      %v1720 = vsub.f32 %v1579, %v1673
      %v1721 = vsub.f32 %v1583, %v1676
      %v1722 = vsub.f32 %v1585, %v1676
      %v1723 = vsub.f32 %v1589, %v1679
      %v1724 = vsub.f32 %v1591, %v1679
      %v1725 = vsub.f32 %v1595, %v1682
      %v1726 = vsub.f32 %v1597, %v1682
      %v1727 = vsub.f32 %v1601, %v1685
      %v1728 = vsub.f32 %v1603, %v1685
      %v1729 = vsub.f32 %v1607, %v1688
      %v1730 = vsub.f32 %v1609, %v1688
      %v1731 = vsub.f32 %v1613, %v1691
      %v1732 = vsub.f32 %v1615, %v1691
      %v1733 = vsub.f32 %v1619, %v1694
      %v1734 = vsub.f32 %v1621, %v1694
      %v1735 = vsub.f32 %v1625, %v1697
      %v1736 = vsub.f32 %v1627, %v1697
      %v1737 = vsub.f32 %v1631, %v1700
      %v1738 = vsub.f32 %v1633, %v1700
      %v1739 = vsub.f32 %v1637, %v1703
      %v1740 = vsub.f32 %v1639, %v1703
      %v1741 = vsub.f32 %v1643, %v1706
      %v1742 = vsub.f32 %v1645, %v1706
      %v1743 = vsub.f32 %v1649, %v1709
      %v1744 = vsub.f32 %v1651, %v1709
      %v1745 = vsub.f32 %v1655, %v1712
      %v1746 = vsub.f32 %v1657, %v1712
      %v1747 = vsub.f32 %v1661, %v1715
      %v1748 = vsub.f32 %v1663, %v1715
      %v1749 = vsub.f32 %v1667, %v1718
      %v1750 = vsub.f32 %v1669, %v1718
      %v1751 = vmul.f32 %v1719, 1.442695
      %v1752 = vpow.pop %v1751
      %v1753 = vmul.f32 %v1720, 1.442695
      %v1754 = vpow.pop %v1753
      %v1755 = vmul.f32 %v1721, 1.442695
      %v1756 = vpow.pop %v1755
      %v1757 = vmul.f32 %v1722, 1.442695
      %v1758 = vpow.pop %v1757
      %v1759 = vmul.f32 %v1723, 1.442695
      %v1760 = vpow.pop %v1759
      %v1761 = vmul.f32 %v1724, 1.442695
      %v1762 = vpow.pop %v1761
      %v1763 = vmul.f32 %v1725, 1.442695
      %v1764 = vpow.pop %v1763
      %v1765 = vmul.f32 %v1726, 1.442695
      %v1766 = vpow.pop %v1765
      %v1767 = vmul.f32 %v1727, 1.442695
      %v1768 = vpow.pop %v1767
      %v1769 = vmul.f32 %v1728, 1.442695
      %v1770 = vpow.pop %v1769
      %v1771 = vmul.f32 %v1729, 1.442695
      %v1772 = vpow.pop %v1771
      %v1773 = vmul.f32 %v1730, 1.442695
      %v1774 = vpow.pop %v1773
      %v1775 = vmul.f32 %v1731, 1.442695
      %v1776 = vpow.pop %v1775
      %v1777 = vmul.f32 %v1732, 1.442695
      %v1778 = vpow.pop %v1777
      %v1779 = vmul.f32 %v1733, 1.442695
      %v1780 = vpow.pop %v1779
      %v1781 = vmul.f32 %v1734, 1.442695
      %v1782 = vpow.pop %v1781
      %v1783 = vmul.f32 %v1735, 1.442695
      %v1784 = vpow.pop %v1783
      %v1785 = vmul.f32 %v1736, 1.442695
      %v1786 = vpow.pop %v1785
      %v1787 = vmul.f32 %v1737, 1.442695
      %v1788 = vpow.pop %v1787
      %v1789 = vmul.f32 %v1738, 1.442695
      %v1790 = vpow.pop %v1789
      %v1791 = vmul.f32 %v1739, 1.442695
      %v1792 = vpow.pop %v1791
      %v1793 = vmul.f32 %v1740, 1.442695
      %v1794 = vpow.pop %v1793
      %v1795 = vmul.f32 %v1741, 1.442695
      %v1796 = vpow.pop %v1795
      %v1797 = vmul.f32 %v1742, 1.442695
      %v1798 = vpow.pop %v1797
      %v1799 = vmul.f32 %v1743, 1.442695
      %v1800 = vpow.pop %v1799
      %v1801 = vmul.f32 %v1744, 1.442695
      %v1802 = vpow.pop %v1801
      %v1803 = vmul.f32 %v1745, 1.442695
      %v1804 = vpow.pop %v1803
      %v1805 = vmul.f32 %v1746, 1.442695
      %v1806 = vpow.pop %v1805
      %v1807 = vmul.f32 %v1747, 1.442695
      %v1808 = vpow.pop %v1807
      %v1809 = vmul.f32 %v1748, 1.442695
      %v1810 = vpow.pop %v1809
      %v1811 = vmul.f32 %v1749, 1.442695
      %v1812 = vpow.pop %v1811
      %v1813 = vmul.f32 %v1750, 1.442695
      %v1814 = vpow.pop %v1813
      %v1815 = vadd.f32 %v1752, %v1754
      %1816 = vadd.xlane.f32.xlu0 %v1815
      %v1817 = vpop.xlane.xlu0 %1816
      %v1818 = vadd.f32 %v1756, %v1758
      %1819 = vadd.xlane.f32.xlu0 %v1818
      %v1820 = vpop.xlane.xlu0 %1819
      %v1821 = vadd.f32 %v1760, %v1762
      %1822 = vadd.xlane.f32.xlu0 %v1821
      %v1823 = vpop.xlane.xlu0 %1822
      %v1824 = vadd.f32 %v1764, %v1766
      %1825 = vadd.xlane.f32.xlu0 %v1824
      %v1826 = vpop.xlane.xlu0 %1825
      %v1827 = vadd.f32 %v1768, %v1770
      %1828 = vadd.xlane.f32.xlu0 %v1827
      %v1829 = vpop.xlane.xlu0 %1828
      %v1830 = vadd.f32 %v1772, %v1774
      %1831 = vadd.xlane.f32.xlu0 %v1830
      %v1832 = vpop.xlane.xlu0 %1831
      %v1833 = vadd.f32 %v1776, %v1778
      %1834 = vadd.xlane.f32.xlu0 %v1833
      %v1835 = vpop.xlane.xlu0 %1834
      %v1836 = vadd.f32 %v1780, %v1782
      %1837 = vadd.xlane.f32.xlu0 %v1836
      %v1838 = vpop.xlane.xlu0 %1837
      %v1839 = vadd.f32 %v1784, %v1786
      %1840 = vadd.xlane.f32.xlu0 %v1839
      %v1841 = vpop.xlane.xlu0 %1840
      %v1842 = vadd.f32 %v1788, %v1790
      %1843 = vadd.xlane.f32.xlu0 %v1842
      %v1844 = vpop.xlane.xlu0 %1843
      %v1845 = vadd.f32 %v1792, %v1794
      %1846 = vadd.xlane.f32.xlu0 %v1845
      %v1847 = vpop.xlane.xlu0 %1846
      %v1848 = vadd.f32 %v1796, %v1798
      %1849 = vadd.xlane.f32.xlu0 %v1848
      %v1850 = vpop.xlane.xlu0 %1849
      %v1851 = vadd.f32 %v1800, %v1802
      %1852 = vadd.xlane.f32.xlu0 %v1851
      %v1853 = vpop.xlane.xlu0 %1852
      %v1854 = vadd.f32 %v1804, %v1806
      %1855 = vadd.xlane.f32.xlu0 %v1854
      %v1856 = vpop.xlane.xlu0 %1855
      %v1857 = vadd.f32 %v1808, %v1810
      %1858 = vadd.xlane.f32.xlu0 %v1857
      %v1859 = vpop.xlane.xlu0 %1858
      %v1860 = vadd.f32 %v1812, %v1814
      %1861 = vadd.xlane.f32.xlu0 %v1860
      %v1862 = vpop.xlane.xlu0 %1861
      %s1863 = scalar_lea.vmem [#allocation2], 512
      %v1864 = vld [vmem:[%s1863] sm:$0xff]
      %v1865 = vld [vmem:[%s1863 + $0x8] sm:$0xff]
      %v1866 = vld [vmem:[%s1863 + $0x10] sm:$0xff]
      %v1867 = vld [vmem:[%s1863 + $0x18] sm:$0xff]
      %v1868 = vld [vmem:[%s1863 + $0x20] sm:$0xff]
      %v1869 = vld [vmem:[%s1863 + $0x28] sm:$0xff]
      %v1870 = vld [vmem:[%s1863 + $0x30] sm:$0xff]
      %v1871 = vld [vmem:[%s1863 + $0x38] sm:$0xff]
      %v1872 = vld [vmem:[%s1863 + $0x40] sm:$0xff]
      %v1873 = vld [vmem:[%s1863 + $0x48] sm:$0xff]
      %v1874 = vld [vmem:[%s1863 + $0x50] sm:$0xff]
      %v1875 = vld [vmem:[%s1863 + $0x58] sm:$0xff]
      %v1876 = vld [vmem:[%s1863 + $0x60] sm:$0xff]
      %v1877 = vld [vmem:[%s1863 + $0x68] sm:$0xff]
      %v1878 = vld [vmem:[%s1863 + $0x70] sm:$0xff]
      %v1879 = vld [vmem:[%s1863 + $0x78] sm:$0xff]
      %v1880 = vld [vmem:[%s1863 + $0x80] sm:$0xff]
      %v1881 = vld [vmem:[%s1863 + $0x88] sm:$0xff]
      %v1882 = vld [vmem:[%s1863 + $0x90] sm:$0xff]
      %v1883 = vld [vmem:[%s1863 + $0x98] sm:$0xff]
      %v1884 = vld [vmem:[%s1863 + $0xa0] sm:$0xff]
      %v1885 = vld [vmem:[%s1863 + $0xa8] sm:$0xff]
      %v1886 = vld [vmem:[%s1863 + $0xb0] sm:$0xff]
      %v1887 = vld [vmem:[%s1863 + $0xb8] sm:$0xff]
      %v1888 = vld [vmem:[%s1863 + $0xc0] sm:$0xff]
      %v1889 = vld [vmem:[%s1863 + $0xc8] sm:$0xff]
      %v1890 = vld [vmem:[%s1863 + $0xd0] sm:$0xff]
      %v1891 = vld [vmem:[%s1863 + $0xd8] sm:$0xff]
      %v1892 = vld [vmem:[%s1863 + $0xe0] sm:$0xff]
      %v1893 = vld [vmem:[%s1863 + $0xe8] sm:$0xff]
      %v1894 = vld [vmem:[%s1863 + $0xf0] sm:$0xff]
      %v1895 = vld [vmem:[%s1863 + $0xf8] sm:$0xff]
      %1896 = vmatprep.subr.mxu0 0.0
      %1897 = vmatpush1.msra.mxu0 %v1879
      %1898 = vmatprep.subr.mxu0 0.0
      %1899 = vmatpush1.msra.mxu0 %v1878
      %1900 = vmatprep.subr.mxu0 0.0
      %1901 = vmatpush1.msra.mxu0 %v1877
      %1902 = vmatprep.subr.mxu0 0.0
      %1903 = vmatpush1.msra.mxu0 %v1876
      %1904 = vmatprep.subr.mxu0 0.0
      %1905 = vmatpush1.msra.mxu0 %v1875
      %1906 = vmatprep.subr.mxu0 0.0
      %1907 = vmatpush1.msra.mxu0 %v1874
      %1908 = vmatprep.subr.mxu0 0.0
      %1909 = vmatpush1.msra.mxu0 %v1873
      %1910 = vmatprep.subr.mxu0 0.0
      %1911 = vmatpush1.msra.mxu0 %v1872
      %1912 = vmatprep.subr.mxu0 0.0
      %1913 = vmatpush1.msra.mxu0 %v1871
      %1914 = vmatprep.subr.mxu0 0.0
      %1915 = vmatpush1.msra.mxu0 %v1870
      %1916 = vmatprep.subr.mxu0 0.0
      %1917 = vmatpush1.msra.mxu0 %v1869
      %1918 = vmatprep.subr.mxu0 0.0
      %1919 = vmatpush1.msra.mxu0 %v1868
      %1920 = vmatprep.subr.mxu0 0.0
      %1921 = vmatpush1.msra.mxu0 %v1867
      %1922 = vmatprep.subr.mxu0 0.0
      %1923 = vmatpush1.msra.mxu0 %v1866
      %1924 = vmatprep.subr.mxu0 0.0
      %1925 = vmatpush1.msra.mxu0 %v1865
      %1926 = vmatprep.subr.mxu0 0.0
      %1927 = vmatpush1.msra.mxu0 %v1864
      %1928 = vmatprep.subr.mxu0 0.0
      %1929 = vmatpush2.msra.mxu0 %v1895
      %1930 = vmatprep.subr.mxu0 0.0
      %1931 = vmatpush2.msra.mxu0 %v1894
      %1932 = vmatprep.subr.mxu0 0.0
      %1933 = vmatpush2.msra.mxu0 %v1893
      %1934 = vmatprep.subr.mxu0 0.0
      %1935 = vmatpush2.msra.mxu0 %v1892
      %1936 = vmatprep.subr.mxu0 0.0
      %1937 = vmatpush2.msra.mxu0 %v1891
      %1938 = vmatprep.subr.mxu0 0.0
      %1939 = vmatpush2.msra.mxu0 %v1890
      %1940 = vmatprep.subr.mxu0 0.0
      %1941 = vmatpush2.msra.mxu0 %v1889
      %1942 = vmatprep.subr.mxu0 0.0
      %1943 = vmatpush2.msra.mxu0 %v1888
      %1944 = vmatprep.subr.mxu0 0.0
      %1945 = vmatpush2.msra.mxu0 %v1887
      %1946 = vmatprep.subr.mxu0 0.0
      %1947 = vmatpush2.msra.mxu0 %v1886
      %1948 = vmatprep.subr.mxu0 0.0
      %1949 = vmatpush2.msra.mxu0 %v1885
      %1950 = vmatprep.subr.mxu0 0.0
      %1951 = vmatpush2.msra.mxu0 %v1884
      %1952 = vmatprep.subr.mxu0 0.0
      %1953 = vmatpush2.msra.mxu0 %v1883
      %1954 = vmatprep.subr.mxu0 0.0
      %1955 = vmatpush2.msra.mxu0 %v1882
      %1956 = vmatprep.subr.mxu0 0.0
      %1957 = vmatpush2.msra.mxu0 %v1881
      %1958 = vmatprep.subr.mxu0 0.0
      %1959 = vmatpush2.msra.mxu0 %v1880
      %1960 = vmatprep.mubr.f32.mxu0 %v1754
      %1961 = vmatmul.mubr.f32.gmra.mxu0 %v1752
      %v1962 = vpop.f32.mrf.mxu0
      %v1963 = vadd.f32 0.0, %v1962
      %v1964 = vpop.f32.mrf.mxu0
      %1965 = vmatprep.mubr.f32.mxu0 %v1758
      %1966 = vmatmul.mubr.f32.gmra.mxu0 %v1756
      %v1967 = vpop.f32.mrf.mxu0
      %v1968 = vadd.f32 0.0, %v1967
      %v1969 = vpop.f32.mrf.mxu0
      %1970 = vmatprep.mubr.f32.mxu0 %v1762
      %1971 = vmatmul.mubr.f32.gmra.mxu0 %v1760
      %v1972 = vpop.f32.mrf.mxu0
      %v1973 = vadd.f32 0.0, %v1972
      %v1974 = vpop.f32.mrf.mxu0
      %1975 = vmatprep.mubr.f32.mxu0 %v1766
      %1976 = vmatmul.mubr.f32.gmra.mxu0 %v1764
      %v1977 = vpop.f32.mrf.mxu0
      %v1978 = vadd.f32 0.0, %v1977
      %v1979 = vpop.f32.mrf.mxu0
      %1980 = vmatprep.mubr.f32.mxu0 %v1770
      %1981 = vmatmul.mubr.f32.gmra.mxu0 %v1768
      %v1982 = vpop.f32.mrf.mxu0
      %v1983 = vadd.f32 0.0, %v1982
      %v1984 = vpop.f32.mrf.mxu0
      %1985 = vmatprep.mubr.f32.mxu0 %v1774
      %1986 = vmatmul.mubr.f32.gmra.mxu0 %v1772
      %v1987 = vpop.f32.mrf.mxu0
      %v1988 = vadd.f32 0.0, %v1987
      %v1989 = vpop.f32.mrf.mxu0
      %1990 = vmatprep.mubr.f32.mxu0 %v1778
      %1991 = vmatmul.mubr.f32.gmra.mxu0 %v1776
      %v1992 = vpop.f32.mrf.mxu0
      %v1993 = vadd.f32 0.0, %v1992
      %v1994 = vpop.f32.mrf.mxu0
      %1995 = vmatprep.mubr.f32.mxu0 %v1782
      %1996 = vmatmul.mubr.f32.gmra.mxu0 %v1780
      %v1997 = vpop.f32.mrf.mxu0
      %v1998 = vadd.f32 0.0, %v1997
      %v1999 = vpop.f32.mrf.mxu0
      %2000 = vmatprep.mubr.f32.mxu0 %v1786
      %2001 = vmatmul.mubr.f32.gmra.mxu0 %v1784
      %v2002 = vpop.f32.mrf.mxu0
      %v2003 = vadd.f32 0.0, %v2002
      %v2004 = vpop.f32.mrf.mxu0
      %2005 = vmatprep.mubr.f32.mxu0 %v1790
      %2006 = vmatmul.mubr.f32.gmra.mxu0 %v1788
      %v2007 = vpop.f32.mrf.mxu0
      %v2008 = vadd.f32 0.0, %v2007
      %v2009 = vpop.f32.mrf.mxu0
      %2010 = vmatprep.mubr.f32.mxu0 %v1794
      %2011 = vmatmul.mubr.f32.gmra.mxu0 %v1792
      %v2012 = vpop.f32.mrf.mxu0
      %v2013 = vadd.f32 0.0, %v2012
      %v2014 = vpop.f32.mrf.mxu0
      %2015 = vmatprep.mubr.f32.mxu0 %v1798
      %2016 = vmatmul.mubr.f32.gmra.mxu0 %v1796
      %v2017 = vpop.f32.mrf.mxu0
      %v2018 = vadd.f32 0.0, %v2017
      %v2019 = vpop.f32.mrf.mxu0
      %2020 = vmatprep.mubr.f32.mxu0 %v1802
      %2021 = vmatmul.mubr.f32.gmra.mxu0 %v1800
      %v2022 = vpop.f32.mrf.mxu0
      %v2023 = vadd.f32 0.0, %v2022
      %v2024 = vpop.f32.mrf.mxu0
      %2025 = vmatprep.mubr.f32.mxu0 %v1806
      %2026 = vmatmul.mubr.f32.gmra.mxu0 %v1804
      %v2027 = vpop.f32.mrf.mxu0
      %v2028 = vadd.f32 0.0, %v2027
      %v2029 = vpop.f32.mrf.mxu0
      %2030 = vmatprep.mubr.f32.mxu0 %v1810
      %2031 = vmatmul.mubr.f32.gmra.mxu0 %v1808
      %v2032 = vpop.f32.mrf.mxu0
      %v2033 = vadd.f32 0.0, %v2032
      %v2034 = vpop.f32.mrf.mxu0
      %2035 = vmatprep.mubr.f32.mxu0 %v1814
      %2036 = vmatmul.mubr.f32.gmra.mxu0 %v1812
      %v2037 = vpop.f32.mrf.mxu0
      %v2038 = vadd.f32 0.0, %v2037
      %v2039 = vpop.f32.mrf.mxu0
      %2040 = vdwg.mxu0
      %v2041 = vrcp.pop %v1817
      %v2042 = vrcp.pop %v1820
      %v2043 = vrcp.pop %v1823
      %v2044 = vrcp.pop %v1826
      %v2045 = vrcp.pop %v1829
      %v2046 = vrcp.pop %v1832
      %v2047 = vrcp.pop %v1835
      %v2048 = vrcp.pop %v1838
      %v2049 = vrcp.pop %v1841
      %v2050 = vrcp.pop %v1844
      %v2051 = vrcp.pop %v1847
      %v2052 = vrcp.pop %v1850
      %v2053 = vrcp.pop %v1853
      %v2054 = vrcp.pop %v1856
      %v2055 = vrcp.pop %v1859
      %v2056 = vrcp.pop %v1862
      %v2057 = vmul.f32 %v1963, %v2041
      %v2058 = vmul.f32 %v1968, %v2042
      %v2059 = vmul.f32 %v1973, %v2043
      %v2060 = vmul.f32 %v1978, %v2044
      %v2061 = vmul.f32 %v1983, %v2045
      %v2062 = vmul.f32 %v1988, %v2046
      %v2063 = vmul.f32 %v1993, %v2047
      %v2064 = vmul.f32 %v1998, %v2048
      %v2065 = vmul.f32 %v2003, %v2049
      %v2066 = vmul.f32 %v2008, %v2050
      %v2067 = vmul.f32 %v2013, %v2051
      %v2068 = vmul.f32 %v2018, %v2052
      %v2069 = vmul.f32 %v2023, %v2053
      %v2070 = vmul.f32 %v2028, %v2054
      %v2071 = vmul.f32 %v2033, %v2055
      %v2072 = vmul.f32 %v2038, %v2056
      %v2073 = vld [vmem:[%s6] sm:$0xf]
      %v2075 = vsel %vm1456, %v2057, 0
      %v2078 = vsel %vm1456, %v2058, 0
      %v2081 = vsel %vm1456, %v2059, 0
      %v2084 = vsel %vm1456, %v2060, 0
      %v2087 = vsel %vm1456, %v2061, 0
      %v2090 = vsel %vm1456, %v2062, 0
      %v2093 = vsel %vm1456, %v2063, 0
      %v2096 = vsel %vm1456, %v2064, 0
      %v2099 = vsel %vm1456, %v2065, 0
      %v2102 = vsel %vm1456, %v2066, 0
      %v2105 = vsel %vm1456, %v2067, 0
      %v2108 = vsel %vm1456, %v2068, 0
      %v2111 = vsel %vm1456, %v2069, 0
      %v2114 = vsel %vm1456, %v2070, 0
      %v2117 = vsel %vm1456, %v2071, 0
      %v2120 = vsel %vm1456, %v2072, 0
      %v2123 = vsel %vm1505, %v2073, 0
      %2125 = vmatprep.subr.mxu0 0.0
      %2126 = vmatpush1.msra.mxu0 0.0
      %2127 = vmatprep.subr.mxu0 0.0
      %2128 = vmatpush1.msra.mxu0 0.0
      %2129 = vmatprep.subr.mxu0 0.0
      %2130 = vmatpush1.msra.mxu0 0.0
      %2131 = vmatprep.subr.mxu0 0.0
      %2132 = vmatpush1.msra.mxu0 0.0
      %2133 = vmatprep.subr.mxu0 0.0
      %2134 = vmatpush1.msra.mxu0 0.0
      %2135 = vmatprep.subr.mxu0 0.0
      %2136 = vmatpush1.msra.mxu0 0.0
      %2137 = vmatprep.subr.mxu0 0.0
      %2138 = vmatpush1.msra.mxu0 0.0
      %2139 = vmatprep.subr.mxu0 0.0
      %2140 = vmatpush1.msra.mxu0 0.0
      %2141 = vmatprep.subr.mxu0 0.0
      %2142 = vmatpush1.msra.mxu0 0.0
      %2143 = vmatprep.subr.mxu0 0.0
      %2144 = vmatpush1.msra.mxu0 0.0
      %2145 = vmatprep.subr.mxu0 0.0
      %2146 = vmatpush1.msra.mxu0 0.0
      %2147 = vmatprep.subr.mxu0 0.0
      %2148 = vmatpush1.msra.mxu0 0.0
      %2149 = vmatprep.subr.mxu0 0.0
      %2150 = vmatpush1.msra.mxu0 0.0
      %2151 = vmatprep.subr.mxu0 0.0
      %2152 = vmatpush1.msra.mxu0 0.0
      %2153 = vmatprep.subr.mxu0 0.0
      %2154 = vmatpush1.msra.mxu0 0.0
      %2155 = vmatprep.subr.mxu0 0.0
      %2156 = vmatpush1.msra.mxu0 %v2123
      %2157 = vmatprep.subr.mxu0 0.0
      %2158 = vmatpush2.msra.mxu0 0.0
      %2159 = vmatprep.subr.mxu0 0.0
      %2160 = vmatpush2.msra.mxu0 0.0
      %2161 = vmatprep.subr.mxu0 0.0
      %2162 = vmatpush2.msra.mxu0 0.0
      %2163 = vmatprep.subr.mxu0 0.0
      %2164 = vmatpush2.msra.mxu0 0.0
      %2165 = vmatprep.subr.mxu0 0.0
      %2166 = vmatpush2.msra.mxu0 0.0
      %2167 = vmatprep.subr.mxu0 0.0
      %2168 = vmatpush2.msra.mxu0 0.0
      %2169 = vmatprep.subr.mxu0 0.0
      %2170 = vmatpush2.msra.mxu0 0.0
      %2171 = vmatprep.subr.mxu0 0.0
      %2172 = vmatpush2.msra.mxu0 0.0
      %2173 = vmatprep.subr.mxu0 0.0
      %2174 = vmatpush2.msra.mxu0 0.0
      %2175 = vmatprep.subr.mxu0 0.0
      %2176 = vmatpush2.msra.mxu0 0.0
      %2177 = vmatprep.subr.mxu0 0.0
      %2178 = vmatpush2.msra.mxu0 0.0
      %2179 = vmatprep.subr.mxu0 0.0
      %2180 = vmatpush2.msra.mxu0 0.0
      %2181 = vmatprep.subr.mxu0 0.0
      %2182 = vmatpush2.msra.mxu0 0.0
      %2183 = vmatprep.subr.mxu0 0.0
      %2184 = vmatpush2.msra.mxu0 0.0
      %2185 = vmatprep.subr.mxu0 0.0
      %2186 = vmatpush2.msra.mxu0 0.0
      %2187 = vmatprep.subr.mxu0 0.0
      %2188 = vmatpush2.msra.mxu0 0.0
      %2189 = vmatprep.mubr.f32.mxu0 0.0
      %2190 = vmatmul.mubr.f32.gmra.mxu0 %v2075
      %v2191 = vpop.f32.mrf.mxu0
      %v2192 = vadd.f32 0.0, %v2191
      %v2193 = vpop.f32.mrf.mxu0
      %2194 = vmatprep.mubr.f32.mxu0 0.0
      %2195 = vmatmul.mubr.f32.gmra.mxu0 %v2078
      %v2196 = vpop.f32.mrf.mxu0
      %v2197 = vadd.f32 0.0, %v2196
      %v2198 = vpop.f32.mrf.mxu0
      %2199 = vmatprep.mubr.f32.mxu0 0.0
      %2200 = vmatmul.mubr.f32.gmra.mxu0 %v2081
      %v2201 = vpop.f32.mrf.mxu0
      %v2202 = vadd.f32 0.0, %v2201
      %v2203 = vpop.f32.mrf.mxu0
      %2204 = vmatprep.mubr.f32.mxu0 0.0
      %2205 = vmatmul.mubr.f32.gmra.mxu0 %v2084
      %v2206 = vpop.f32.mrf.mxu0
      %v2207 = vadd.f32 0.0, %v2206
      %v2208 = vpop.f32.mrf.mxu0
      %2209 = vmatprep.mubr.f32.mxu0 0.0
      %2210 = vmatmul.mubr.f32.gmra.mxu0 %v2087
      %v2211 = vpop.f32.mrf.mxu0
      %v2212 = vadd.f32 0.0, %v2211
      %v2213 = vpop.f32.mrf.mxu0
      %2214 = vmatprep.mubr.f32.mxu0 0.0
      %2215 = vmatmul.mubr.f32.gmra.mxu0 %v2090
      %v2216 = vpop.f32.mrf.mxu0
      %v2217 = vadd.f32 0.0, %v2216
      %v2218 = vpop.f32.mrf.mxu0
      %2219 = vmatprep.mubr.f32.mxu0 0.0
      %2220 = vmatmul.mubr.f32.gmra.mxu0 %v2093
      %v2221 = vpop.f32.mrf.mxu0
      %v2222 = vadd.f32 0.0, %v2221
      %v2223 = vpop.f32.mrf.mxu0
      %2224 = vmatprep.mubr.f32.mxu0 0.0
      %2225 = vmatmul.mubr.f32.gmra.mxu0 %v2096
      %v2226 = vpop.f32.mrf.mxu0
      %v2227 = vadd.f32 0.0, %v2226
      %v2228 = vpop.f32.mrf.mxu0
      %2229 = vmatprep.mubr.f32.mxu0 0.0
      %2230 = vmatmul.mubr.f32.gmra.mxu0 %v2099
      %v2231 = vpop.f32.mrf.mxu0
      %v2232 = vadd.f32 0.0, %v2231
      %v2233 = vpop.f32.mrf.mxu0
      %2234 = vmatprep.mubr.f32.mxu0 0.0
      %2235 = vmatmul.mubr.f32.gmra.mxu0 %v2102
      %v2236 = vpop.f32.mrf.mxu0
      %v2237 = vadd.f32 0.0, %v2236
      %v2238 = vpop.f32.mrf.mxu0
      %2239 = vmatprep.mubr.f32.mxu0 0.0
      %2240 = vmatmul.mubr.f32.gmra.mxu0 %v2105
      %v2241 = vpop.f32.mrf.mxu0
      %v2242 = vadd.f32 0.0, %v2241
      %v2243 = vpop.f32.mrf.mxu0
      %2244 = vmatprep.mubr.f32.mxu0 0.0
      %2245 = vmatmul.mubr.f32.gmra.mxu0 %v2108
      %v2246 = vpop.f32.mrf.mxu0
      %v2247 = vadd.f32 0.0, %v2246
      %v2248 = vpop.f32.mrf.mxu0
      %2249 = vmatprep.mubr.f32.mxu0 0.0
      %2250 = vmatmul.mubr.f32.gmra.mxu0 %v2111
      %v2251 = vpop.f32.mrf.mxu0
      %v2252 = vadd.f32 0.0, %v2251
      %v2253 = vpop.f32.mrf.mxu0
      %2254 = vmatprep.mubr.f32.mxu0 0.0
      %2255 = vmatmul.mubr.f32.gmra.mxu0 %v2114
      %v2256 = vpop.f32.mrf.mxu0
      %v2257 = vadd.f32 0.0, %v2256
      %v2258 = vpop.f32.mrf.mxu0
      %2259 = vmatprep.mubr.f32.mxu0 0.0
      %2260 = vmatmul.mubr.f32.gmra.mxu0 %v2117
      %v2261 = vpop.f32.mrf.mxu0
      %v2262 = vadd.f32 0.0, %v2261
      %v2263 = vpop.f32.mrf.mxu0
      %2264 = vmatprep.mubr.f32.mxu0 0.0
      %2265 = vmatmul.mubr.f32.gmra.mxu0 %v2120
      %v2266 = vpop.f32.mrf.mxu0
      %v2267 = vadd.f32 0.0, %v2266
      %v2268 = vpop.f32.mrf.mxu0
      %2269 = vdwg.mxu0
      %v2270 = vadd.f32 %v1420, %v2192
      %v2271 = vadd.f32 %v1421, %v2197
      %v2272 = vadd.f32 %v1422, %v2202
      %v2273 = vadd.f32 %v1423, %v2207
      %v2274 = vadd.f32 %v1424, %v2212
      %v2275 = vadd.f32 %v1425, %v2217
      %v2276 = vadd.f32 %v1426, %v2222
      %v2277 = vadd.f32 %v1427, %v2227
      %v2278 = vadd.f32 %v1428, %v2232
      %v2279 = vadd.f32 %v1429, %v2237
      %v2280 = vadd.f32 %v1430, %v2242
      %v2281 = vadd.f32 %v1431, %v2247
      %v2282 = vadd.f32 %v1432, %v2252
      %v2283 = vadd.f32 %v1433, %v2257
      %v2284 = vadd.f32 %v1434, %v2262
      %v2285 = vadd.f32 %v1435, %v2267
      %2286 = vst.msk [vmem:[%s327] sm:$0xff] %vm1456, %v2270
      %2287 = vst.msk [vmem:[%s327 + $0x8] sm:$0xff] %vm1456, %v2271
      %2288 = vst.msk [vmem:[%s327 + $0x10] sm:$0xff] %vm1456, %v2272
      %2289 = vst.msk [vmem:[%s327 + $0x18] sm:$0xff] %vm1456, %v2273
      %2290 = vst.msk [vmem:[%s327 + $0x20] sm:$0xff] %vm1456, %v2274
      %2291 = vst.msk [vmem:[%s327 + $0x28] sm:$0xff] %vm1456, %v2275
      %2292 = vst.msk [vmem:[%s327 + $0x30] sm:$0xff] %vm1456, %v2276
      %2293 = vst.msk [vmem:[%s327 + $0x38] sm:$0xff] %vm1456, %v2277
      %2294 = vst.msk [vmem:[%s327 + $0x40] sm:$0xff] %vm1456, %v2278
      %2295 = vst.msk [vmem:[%s327 + $0x48] sm:$0xff] %vm1456, %v2279
      %2296 = vst.msk [vmem:[%s327 + $0x50] sm:$0xff] %vm1456, %v2280
      %2297 = vst.msk [vmem:[%s327 + $0x58] sm:$0xff] %vm1456, %v2281
      %2298 = vst.msk [vmem:[%s327 + $0x60] sm:$0xff] %vm1456, %v2282
      %2299 = vst.msk [vmem:[%s327 + $0x68] sm:$0xff] %vm1456, %v2283
      %2300 = vst.msk [vmem:[%s327 + $0x70] sm:$0xff] %vm1456, %v2284
      %2301 = vst.msk [vmem:[%s327 + $0x78] sm:$0xff] %vm1456, %v2285
      %s2302 = smul.u32 16, %s24
      %p2303 = scmp.lt.s32.totalorder %s23, 1
      %s2304 = scalar_select %p2303, %s23, 1
      %p2305 = scmp.lt.s32.totalorder %s2302, 31
      %s2306 = scalar_select %p2305, %s2302, 31
      %s2307 = smul.addr %s2304, 32
      %s2308 = sadd.s32 %s2306, %s2307
      %s2309 = smul.addr %s2308, 8
      %s2310 = scalar_lea.vmem %s8, %s2309
      // Predicated region
      $region78: #{tpu_custom_call.1} parent=51 // pred_check
        %p2311 = pneg %p224
      $region79: #{tpu_custom_call.1} parent=51 // pred_check_branch
        %2313 = sbr.rel (%p2311) target = $region81
      $region80: #{tpu_custom_call.1} parent=51 // pred_region
        %s2314 = smul.u32 16, %s24
      $region81: #{tpu_custom_call.1} parent=51 // pred_fallthru
        _
    $region52: #{tpu_custom_call.1} parent=5 // pred_fallthru
      _
    %p2315 = scmp.le.s32.totalorder 2, %s14
    // Predicated region
    $region82: #{tpu_custom_call.1} parent=5 // pred_check
      %p2316 = pneg %p2315
    $region83: #{tpu_custom_call.1} parent=5 // pred_check_branch
      %2318 = sbr.rel (%p2316) target = $region85
    $region84: #{tpu_custom_call.1} parent=5 // pred_region
      %s2319 = ssub.s32 %s14, 2
      // Predicated region
      $region86: #{tpu_custom_call.1} parent=84 // pred_check
        %p2320 = pneg %p230
      $region87: #{tpu_custom_call.1} parent=84 // pred_check_branch
        %2322 = sbr.rel (%p2320) target = $region89
      $region88: #{tpu_custom_call.1} parent=84 // pred_region
        %s2323 = smul.u32 16, %s26
        %p2324 = scmp.lt.s32.totalorder %s25, 1
        %s2325 = scalar_select %p2324, %s25, 1
        %p2326 = scmp.lt.s32.totalorder %s2323, 31
        %s2327 = scalar_select %p2326, %s2323, 31
        %s2328 = smul.addr %s2325, 32
        %s2329 = sadd.s32 %s2327, %s2328
        %s2330 = smul.addr %s2329, 8
        %s2331 = scalar_lea.vmem %s8, %s2330
      $region89: #{tpu_custom_call.1} parent=84 // pred_fallthru
        _
    $region85: #{tpu_custom_call.1} parent=5 // pred_fallthru
      _
  $region6: #{tpu_custom_call.1} parent=0 // loop_footer
    %s18 = sadd.s32 1, %s14
  $region7: #{tpu_custom_call.1} parent=0 // loop_footer_branch
    %13 = sbr.rel target = $region3
  $region8: #{tpu_custom_call.1} parent=0 // loop_exit
    _

// kernel: tpu_custom_call.1
$region0: #{tpu_custom_call.1}
  #allocation0 [shape = 'u32[]', space=smem, size = 0x4, offset = 0x4, fixed_abs, tag = 'smem constant byte address 0x4 - core index']
  #allocation1 [shape = 'u32[144,128]{1,0:T(1,128)}', space=vmem, size = 0x12000, scoped, tag = 'internal scratch']
  #allocation2 [shape = 'f32[3,256,4]{2,1,0:T(8,128)}', space=vmem, size = 0x60000, scoped, tag = 'scratch operand']
  #allocation3 [shape = 'f32[1,4,256]{2,1,0:T(4,128)}', space=vmem, size = 0x1000, scoped, tag = 'scratch operand']
  %s0 = inlined_call_operand.vmem [shape: f32[2,256,4], index: 0, kind: input, shape index: {}]
  %s1 = inlined_call_operand.vmem [shape: f32[4,4], index: 1, kind: input, shape index: {}]
  %s2 = inlined_call_operand.vmem [shape: f32[1,4], index: 2, kind: input, shape index: {}]
  %s3 = inlined_call_operand.vmem [shape: f32[1,4], index: 3, kind: input, shape index: {}]
  %s4 = inlined_call_operand.vmem [shape: f32[1,3,4,4], index: 4, kind: input, shape index: {}]
  %s5 = inlined_call_operand.vmem [shape: f32[1,3,1,4], index: 5, kind: input, shape index: {}]
  %s6 = inlined_call_operand.vmem [shape: f32[1,4,4], index: 6, kind: input, shape index: {}]
  %s7 = inlined_call_operand.vmem [shape: f32[1,4], index: 7, kind: input, shape index: {}]
  %s8 = inlined_call_operand.vmem [shape: f32[2,256,4], index: 8, kind: output, shape index: {}]
  %s9 = sld [smem:[#allocation0]]
  $region90: #{tpu_custom_call.1} parent=0
    _
  %s11 = ssub.s32 1, %s9
  %s12 = scalar_select 0, %s11, %s9
  loop: start=0, step=1, limit=6
  $region2: #{tpu_custom_call.1} parent=0 // loop_pre_header
    _
  $region3: #{tpu_custom_call.1} parent=0 // loop_header
    %s14 = sphi 0, %s18
    %p15 = scmp.ge.s32.totalorder %s14, 6
    %s21 = sphi 0, %s33
    %s22 = sphi 0, %s29
    %s23 = sphi 0, %s21
    %s24 = sphi 0, %s22
    %s25 = sphi 0, %s23
    %s26 = sphi 0, %s24
    %s36 = sphi 0, %s38
    %s39 = sphi 0, %s36
    %s40 = sphi 0, %s39
    %s56 = sphi 0, %s40
    %s60 = sphi 0, %s60
    %s62 = sphi 0, %s60
    %s63 = sphi 0, %s62
    %s77 = sphi 0, %s63
    %s81 = sphi 0, %s81
    %s83 = sphi 0, %s81
    %s84 = sphi 0, %s83
    %s98 = sphi 0, %s84
    %s102 = sphi 0, %s102
    %s104 = sphi 0, %s102
    %s105 = sphi 0, %s104
    %s119 = sphi 0, %s105
    %s123 = sphi 0, %s123
    %s125 = sphi 0, %s123
    %s126 = sphi 0, %s125
    %s140 = sphi 0, %s126
    %s144 = sphi 0, %s144
    %s146 = sphi 0, %s144
    %s147 = sphi 0, %s146
    %s161 = sphi 0, %s147
    %s165 = sphi 0, %s165
    %s167 = sphi 0, %s165
    %s168 = sphi 0, %s167
    %s182 = sphi 0, %s168
    %s186 = sphi 0, %s186
    %s188 = sphi 0, %s186
    %s189 = sphi 0, %s188
    %s203 = sphi 0, %s189
    %s211 = sphi 0, %s213
    %s214 = sphi 0, %s211
    %s215 = sphi 0, %s214
    %s231 = sphi 0, %s215
  $region4: #{tpu_custom_call.1} parent=0 // loop_header_branch
    %17 = sbr.rel (%p15) target = $region8
  $region5: #{tpu_custom_call.1} parent=0 // loop_body
    %s19 = ssub.s32 %s14, 1
    %s20 = ssub.s32 %s14, 2
    %s27 = sadd.s32 1, %s22
    %p28 = scmp.ge.s32.totalorder %s27, 2
    %s29 = scalar_select %p28, 0, %s27
    %s30 = sadd.s32 1, %s21
    %s31 = scalar_select %p28, %s30, %s21
    %p32 = scmp.ge.s32.totalorder %s31, 2
    %s33 = scalar_select %p32, 0, %s31
    %s34 = ssub.s32 %s21, %s33
    %p35 = scmp.eq.s32.totalorder %s34, 0
    %s37 = sadd.s32 %s36, 1
    %s38 = scalar_select %p35, %s36, %s37
    %p41 = pneg %p35
    %p42 = scmp.eq.s32.totalorder %s14, 3
    %p43 = por %p41, %p42
    %p44 = scmp.ne.s32.totalorder %s36, %s39
    %p45 = scmp.eq.s32.totalorder %s14, 0
    %p46 = por %p44, %p45
    %p47 = scmp.ne.s32.totalorder %s36, %s39
    %p48 = scmp.eq.s32.totalorder %s19, 3
    %p49 = por %p47, %p48
    %p50 = scmp.ne.s32.totalorder %s39, %s40
    %p51 = scmp.eq.s32.totalorder %s19, 0
    %p52 = por %p50, %p51
    %p53 = scmp.ne.s32.totalorder %s39, %s40
    %p54 = scmp.eq.s32.totalorder %s20, 3
    %p55 = por %p53, %p54
    %p57 = scmp.ne.s32.totalorder %s40, %s56
    %p58 = scmp.eq.s32.totalorder %s20, 0
    %p59 = por %p57, %p58
    %s61 = sadd.s32 %s60, 1
    %p64 = scmp.eq.s32.totalorder %s14, 3
    %p65 = scmp.ne.s32.totalorder %s60, %s62
    %p66 = scmp.eq.s32.totalorder %s14, 0
    %p67 = por %p65, %p66
    %p68 = scmp.ne.s32.totalorder %s60, %s62
    %p69 = scmp.eq.s32.totalorder %s19, 3
    %p70 = por %p68, %p69
    %p71 = scmp.ne.s32.totalorder %s62, %s63
    %p72 = scmp.eq.s32.totalorder %s19, 0
    %p73 = por %p71, %p72
    %p74 = scmp.ne.s32.totalorder %s62, %s63
    %p75 = scmp.eq.s32.totalorder %s20, 3
    %p76 = por %p74, %p75
    %p78 = scmp.ne.s32.totalorder %s63, %s77
    %p79 = scmp.eq.s32.totalorder %s20, 0
    %p80 = por %p78, %p79
    %s82 = sadd.s32 %s81, 1
    %p85 = scmp.eq.s32.totalorder %s14, 3
    %p86 = scmp.ne.s32.totalorder %s81, %s83
    %p87 = scmp.eq.s32.totalorder %s14, 0
    %p88 = por %p86, %p87
    %p89 = scmp.ne.s32.totalorder %s81, %s83
    %p90 = scmp.eq.s32.totalorder %s19, 3
    %p91 = por %p89, %p90
    %p92 = scmp.ne.s32.totalorder %s83, %s84
    %p93 = scmp.eq.s32.totalorder %s19, 0
    %p94 = por %p92, %p93
    %p95 = scmp.ne.s32.totalorder %s83, %s84
    %p96 = scmp.eq.s32.totalorder %s20, 3
    %p97 = por %p95, %p96
    %p99 = scmp.ne.s32.totalorder %s84, %s98
    %p100 = scmp.eq.s32.totalorder %s20, 0
    %p101 = por %p99, %p100
    %s103 = sadd.s32 %s102, 1
    %p106 = scmp.eq.s32.totalorder %s14, 3
    %p107 = scmp.ne.s32.totalorder %s102, %s104
    %p108 = scmp.eq.s32.totalorder %s14, 0
    %p109 = por %p107, %p108
    %p110 = scmp.ne.s32.totalorder %s102, %s104
    %p111 = scmp.eq.s32.totalorder %s19, 3
    %p112 = por %p110, %p111
    %p113 = scmp.ne.s32.totalorder %s104, %s105
    %p114 = scmp.eq.s32.totalorder %s19, 0
    %p115 = por %p113, %p114
    %p116 = scmp.ne.s32.totalorder %s104, %s105
    %p117 = scmp.eq.s32.totalorder %s20, 3
    %p118 = por %p116, %p117
    %p120 = scmp.ne.s32.totalorder %s105, %s119
    %p121 = scmp.eq.s32.totalorder %s20, 0
    %p122 = por %p120, %p121
    %s124 = sadd.s32 %s123, 1
    %p127 = scmp.eq.s32.totalorder %s14, 3
    %p128 = scmp.ne.s32.totalorder %s123, %s125
    %p129 = scmp.eq.s32.totalorder %s14, 0
    %p130 = por %p128, %p129
    %p131 = scmp.ne.s32.totalorder %s123, %s125
    %p132 = scmp.eq.s32.totalorder %s19, 3
    %p133 = por %p131, %p132
    %p134 = scmp.ne.s32.totalorder %s125, %s126
    %p135 = scmp.eq.s32.totalorder %s19, 0
    %p136 = por %p134, %p135
    %p137 = scmp.ne.s32.totalorder %s125, %s126
    %p138 = scmp.eq.s32.totalorder %s20, 3
    %p139 = por %p137, %p138
    %p141 = scmp.ne.s32.totalorder %s126, %s140
    %p142 = scmp.eq.s32.totalorder %s20, 0
    %p143 = por %p141, %p142
    %s145 = sadd.s32 %s144, 1
    %p148 = scmp.eq.s32.totalorder %s14, 3
    %p149 = scmp.ne.s32.totalorder %s144, %s146
    %p150 = scmp.eq.s32.totalorder %s14, 0
    %p151 = por %p149, %p150
    %p152 = scmp.ne.s32.totalorder %s144, %s146
    %p153 = scmp.eq.s32.totalorder %s19, 3
    %p154 = por %p152, %p153
    %p155 = scmp.ne.s32.totalorder %s146, %s147
    %p156 = scmp.eq.s32.totalorder %s19, 0
    %p157 = por %p155, %p156
    %p158 = scmp.ne.s32.totalorder %s146, %s147
    %p159 = scmp.eq.s32.totalorder %s20, 3
    %p160 = por %p158, %p159
    %p162 = scmp.ne.s32.totalorder %s147, %s161
    %p163 = scmp.eq.s32.totalorder %s20, 0
    %p164 = por %p162, %p163
    %s166 = sadd.s32 %s165, 1
    %p169 = scmp.eq.s32.totalorder %s14, 3
    %p170 = scmp.ne.s32.totalorder %s165, %s167
    %p171 = scmp.eq.s32.totalorder %s14, 0
    %p172 = por %p170, %p171
    %p173 = scmp.ne.s32.totalorder %s165, %s167
    %p174 = scmp.eq.s32.totalorder %s19, 3
    %p175 = por %p173, %p174
    %p176 = scmp.ne.s32.totalorder %s167, %s168
    %p177 = scmp.eq.s32.totalorder %s19, 0
    %p178 = por %p176, %p177
    %p179 = scmp.ne.s32.totalorder %s167, %s168
    %p180 = scmp.eq.s32.totalorder %s20, 3
    %p181 = por %p179, %p180
    %p183 = scmp.ne.s32.totalorder %s168, %s182
    %p184 = scmp.eq.s32.totalorder %s20, 0
    %p185 = por %p183, %p184
    %s187 = sadd.s32 %s186, 1
    %p190 = scmp.eq.s32.totalorder %s14, 3
    %p191 = scmp.ne.s32.totalorder %s186, %s188
    %p192 = scmp.eq.s32.totalorder %s14, 0
    %p193 = por %p191, %p192
    %p194 = scmp.ne.s32.totalorder %s186, %s188
    %p195 = scmp.eq.s32.totalorder %s19, 3
    %p196 = por %p194, %p195
    %p197 = scmp.ne.s32.totalorder %s188, %s189
    %p198 = scmp.eq.s32.totalorder %s19, 0
    %p199 = por %p197, %p198
    %p200 = scmp.ne.s32.totalorder %s188, %s189
    %p201 = scmp.eq.s32.totalorder %s20, 3
    %p202 = por %p200, %p201
    %p204 = scmp.ne.s32.totalorder %s189, %s203
    %p205 = scmp.eq.s32.totalorder %s20, 0
    %p206 = por %p204, %p205
    %s207 = ssub.s32 %s21, %s33
    %s208 = ssub.s32 %s22, %s29
    %s209 = sor.u32 %s207, %s208
    %p210 = scmp.eq.s32.totalorder %s209, 0
    %s212 = sadd.s32 %s211, 1
    %s213 = scalar_select %p210, %s211, %s212
    %p216 = pneg %p210
    %p217 = scmp.eq.s32.totalorder %s14, 3
    %p218 = por %p216, %p217
    %p219 = scmp.ne.s32.totalorder %s211, %s214
    %p220 = scmp.eq.s32.totalorder %s14, 0
    %p221 = por %p219, %p220
    %p222 = scmp.ne.s32.totalorder %s211, %s214
    %p223 = scmp.eq.s32.totalorder %s19, 3
    %p224 = por %p222, %p223
    %p225 = scmp.ne.s32.totalorder %s214, %s215
    %p226 = scmp.eq.s32.totalorder %s19, 0
    %p227 = por %p225, %p226
    %p228 = scmp.ne.s32.totalorder %s214, %s215
    %p229 = scmp.eq.s32.totalorder %s20, 3
    %p230 = por %p228, %p229
    %p232 = scmp.ne.s32.totalorder %s215, %s231
    %p233 = scmp.eq.s32.totalorder %s20, 0
    %p234 = por %p232, %p233
    %p235 = scmp.le.s32.totalorder 1, %s14
    %p236 = scmp.lt.s32.totalorder %s14, 5
    %p237 = pnand %p235, %p236
    %p238 = pneg %p237
    // Predicated region
    $region9: #{tpu_custom_call.1} parent=5 // pred_check
      _
    $region10: #{tpu_custom_call.1} parent=5 // pred_check_branch
      %240 = sbr.rel (%p237) target = $region12
    $region11: #{tpu_custom_call.1} parent=5 // pred_region
      %s241 = ssub.s32 %s14, 1
      // Predicated region
      $region13: #{tpu_custom_call.1} parent=11 // pred_check
        %p242 = pneg %p73
      $region14: #{tpu_custom_call.1} parent=11 // pred_check_branch
        %244 = sbr.rel (%p242) target = $region16
      $region15: #{tpu_custom_call.1} parent=11 // pred_region
        _
      $region16: #{tpu_custom_call.1} parent=11 // pred_fallthru
        _
      // Predicated region
      $region17: #{tpu_custom_call.1} parent=11 // pred_check
        %p245 = pneg %p94
      $region18: #{tpu_custom_call.1} parent=11 // pred_check_branch
        %247 = sbr.rel (%p245) target = $region20
      $region19: #{tpu_custom_call.1} parent=11 // pred_region
        _
      $region20: #{tpu_custom_call.1} parent=11 // pred_fallthru
        _
      // Predicated region
      $region21: #{tpu_custom_call.1} parent=11 // pred_check
        %p248 = pneg %p115
      $region22: #{tpu_custom_call.1} parent=11 // pred_check_branch
        %250 = sbr.rel (%p248) target = $region24
      $region23: #{tpu_custom_call.1} parent=11 // pred_region
        _
      $region24: #{tpu_custom_call.1} parent=11 // pred_fallthru
        _
      // Predicated region
      $region25: #{tpu_custom_call.1} parent=11 // pred_check
        %p251 = pneg %p136
      $region26: #{tpu_custom_call.1} parent=11 // pred_check_branch
        %253 = sbr.rel (%p251) target = $region28
      $region27: #{tpu_custom_call.1} parent=11 // pred_region
        _
      $region28: #{tpu_custom_call.1} parent=11 // pred_fallthru
        _
      // Predicated region
      $region29: #{tpu_custom_call.1} parent=11 // pred_check
        %p254 = pneg %p157
      $region30: #{tpu_custom_call.1} parent=11 // pred_check_branch
        %256 = sbr.rel (%p254) target = $region32
      $region31: #{tpu_custom_call.1} parent=11 // pred_region
        _
      $region32: #{tpu_custom_call.1} parent=11 // pred_fallthru
        _
      // Predicated region
      $region33: #{tpu_custom_call.1} parent=11 // pred_check
        %p257 = pneg %p178
      $region34: #{tpu_custom_call.1} parent=11 // pred_check_branch
        %259 = sbr.rel (%p257) target = $region36
      $region35: #{tpu_custom_call.1} parent=11 // pred_region
        _
      $region36: #{tpu_custom_call.1} parent=11 // pred_fallthru
        _
      // Predicated region
      $region37: #{tpu_custom_call.1} parent=11 // pred_check
        %p260 = pneg %p199
      $region38: #{tpu_custom_call.1} parent=11 // pred_check_branch
        %262 = sbr.rel (%p260) target = $region40
      $region39: #{tpu_custom_call.1} parent=11 // pred_region
        _
      $region40: #{tpu_custom_call.1} parent=11 // pred_fallthru
        _
    $region12: #{tpu_custom_call.1} parent=5 // pred_fallthru
      _
    %p263 = scmp.lt.s32.totalorder %s14, 4
    // Predicated region
    $region41: #{tpu_custom_call.1} parent=5 // pred_check
      %p264 = pneg %p263
    $region42: #{tpu_custom_call.1} parent=5 // pred_check_branch
      %266 = sbr.rel (%p264) target = $region44
    $region43: #{tpu_custom_call.1} parent=5 // pred_region
      // Predicated region
      $region45: #{tpu_custom_call.1} parent=43 // pred_check
        %p267 = pneg %p46
      $region46: #{tpu_custom_call.1} parent=43 // pred_check_branch
        %269 = sbr.rel (%p267) target = $region48
      $region47: #{tpu_custom_call.1} parent=43 // pred_region
        %p270 = scmp.lt.s32.totalorder %s21, 1
        %s271 = scalar_select %p270, %s21, 1
        %s272 = smul.addr %s271, 32
        %s273 = smul.addr %s272, 8
        %s274 = scalar_lea.vmem %s0, %s273
      $region48: #{tpu_custom_call.1} parent=43 // pred_fallthru
        _
    $region44: #{tpu_custom_call.1} parent=5 // pred_fallthru
      _
    %p275 = scmp.le.s32.totalorder 1, %s14
    %p276 = scmp.lt.s32.totalorder %s14, 5
    %p277 = pnand %p275, %p276
    %p278 = pneg %p277
    // Predicated region
    $region49: #{tpu_custom_call.1} parent=5 // pred_check
      _
    $region50: #{tpu_custom_call.1} parent=5 // pred_check_branch
      %280 = sbr.rel (%p277) target = $region52
    $region51: #{tpu_custom_call.1} parent=5 // pred_region
      %s281 = ssub.s32 %s14, 1
      %p282 = scmp.lt.s32.totalorder %s23, 1
      %s283 = scalar_select %p282, %s23, 1
      %s284 = smul.addr %s283, 32
      %s285 = smul.addr %s284, 8
      %s286 = scalar_lea.vmem %s0, %s285
      %p287 = pneg %p52
      %p288 = pneg %p49
      %p289 = pneg %p73
      %p290 = pneg %p70
      %p291 = pneg %p94
      %p292 = pneg %p91
      %p293 = pneg %p115
      %p294 = pneg %p112
      %p295 = pneg %p136
      %p296 = pneg %p133
      %p297 = pneg %p157
      %p298 = pneg %p154
      %p299 = pneg %p178
      %p300 = pneg %p175
      %p301 = pneg %p199
      %p302 = pneg %p196
      %p303 = pneg %p227
      %p304 = pneg %p224
      %s305 = smul.u32 16, %s24
      %p306 = scmp.lt.s32.totalorder %s23, 1
      %s307 = scalar_select %p306, %s23, 1
      %p308 = scmp.lt.s32.totalorder %s305, 31
      %s309 = scalar_select %p308, %s305, 31
      %s310 = smul.addr %s307, 32
      %s311 = sadd.s32 %s309, %s310
      %s312 = smul.addr %s311, 8
      %s313 = scalar_lea.vmem %s8, %s312
      %p314 = scmp.lt.s32.totalorder %s23, 1
      %s315 = scalar_select %p314, %s23, 1
      %s316 = smul.addr %s315, 32
      %s317 = smul.addr %s316, 8
      %s318 = scalar_lea.vmem %s0, %s317
      %s319 = smul.u32 16, %s24
      %p320 = scmp.lt.s32.totalorder %s23, 1
      %s321 = scalar_select %p320, %s23, 1
      %p322 = scmp.lt.s32.totalorder %s319, 31
      %s323 = scalar_select %p322, %s319, 31
      %s324 = smul.addr %s321, 32
      %s325 = sadd.s32 %s323, %s324
      %s326 = smul.addr %s325, 8
      %s327 = scalar_lea.vmem %s8, %s326
      %s328 = smul.u32 16, %s24
      %p329 = scmp.eq.s32.totalorder %s24, 0
      // Predicated region
      $region53: #{tpu_custom_call.1} parent=51 // pred_check
        %p330 = pneg %p329
      $region54: #{tpu_custom_call.1} parent=51 // pred_check_branch
        %332 = sbr.rel (%p330) target = $region56
      $region55: #{tpu_custom_call.1} parent=51 // pred_region
        loop: start=0, step=1, limit=2
        $region57: #{tpu_custom_call.1} parent=55 // loop_pre_header
          _
        $region58: #{tpu_custom_call.1} parent=55 // loop_header
          %s334 = sphi 0, %s338
          %p335 = scmp.ge.s32.totalorder %s334, 2
          %v339 = vphi 0.0, %v396
        $region59: #{tpu_custom_call.1} parent=55 // loop_header_branch
          %337 = sbr.rel (%p335) target = $region63
        $region60: #{tpu_custom_call.1} parent=55 // loop_body
          %s340 = smul.u32 %s334, 128
          %s341 = scalar_lea.vmem %s318, %s340
          %v342 = vld [vmem:[%s341] sm:$0xff]
          %v343 = vld [vmem:[%s341 + $0x8] sm:$0xff]
          %v344 = vld [vmem:[%s341 + $0x10] sm:$0xff]
          %v345 = vld [vmem:[%s341 + $0x18] sm:$0xff]
          %v346 = vld [vmem:[%s341 + $0x20] sm:$0xff]
          %v347 = vld [vmem:[%s341 + $0x28] sm:$0xff]
          %v348 = vld [vmem:[%s341 + $0x30] sm:$0xff]
          %v349 = vld [vmem:[%s341 + $0x38] sm:$0xff]
          %v350 = vld [vmem:[%s341 + $0x40] sm:$0xff]
          %v351 = vld [vmem:[%s341 + $0x48] sm:$0xff]
          %v352 = vld [vmem:[%s341 + $0x50] sm:$0xff]
          %v353 = vld [vmem:[%s341 + $0x58] sm:$0xff]
          %v354 = vld [vmem:[%s341 + $0x60] sm:$0xff]
          %v355 = vld [vmem:[%s341 + $0x68] sm:$0xff]
          %v356 = vld [vmem:[%s341 + $0x70] sm:$0xff]
          %v357 = vld [vmem:[%s341 + $0x78] sm:$0xff]
          %vm358 = vcmask 31744
          %v359 = vsel %vm358, %v342, 0.0
          %v360 = vsel %vm358, %v343, 0.0
          %v361 = vadd.f32 %v359, %v360
          %v362 = vsel %vm358, %v344, 0.0
          %v363 = vadd.f32 %v361, %v362
          %v364 = vsel %vm358, %v345, 0.0
          %v365 = vadd.f32 %v363, %v364
          %v366 = vsel %vm358, %v346, 0.0
          %v367 = vadd.f32 %v365, %v366
          %v368 = vsel %vm358, %v347, 0.0
          %v369 = vadd.f32 %v367, %v368
          %v370 = vsel %vm358, %v348, 0.0
          %v371 = vadd.f32 %v369, %v370
          %v372 = vsel %vm358, %v349, 0.0
          %v373 = vadd.f32 %v371, %v372
          %v374 = vsel %vm358, %v350, 0.0
          %v375 = vadd.f32 %v373, %v374
          %v376 = vsel %vm358, %v351, 0.0
          %v377 = vadd.f32 %v375, %v376
          %v378 = vsel %vm358, %v352, 0.0
          %v379 = vadd.f32 %v377, %v378
          %v380 = vsel %vm358, %v353, 0.0
          %v381 = vadd.f32 %v379, %v380
          %v382 = vsel %vm358, %v354, 0.0
          %v383 = vadd.f32 %v381, %v382
          %v384 = vsel %vm358, %v355, 0.0
          %v385 = vadd.f32 %v383, %v384
          %v386 = vsel %vm358, %v356, 0.0
          %v387 = vadd.f32 %v385, %v386
          %v388 = vsel %vm358, %v357, 0.0
          %v389 = vadd.f32 %v387, %v388
          %v390 = vrot.slane %v389, 4
          %v391 = vadd.f32 %v389, %v390
          %v392 = vrot.slane %v391, 2
          %v393 = vadd.f32 %v391, %v392
          %v394 = vrot.slane %v393, 1
          %v395 = vadd.f32 %v393, %v394
          %v396 = vadd.f32 %v339, %v395
        $region61: #{tpu_custom_call.1} parent=55 // loop_footer
          %s338 = sadd.s32 1, %s334
        $region62: #{tpu_custom_call.1} parent=55 // loop_footer_branch
          %333 = sbr.rel target = $region58
        $region63: #{tpu_custom_call.1} parent=55 // loop_exit
          _
        %v397 = vld [vmem:[%s1] sm:$0xf]
        %vm398 = vcmask 31744
        %v400 = vsel %vm398, %v339, 0
        %vm402 = vcmask 1043456
        %v404 = vsel %vm402, %v397, 0
        %406 = vmatprep.subr.mxu0 0.0
        %407 = vmatpush1.msra.mxu0 0.0
        %408 = vmatprep.subr.mxu0 0.0
        %409 = vmatpush1.msra.mxu0 0.0
        %410 = vmatprep.subr.mxu0 0.0
        %411 = vmatpush1.msra.mxu0 0.0
        %412 = vmatprep.subr.mxu0 0.0
        %413 = vmatpush1.msra.mxu0 0.0
        %414 = vmatprep.subr.mxu0 0.0
        %415 = vmatpush1.msra.mxu0 0.0
        %416 = vmatprep.subr.mxu0 0.0
        %417 = vmatpush1.msra.mxu0 0.0
        %418 = vmatprep.subr.mxu0 0.0
        %419 = vmatpush1.msra.mxu0 0.0
        %420 = vmatprep.subr.mxu0 0.0
        %421 = vmatpush1.msra.mxu0 0.0
        %422 = vmatprep.subr.mxu0 0.0
        %423 = vmatpush1.msra.mxu0 0.0
        %424 = vmatprep.subr.mxu0 0.0
        %425 = vmatpush1.msra.mxu0 0.0
        %426 = vmatprep.subr.mxu0 0.0
        %427 = vmatpush1.msra.mxu0 0.0
        %428 = vmatprep.subr.mxu0 0.0
        %429 = vmatpush1.msra.mxu0 0.0
        %430 = vmatprep.subr.mxu0 0.0
        %431 = vmatpush1.msra.mxu0 0.0
        %432 = vmatprep.subr.mxu0 0.0
        %433 = vmatpush1.msra.mxu0 0.0
        %434 = vmatprep.subr.mxu0 0.0
        %435 = vmatpush1.msra.mxu0 0.0
        %436 = vmatprep.subr.mxu0 0.0
        %437 = vmatpush1.msra.mxu0 %v404
        %438 = vmatprep.subr.mxu0 0.0
        %439 = vmatpush2.msra.mxu0 0.0
        %440 = vmatprep.subr.mxu0 0.0
        %441 = vmatpush2.msra.mxu0 0.0
        %442 = vmatprep.subr.mxu0 0.0
        %443 = vmatpush2.msra.mxu0 0.0
        %444 = vmatprep.subr.mxu0 0.0
        %445 = vmatpush2.msra.mxu0 0.0
        %446 = vmatprep.subr.mxu0 0.0
        %447 = vmatpush2.msra.mxu0 0.0
        %448 = vmatprep.subr.mxu0 0.0
        %449 = vmatpush2.msra.mxu0 0.0
        %450 = vmatprep.subr.mxu0 0.0
        %451 = vmatpush2.msra.mxu0 0.0
        %452 = vmatprep.subr.mxu0 0.0
        %453 = vmatpush2.msra.mxu0 0.0
        %454 = vmatprep.subr.mxu0 0.0
        %455 = vmatpush2.msra.mxu0 0.0
        %456 = vmatprep.subr.mxu0 0.0
        %457 = vmatpush2.msra.mxu0 0.0
        %458 = vmatprep.subr.mxu0 0.0
        %459 = vmatpush2.msra.mxu0 0.0
        %460 = vmatprep.subr.mxu0 0.0
        %461 = vmatpush2.msra.mxu0 0.0
        %462 = vmatprep.subr.mxu0 0.0
        %463 = vmatpush2.msra.mxu0 0.0
        %464 = vmatprep.subr.mxu0 0.0
        %465 = vmatpush2.msra.mxu0 0.0
        %466 = vmatprep.subr.mxu0 0.0
        %467 = vmatpush2.msra.mxu0 0.0
        %468 = vmatprep.subr.mxu0 0.0
        %469 = vmatpush2.msra.mxu0 0.0
        %470 = vmatprep.mubr.f32.mxu0 0.0
        %471 = vmatmul.mubr.f32.gmra.mxu0 %v400
        %v472 = vpop.f32.mrf.mxu0
        %v473 = vadd.f32 0.0, %v472
        %v474 = vpop.f32.mrf.mxu0
        %475 = vdwg.mxu0
        loop: start=0, step=1, limit=2
        $region64: #{tpu_custom_call.1} parent=55 // loop_pre_header
          _
        $region65: #{tpu_custom_call.1} parent=55 // loop_header
          %s477 = sphi 0, %s481
          %p478 = scmp.ge.s32.totalorder %s477, 2
          %v482 = vphi 0.0, %v574
        $region66: #{tpu_custom_call.1} parent=55 // loop_header_branch
          %480 = sbr.rel (%p478) target = $region70
        $region67: #{tpu_custom_call.1} parent=55 // loop_body
          %s483 = smul.u32 %s477, 128
          %s484 = scalar_lea.vmem %s318, %s483
          %v485 = vld [vmem:[%s484] sm:$0xff]
          %v486 = vld [vmem:[%s484 + $0x8] sm:$0xff]
          %v487 = vld [vmem:[%s484 + $0x10] sm:$0xff]
          %v488 = vld [vmem:[%s484 + $0x18] sm:$0xff]
          %v489 = vld [vmem:[%s484 + $0x20] sm:$0xff]
          %v490 = vld [vmem:[%s484 + $0x28] sm:$0xff]
          %v491 = vld [vmem:[%s484 + $0x30] sm:$0xff]
          %v492 = vld [vmem:[%s484 + $0x38] sm:$0xff]
          %v493 = vld [vmem:[%s484 + $0x40] sm:$0xff]
          %v494 = vld [vmem:[%s484 + $0x48] sm:$0xff]
          %v495 = vld [vmem:[%s484 + $0x50] sm:$0xff]
          %v496 = vld [vmem:[%s484 + $0x58] sm:$0xff]
          %v497 = vld [vmem:[%s484 + $0x60] sm:$0xff]
          %v498 = vld [vmem:[%s484 + $0x68] sm:$0xff]
          %v499 = vld [vmem:[%s484 + $0x70] sm:$0xff]
          %v500 = vld [vmem:[%s484 + $0x78] sm:$0xff]
          %v501 = vlaneseq
          %v502 = vshrl.u32 %v501, 7
          %v503 = vsub.s32 0, %v502
          %v504 = vrot.slane %v473, %v503
          %v505 = vsub.f32 %v485, %v504
          %v506 = vsub.f32 %v486, %v504
          %v507 = vsub.f32 %v487, %v504
          %v508 = vsub.f32 %v488, %v504
          %v509 = vsub.f32 %v489, %v504
          %v510 = vsub.f32 %v490, %v504
          %v511 = vsub.f32 %v491, %v504
          %v512 = vsub.f32 %v492, %v504
          %v513 = vsub.f32 %v493, %v504
          %v514 = vsub.f32 %v494, %v504
          %v515 = vsub.f32 %v495, %v504
          %v516 = vsub.f32 %v496, %v504
          %v517 = vsub.f32 %v497, %v504
          %v518 = vsub.f32 %v498, %v504
          %v519 = vsub.f32 %v499, %v504
          %v520 = vsub.f32 %v500, %v504
          %v521 = vmul.f32 %v505, %v505
          %v522 = vmul.f32 %v506, %v506
          %v523 = vmul.f32 %v507, %v507
          %v524 = vmul.f32 %v508, %v508
          %v525 = vmul.f32 %v509, %v509
          %v526 = vmul.f32 %v510, %v510
          %v527 = vmul.f32 %v511, %v511
          %v528 = vmul.f32 %v512, %v512
          %v529 = vmul.f32 %v513, %v513
          %v530 = vmul.f32 %v514, %v514
          %v531 = vmul.f32 %v515, %v515
          %v532 = vmul.f32 %v516, %v516
          %v533 = vmul.f32 %v517, %v517
          %v534 = vmul.f32 %v518, %v518
          %v535 = vmul.f32 %v519, %v519
          %v536 = vmul.f32 %v520, %v520
          %v537 = vsel %vm398, %v521, 0.0
          %v538 = vsel %vm398, %v522, 0.0
          %v539 = vadd.f32 %v537, %v538
          %v540 = vsel %vm398, %v523, 0.0
          %v541 = vadd.f32 %v539, %v540
          %v542 = vsel %vm398, %v524, 0.0
          %v543 = vadd.f32 %v541, %v542
          %v544 = vsel %vm398, %v525, 0.0
          %v545 = vadd.f32 %v543, %v544
          %v546 = vsel %vm398, %v526, 0.0
          %v547 = vadd.f32 %v545, %v546
          %v548 = vsel %vm398, %v527, 0.0
          %v549 = vadd.f32 %v547, %v548
          %v550 = vsel %vm398, %v528, 0.0
          %v551 = vadd.f32 %v549, %v550
          %v552 = vsel %vm398, %v529, 0.0
          %v553 = vadd.f32 %v551, %v552
          %v554 = vsel %vm398, %v530, 0.0
          %v555 = vadd.f32 %v553, %v554
          %v556 = vsel %vm398, %v531, 0.0
          %v557 = vadd.f32 %v555, %v556
          %v558 = vsel %vm398, %v532, 0.0
          %v559 = vadd.f32 %v557, %v558
          %v560 = vsel %vm398, %v533, 0.0
          %v561 = vadd.f32 %v559, %v560
          %v562 = vsel %vm398, %v534, 0.0
          %v563 = vadd.f32 %v561, %v562
          %v564 = vsel %vm398, %v535, 0.0
          %v565 = vadd.f32 %v563, %v564
          %v566 = vsel %vm398, %v536, 0.0
          %v567 = vadd.f32 %v565, %v566
          %v568 = vrot.slane %v567, 4
          %v569 = vadd.f32 %v567, %v568
          %v570 = vrot.slane %v569, 2
          %v571 = vadd.f32 %v569, %v570
          %v572 = vrot.slane %v571, 1
          %v573 = vadd.f32 %v571, %v572
          %v574 = vadd.f32 %v482, %v573
        $region68: #{tpu_custom_call.1} parent=55 // loop_footer
          %s481 = sadd.s32 1, %s477
        $region69: #{tpu_custom_call.1} parent=55 // loop_footer_branch
          %476 = sbr.rel target = $region65
        $region70: #{tpu_custom_call.1} parent=55 // loop_exit
          _
        %v576 = vsel %vm398, %v482, 0
        %578 = vmatprep.subr.mxu0 0.0
        %579 = vmatpush1.msra.mxu0 0.0
        %580 = vmatprep.subr.mxu0 0.0
        %581 = vmatpush1.msra.mxu0 0.0
        %582 = vmatprep.subr.mxu0 0.0
        %583 = vmatpush1.msra.mxu0 0.0
        %584 = vmatprep.subr.mxu0 0.0
        %585 = vmatpush1.msra.mxu0 0.0
        %586 = vmatprep.subr.mxu0 0.0
        %587 = vmatpush1.msra.mxu0 0.0
        %588 = vmatprep.subr.mxu0 0.0
        %589 = vmatpush1.msra.mxu0 0.0
        %590 = vmatprep.subr.mxu0 0.0
        %591 = vmatpush1.msra.mxu0 0.0
        %592 = vmatprep.subr.mxu0 0.0
        %593 = vmatpush1.msra.mxu0 0.0
        %594 = vmatprep.subr.mxu0 0.0
        %595 = vmatpush1.msra.mxu0 0.0
        %596 = vmatprep.subr.mxu0 0.0
        %597 = vmatpush1.msra.mxu0 0.0
        %598 = vmatprep.subr.mxu0 0.0
        %599 = vmatpush1.msra.mxu0 0.0
        %600 = vmatprep.subr.mxu0 0.0
        %601 = vmatpush1.msra.mxu0 0.0
        %602 = vmatprep.subr.mxu0 0.0
        %603 = vmatpush1.msra.mxu0 0.0
        %604 = vmatprep.subr.mxu0 0.0
        %605 = vmatpush1.msra.mxu0 0.0
        %606 = vmatprep.subr.mxu0 0.0
        %607 = vmatpush1.msra.mxu0 0.0
        %608 = vmatprep.subr.mxu0 0.0
        %609 = vmatpush1.msra.mxu0 %v404
        %610 = vmatprep.subr.mxu0 0.0
        %611 = vmatpush2.msra.mxu0 0.0
        %612 = vmatprep.subr.mxu0 0.0
        %613 = vmatpush2.msra.mxu0 0.0
        %614 = vmatprep.subr.mxu0 0.0
        %615 = vmatpush2.msra.mxu0 0.0
        %616 = vmatprep.subr.mxu0 0.0
        %617 = vmatpush2.msra.mxu0 0.0
        %618 = vmatprep.subr.mxu0 0.0
        %619 = vmatpush2.msra.mxu0 0.0
        %620 = vmatprep.subr.mxu0 0.0
        %621 = vmatpush2.msra.mxu0 0.0
        %622 = vmatprep.subr.mxu0 0.0
        %623 = vmatpush2.msra.mxu0 0.0
        %624 = vmatprep.subr.mxu0 0.0
        %625 = vmatpush2.msra.mxu0 0.0
        %626 = vmatprep.subr.mxu0 0.0
        %627 = vmatpush2.msra.mxu0 0.0
        %628 = vmatprep.subr.mxu0 0.0
        %629 = vmatpush2.msra.mxu0 0.0
        %630 = vmatprep.subr.mxu0 0.0
        %631 = vmatpush2.msra.mxu0 0.0
        %632 = vmatprep.subr.mxu0 0.0
        %633 = vmatpush2.msra.mxu0 0.0
        %634 = vmatprep.subr.mxu0 0.0
        %635 = vmatpush2.msra.mxu0 0.0
        %636 = vmatprep.subr.mxu0 0.0
        %637 = vmatpush2.msra.mxu0 0.0
        %638 = vmatprep.subr.mxu0 0.0
        %639 = vmatpush2.msra.mxu0 0.0
        %640 = vmatprep.subr.mxu0 0.0
        %641 = vmatpush2.msra.mxu0 0.0
        %642 = vmatprep.mubr.f32.mxu0 0.0
        %643 = vmatmul.mubr.f32.gmra.mxu0 %v576
        %v644 = vpop.f32.mrf.mxu0
        %v645 = vadd.f32 1e-06, %v644
        %v646 = vpop.f32.mrf.mxu0
        %647 = vdwg.mxu0
        %v648 = vrsqrt.pop %v645
        %v649 = vld [vmem:[%s2] sm:$0x1]
        %v650 = vmul.f32 %v648, %v649
        %v651 = vld [vmem:[%s3] sm:$0x1]
        %v652 = vmul.f32 %v473, %v650
        %v653 = vsub.f32 %v651, %v652
        loop: start=0, step=1, limit=2
        $region71: #{tpu_custom_call.1} parent=55 // loop_pre_header
          _
        $region72: #{tpu_custom_call.1} parent=55 // loop_header
          %s655 = sphi 0, %s659
          %p656 = scmp.ge.s32.totalorder %s655, 2
        $region73: #{tpu_custom_call.1} parent=55 // loop_header_branch
          %658 = sbr.rel (%p656) target = $region77
        $region74: #{tpu_custom_call.1} parent=55 // loop_body
          %s660 = smul.u32 %s655, 128
          %s661 = scalar_lea.vmem %s318, %s660
          %v662 = vld [vmem:[%s661] sm:$0xff]
          %v663 = vld [vmem:[%s661 + $0x8] sm:$0xff]
          %v664 = vld [vmem:[%s661 + $0x10] sm:$0xff]
          %v665 = vld [vmem:[%s661 + $0x18] sm:$0xff]
          %v666 = vld [vmem:[%s661 + $0x20] sm:$0xff]
          %v667 = vld [vmem:[%s661 + $0x28] sm:$0xff]
          %v668 = vld [vmem:[%s661 + $0x30] sm:$0xff]
          %v669 = vld [vmem:[%s661 + $0x38] sm:$0xff]
          %v670 = vld [vmem:[%s661 + $0x40] sm:$0xff]
          %v671 = vld [vmem:[%s661 + $0x48] sm:$0xff]
          %v672 = vld [vmem:[%s661 + $0x50] sm:$0xff]
          %v673 = vld [vmem:[%s661 + $0x58] sm:$0xff]
          %v674 = vld [vmem:[%s661 + $0x60] sm:$0xff]
          %v675 = vld [vmem:[%s661 + $0x68] sm:$0xff]
          %v676 = vld [vmem:[%s661 + $0x70] sm:$0xff]
          %v677 = vld [vmem:[%s661 + $0x78] sm:$0xff]
          %v678 = vlaneseq
          %v679 = vshrl.u32 %v678, 7
          %v680 = vsub.s32 0, %v679
          %v681 = vrot.slane %v650, %v680
          %v682 = vmul.f32 %v662, %v681
          %v683 = vmul.f32 %v663, %v681
          %v684 = vmul.f32 %v664, %v681
          %v685 = vmul.f32 %v665, %v681
          %v686 = vmul.f32 %v666, %v681
          %v687 = vmul.f32 %v667, %v681
          %v688 = vmul.f32 %v668, %v681
          %v689 = vmul.f32 %v669, %v681
          %v690 = vmul.f32 %v670, %v681
          %v691 = vmul.f32 %v671, %v681
          %v692 = vmul.f32 %v672, %v681
          %v693 = vmul.f32 %v673, %v681
          %v694 = vmul.f32 %v674, %v681
          %v695 = vmul.f32 %v675, %v681
          %v696 = vmul.f32 %v676, %v681
          %v697 = vmul.f32 %v677, %v681
          %v699 = vlaneseq
          %v700 = vshrl.u32 %v699, 7
          %v701 = vsub.s32 0, %v700
          %v702 = vrot.slane %v653, %v701
          %v704 = vadd.f32 %v682, %v702
          %v705 = vadd.f32 %v683, %v702
          %v706 = vadd.f32 %v684, %v702
          %v707 = vadd.f32 %v685, %v702
          %v708 = vadd.f32 %v686, %v702
          %v709 = vadd.f32 %v687, %v702
          %v710 = vadd.f32 %v688, %v702
          %v711 = vadd.f32 %v689, %v702
          %v712 = vadd.f32 %v690, %v702
          %v713 = vadd.f32 %v691, %v702
          %v714 = vadd.f32 %v692, %v702
          %v715 = vadd.f32 %v693, %v702
          %v716 = vadd.f32 %v694, %v702
          %v717 = vadd.f32 %v695, %v702
          %v718 = vadd.f32 %v696, %v702
          %v719 = vadd.f32 %v697, %v702
          %v720 = vld [vmem:[%s4] sm:$0xf]
          %v721 = vld [vmem:[%s5] sm:$0x1]
          %v723 = vlaneseq
          %v724 = vshrl.u32 %v723, 7
          %v725 = vsub.s32 0, %v724
          %v726 = vrot.slane %v721, %v725
          %v729 = vsel %vm398, %v704, 0
          %v732 = vsel %vm398, %v705, 0
          %v735 = vsel %vm398, %v706, 0
          %v738 = vsel %vm398, %v707, 0
          %v741 = vsel %vm398, %v708, 0
          %v744 = vsel %vm398, %v709, 0
          %v747 = vsel %vm398, %v710, 0
          %v750 = vsel %vm398, %v711, 0
          %v753 = vsel %vm398, %v712, 0
          %v756 = vsel %vm398, %v713, 0
          %v759 = vsel %vm398, %v714, 0
          %v762 = vsel %vm398, %v715, 0
          %v765 = vsel %vm398, %v716, 0
          %v768 = vsel %vm398, %v717, 0
          %v771 = vsel %vm398, %v718, 0
          %v774 = vsel %vm398, %v719, 0
          %v777 = vsel %vm402, %v720, 0
          %779 = vmatprep.subr.mxu0 0.0
          %780 = vmatpush1.msra.mxu0 0.0
          %781 = vmatprep.subr.mxu0 0.0
          %782 = vmatpush1.msra.mxu0 0.0
          %783 = vmatprep.subr.mxu0 0.0
          %784 = vmatpush1.msra.mxu0 0.0
          %785 = vmatprep.subr.mxu0 0.0
          %786 = vmatpush1.msra.mxu0 0.0
          %787 = vmatprep.subr.mxu0 0.0
          %788 = vmatpush1.msra.mxu0 0.0
          %789 = vmatprep.subr.mxu0 0.0
          %790 = vmatpush1.msra.mxu0 0.0
          %791 = vmatprep.subr.mxu0 0.0
          %792 = vmatpush1.msra.mxu0 0.0
          %793 = vmatprep.subr.mxu0 0.0
          %794 = vmatpush1.msra.mxu0 0.0
          %795 = vmatprep.subr.mxu0 0.0
          %796 = vmatpush1.msra.mxu0 0.0
          %797 = vmatprep.subr.mxu0 0.0
          %798 = vmatpush1.msra.mxu0 0.0
          %799 = vmatprep.subr.mxu0 0.0
          %800 = vmatpush1.msra.mxu0 0.0
          %801 = vmatprep.subr.mxu0 0.0
          %802 = vmatpush1.msra.mxu0 0.0
          %803 = vmatprep.subr.mxu0 0.0
          %804 = vmatpush1.msra.mxu0 0.0
          %805 = vmatprep.subr.mxu0 0.0
          %806 = vmatpush1.msra.mxu0 0.0
          %807 = vmatprep.subr.mxu0 0.0
          %808 = vmatpush1.msra.mxu0 0.0
          %809 = vmatprep.subr.mxu0 0.0
          %810 = vmatpush1.msra.mxu0 %v777
          %811 = vmatprep.subr.mxu0 0.0
          %812 = vmatpush2.msra.mxu0 0.0
          %813 = vmatprep.subr.mxu0 0.0
          %814 = vmatpush2.msra.mxu0 0.0
          %815 = vmatprep.subr.mxu0 0.0
          %816 = vmatpush2.msra.mxu0 0.0
          %817 = vmatprep.subr.mxu0 0.0
          %818 = vmatpush2.msra.mxu0 0.0
          %819 = vmatprep.subr.mxu0 0.0
          %820 = vmatpush2.msra.mxu0 0.0
          %821 = vmatprep.subr.mxu0 0.0
          %822 = vmatpush2.msra.mxu0 0.0
          %823 = vmatprep.subr.mxu0 0.0
          %824 = vmatpush2.msra.mxu0 0.0
          %825 = vmatprep.subr.mxu0 0.0
          %826 = vmatpush2.msra.mxu0 0.0
          %827 = vmatprep.subr.mxu0 0.0
          %828 = vmatpush2.msra.mxu0 0.0
          %829 = vmatprep.subr.mxu0 0.0
          %830 = vmatpush2.msra.mxu0 0.0
          %831 = vmatprep.subr.mxu0 0.0
          %832 = vmatpush2.msra.mxu0 0.0
          %833 = vmatprep.subr.mxu0 0.0
          %834 = vmatpush2.msra.mxu0 0.0
          %835 = vmatprep.subr.mxu0 0.0
          %836 = vmatpush2.msra.mxu0 0.0
          %837 = vmatprep.subr.mxu0 0.0
          %838 = vmatpush2.msra.mxu0 0.0
          %839 = vmatprep.subr.mxu0 0.0
          %840 = vmatpush2.msra.mxu0 0.0
          %841 = vmatprep.subr.mxu0 0.0
          %842 = vmatpush2.msra.mxu0 0.0
          %843 = vmatprep.mubr.f32.mxu0 0.0
          %844 = vmatmul.mubr.f32.gmra.mxu0 %v729
          %v845 = vpop.f32.mrf.mxu0
          %v846 = vadd.f32 %v726, %v845
          %v847 = vpop.f32.mrf.mxu0
          %848 = vmatprep.mubr.f32.mxu0 0.0
          %849 = vmatmul.mubr.f32.gmra.mxu0 %v732
          %v850 = vpop.f32.mrf.mxu0
          %v851 = vadd.f32 %v726, %v850
          %v852 = vpop.f32.mrf.mxu0
          %853 = vmatprep.mubr.f32.mxu0 0.0
          %854 = vmatmul.mubr.f32.gmra.mxu0 %v735
          %v855 = vpop.f32.mrf.mxu0
          %v856 = vadd.f32 %v726, %v855
          %v857 = vpop.f32.mrf.mxu0
          %858 = vmatprep.mubr.f32.mxu0 0.0
          %859 = vmatmul.mubr.f32.gmra.mxu0 %v738
          %v860 = vpop.f32.mrf.mxu0
          %v861 = vadd.f32 %v726, %v860
          %v862 = vpop.f32.mrf.mxu0
          %863 = vmatprep.mubr.f32.mxu0 0.0
          %864 = vmatmul.mubr.f32.gmra.mxu0 %v741
          %v865 = vpop.f32.mrf.mxu0
          %v866 = vadd.f32 %v726, %v865
          %v867 = vpop.f32.mrf.mxu0
          %868 = vmatprep.mubr.f32.mxu0 0.0
          %869 = vmatmul.mubr.f32.gmra.mxu0 %v744
          %v870 = vpop.f32.mrf.mxu0
          %v871 = vadd.f32 %v726, %v870
          %v872 = vpop.f32.mrf.mxu0
          %873 = vmatprep.mubr.f32.mxu0 0.0
          %874 = vmatmul.mubr.f32.gmra.mxu0 %v747
          %v875 = vpop.f32.mrf.mxu0
          %v876 = vadd.f32 %v726, %v875
          %v877 = vpop.f32.mrf.mxu0
          %878 = vmatprep.mubr.f32.mxu0 0.0
          %879 = vmatmul.mubr.f32.gmra.mxu0 %v750
          %v880 = vpop.f32.mrf.mxu0
          %v881 = vadd.f32 %v726, %v880
          %v882 = vpop.f32.mrf.mxu0
          %883 = vmatprep.mubr.f32.mxu0 0.0
          %884 = vmatmul.mubr.f32.gmra.mxu0 %v753
          %v885 = vpop.f32.mrf.mxu0
          %v886 = vadd.f32 %v726, %v885
          %v887 = vpop.f32.mrf.mxu0
          %888 = vmatprep.mubr.f32.mxu0 0.0
          %889 = vmatmul.mubr.f32.gmra.mxu0 %v756
          %v890 = vpop.f32.mrf.mxu0
          %v891 = vadd.f32 %v726, %v890
          %v892 = vpop.f32.mrf.mxu0
          %893 = vmatprep.mubr.f32.mxu0 0.0
          %894 = vmatmul.mubr.f32.gmra.mxu0 %v759
          %v895 = vpop.f32.mrf.mxu0
          %v896 = vadd.f32 %v726, %v895
          %v897 = vpop.f32.mrf.mxu0
          %898 = vmatprep.mubr.f32.mxu0 0.0
          %899 = vmatmul.mubr.f32.gmra.mxu0 %v762
          %v900 = vpop.f32.mrf.mxu0
          %v901 = vadd.f32 %v726, %v900
          %v902 = vpop.f32.mrf.mxu0
          %903 = vmatprep.mubr.f32.mxu0 0.0
          %904 = vmatmul.mubr.f32.gmra.mxu0 %v765
          %v905 = vpop.f32.mrf.mxu0
          %v906 = vadd.f32 %v726, %v905
          %v907 = vpop.f32.mrf.mxu0
          %908 = vmatprep.mubr.f32.mxu0 0.0
          %909 = vmatmul.mubr.f32.gmra.mxu0 %v768
          %v910 = vpop.f32.mrf.mxu0
          %v911 = vadd.f32 %v726, %v910
          %v912 = vpop.f32.mrf.mxu0
          %913 = vmatprep.mubr.f32.mxu0 0.0
          %914 = vmatmul.mubr.f32.gmra.mxu0 %v771
          %v915 = vpop.f32.mrf.mxu0
          %v916 = vadd.f32 %v726, %v915
          %v917 = vpop.f32.mrf.mxu0
          %918 = vmatprep.mubr.f32.mxu0 0.0
          %919 = vmatmul.mubr.f32.gmra.mxu0 %v774
          %v920 = vpop.f32.mrf.mxu0
          %v921 = vadd.f32 %v726, %v920
          %v922 = vpop.f32.mrf.mxu0
          %923 = vdwg.mxu0
          %s924 = scalar_lea.vmem [#allocation2], %s660
          %925 = vst.msk [vmem:[%s924] sm:$0xff] %vm398, %v846
          %926 = vst.msk [vmem:[%s924 + $0x8] sm:$0xff] %vm398, %v851
          %927 = vst.msk [vmem:[%s924 + $0x10] sm:$0xff] %vm398, %v856
          %928 = vst.msk [vmem:[%s924 + $0x18] sm:$0xff] %vm398, %v861
          %929 = vst.msk [vmem:[%s924 + $0x20] sm:$0xff] %vm398, %v866
          %930 = vst.msk [vmem:[%s924 + $0x28] sm:$0xff] %vm398, %v871
          %931 = vst.msk [vmem:[%s924 + $0x30] sm:$0xff] %vm398, %v876
          %932 = vst.msk [vmem:[%s924 + $0x38] sm:$0xff] %vm398, %v881
          %933 = vst.msk [vmem:[%s924 + $0x40] sm:$0xff] %vm398, %v886
          %934 = vst.msk [vmem:[%s924 + $0x48] sm:$0xff] %vm398, %v891
          %935 = vst.msk [vmem:[%s924 + $0x50] sm:$0xff] %vm398, %v896
          %936 = vst.msk [vmem:[%s924 + $0x58] sm:$0xff] %vm398, %v901
          %937 = vst.msk [vmem:[%s924 + $0x60] sm:$0xff] %vm398, %v906
          %938 = vst.msk [vmem:[%s924 + $0x68] sm:$0xff] %vm398, %v911
          %939 = vst.msk [vmem:[%s924 + $0x70] sm:$0xff] %vm398, %v916
          %940 = vst.msk [vmem:[%s924 + $0x78] sm:$0xff] %vm398, %v921
          %s941 = scalar_lea.vmem %s4, 4
          %v942 = vld [vmem:[%s941] sm:$0xf]
          %s943 = scalar_lea.vmem %s5, 1
          %v944 = vld [vmem:[%s943] sm:$0x1]
          %v946 = vlaneseq
          %v947 = vshrl.u32 %v946, 7
          %v948 = vsub.s32 0, %v947
          %v949 = vrot.slane %v944, %v948
          %v952 = vsel %vm402, %v942, 0
          %954 = vmatprep.subr.mxu0 0.0
          %955 = vmatpush1.msra.mxu0 0.0
          %956 = vmatprep.subr.mxu0 0.0
          %957 = vmatpush1.msra.mxu0 0.0
          %958 = vmatprep.subr.mxu0 0.0
          %959 = vmatpush1.msra.mxu0 0.0
          %960 = vmatprep.subr.mxu0 0.0
          %961 = vmatpush1.msra.mxu0 0.0
          %962 = vmatprep.subr.mxu0 0.0
          %963 = vmatpush1.msra.mxu0 0.0
          %964 = vmatprep.subr.mxu0 0.0
          %965 = vmatpush1.msra.mxu0 0.0
          %966 = vmatprep.subr.mxu0 0.0
          %967 = vmatpush1.msra.mxu0 0.0
          %968 = vmatprep.subr.mxu0 0.0
          %969 = vmatpush1.msra.mxu0 0.0
          %970 = vmatprep.subr.mxu0 0.0
          %971 = vmatpush1.msra.mxu0 0.0
          %972 = vmatprep.subr.mxu0 0.0
          %973 = vmatpush1.msra.mxu0 0.0
          %974 = vmatprep.subr.mxu0 0.0
          %975 = vmatpush1.msra.mxu0 0.0
          %976 = vmatprep.subr.mxu0 0.0
          %977 = vmatpush1.msra.mxu0 0.0
          %978 = vmatprep.subr.mxu0 0.0
          %979 = vmatpush1.msra.mxu0 0.0
          %980 = vmatprep.subr.mxu0 0.0
          %981 = vmatpush1.msra.mxu0 0.0
          %982 = vmatprep.subr.mxu0 0.0
          %983 = vmatpush1.msra.mxu0 0.0
          %984 = vmatprep.subr.mxu0 0.0
          %985 = vmatpush1.msra.mxu0 %v952
          %986 = vmatprep.subr.mxu0 0.0
          %987 = vmatpush2.msra.mxu0 0.0
          %988 = vmatprep.subr.mxu0 0.0
          %989 = vmatpush2.msra.mxu0 0.0
          %990 = vmatprep.subr.mxu0 0.0
          %991 = vmatpush2.msra.mxu0 0.0
          %992 = vmatprep.subr.mxu0 0.0
          %993 = vmatpush2.msra.mxu0 0.0
          %994 = vmatprep.subr.mxu0 0.0
          %995 = vmatpush2.msra.mxu0 0.0
          %996 = vmatprep.subr.mxu0 0.0
          %997 = vmatpush2.msra.mxu0 0.0
          %998 = vmatprep.subr.mxu0 0.0
          %999 = vmatpush2.msra.mxu0 0.0
          %1000 = vmatprep.subr.mxu0 0.0
          %1001 = vmatpush2.msra.mxu0 0.0
          %1002 = vmatprep.subr.mxu0 0.0
          %1003 = vmatpush2.msra.mxu0 0.0
          %1004 = vmatprep.subr.mxu0 0.0
          %1005 = vmatpush2.msra.mxu0 0.0
          %1006 = vmatprep.subr.mxu0 0.0
          %1007 = vmatpush2.msra.mxu0 0.0
          %1008 = vmatprep.subr.mxu0 0.0
          %1009 = vmatpush2.msra.mxu0 0.0
          %1010 = vmatprep.subr.mxu0 0.0
          %1011 = vmatpush2.msra.mxu0 0.0
          %1012 = vmatprep.subr.mxu0 0.0
          %1013 = vmatpush2.msra.mxu0 0.0
          %1014 = vmatprep.subr.mxu0 0.0
          %1015 = vmatpush2.msra.mxu0 0.0
          %1016 = vmatprep.subr.mxu0 0.0
          %1017 = vmatpush2.msra.mxu0 0.0
          %1018 = vmatprep.mubr.f32.mxu0 0.0
          %1019 = vmatmul.mubr.f32.gmra.mxu0 %v729
          %v1020 = vpop.f32.mrf.mxu0
          %v1021 = vadd.f32 %v949, %v1020
          %v1022 = vpop.f32.mrf.mxu0
          %1023 = vmatprep.mubr.f32.mxu0 0.0
          %1024 = vmatmul.mubr.f32.gmra.mxu0 %v732
          %v1025 = vpop.f32.mrf.mxu0
          %v1026 = vadd.f32 %v949, %v1025
          %v1027 = vpop.f32.mrf.mxu0
          %1028 = vmatprep.mubr.f32.mxu0 0.0
          %1029 = vmatmul.mubr.f32.gmra.mxu0 %v735
          %v1030 = vpop.f32.mrf.mxu0
          %v1031 = vadd.f32 %v949, %v1030
          %v1032 = vpop.f32.mrf.mxu0
          %1033 = vmatprep.mubr.f32.mxu0 0.0
          %1034 = vmatmul.mubr.f32.gmra.mxu0 %v738
          %v1035 = vpop.f32.mrf.mxu0
          %v1036 = vadd.f32 %v949, %v1035
          %v1037 = vpop.f32.mrf.mxu0
          %1038 = vmatprep.mubr.f32.mxu0 0.0
          %1039 = vmatmul.mubr.f32.gmra.mxu0 %v741
          %v1040 = vpop.f32.mrf.mxu0
          %v1041 = vadd.f32 %v949, %v1040
          %v1042 = vpop.f32.mrf.mxu0
          %1043 = vmatprep.mubr.f32.mxu0 0.0
          %1044 = vmatmul.mubr.f32.gmra.mxu0 %v744
          %v1045 = vpop.f32.mrf.mxu0
          %v1046 = vadd.f32 %v949, %v1045
          %v1047 = vpop.f32.mrf.mxu0
          %1048 = vmatprep.mubr.f32.mxu0 0.0
          %1049 = vmatmul.mubr.f32.gmra.mxu0 %v747
          %v1050 = vpop.f32.mrf.mxu0
          %v1051 = vadd.f32 %v949, %v1050
          %v1052 = vpop.f32.mrf.mxu0
          %1053 = vmatprep.mubr.f32.mxu0 0.0
          %1054 = vmatmul.mubr.f32.gmra.mxu0 %v750
          %v1055 = vpop.f32.mrf.mxu0
          %v1056 = vadd.f32 %v949, %v1055
          %v1057 = vpop.f32.mrf.mxu0
          %1058 = vmatprep.mubr.f32.mxu0 0.0
          %1059 = vmatmul.mubr.f32.gmra.mxu0 %v753
          %v1060 = vpop.f32.mrf.mxu0
          %v1061 = vadd.f32 %v949, %v1060
          %v1062 = vpop.f32.mrf.mxu0
          %1063 = vmatprep.mubr.f32.mxu0 0.0
          %1064 = vmatmul.mubr.f32.gmra.mxu0 %v756
          %v1065 = vpop.f32.mrf.mxu0
          %v1066 = vadd.f32 %v949, %v1065
          %v1067 = vpop.f32.mrf.mxu0
          %1068 = vmatprep.mubr.f32.mxu0 0.0
          %1069 = vmatmul.mubr.f32.gmra.mxu0 %v759
          %v1070 = vpop.f32.mrf.mxu0
          %v1071 = vadd.f32 %v949, %v1070
          %v1072 = vpop.f32.mrf.mxu0
          %1073 = vmatprep.mubr.f32.mxu0 0.0
          %1074 = vmatmul.mubr.f32.gmra.mxu0 %v762
          %v1075 = vpop.f32.mrf.mxu0
          %v1076 = vadd.f32 %v949, %v1075
          %v1077 = vpop.f32.mrf.mxu0
          %1078 = vmatprep.mubr.f32.mxu0 0.0
          %1079 = vmatmul.mubr.f32.gmra.mxu0 %v765
          %v1080 = vpop.f32.mrf.mxu0
          %v1081 = vadd.f32 %v949, %v1080
          %v1082 = vpop.f32.mrf.mxu0
          %1083 = vmatprep.mubr.f32.mxu0 0.0
          %1084 = vmatmul.mubr.f32.gmra.mxu0 %v768
          %v1085 = vpop.f32.mrf.mxu0
          %v1086 = vadd.f32 %v949, %v1085
          %v1087 = vpop.f32.mrf.mxu0
          %1088 = vmatprep.mubr.f32.mxu0 0.0
          %1089 = vmatmul.mubr.f32.gmra.mxu0 %v771
          %v1090 = vpop.f32.mrf.mxu0
          %v1091 = vadd.f32 %v949, %v1090
          %v1092 = vpop.f32.mrf.mxu0
          %1093 = vmatprep.mubr.f32.mxu0 0.0
          %1094 = vmatmul.mubr.f32.gmra.mxu0 %v774
          %v1095 = vpop.f32.mrf.mxu0
          %v1096 = vadd.f32 %v949, %v1095
          %v1097 = vpop.f32.mrf.mxu0
          %1098 = vdwg.mxu0
          %s1099 = sadd.s32 %s660, 256
          %s1100 = scalar_lea.vmem [#allocation2], %s1099
          %1101 = vst.msk [vmem:[%s1100] sm:$0xff] %vm398, %v1021
          %1102 = vst.msk [vmem:[%s1100 + $0x8] sm:$0xff] %vm398, %v1026
          %1103 = vst.msk [vmem:[%s1100 + $0x10] sm:$0xff] %vm398, %v1031
          %1104 = vst.msk [vmem:[%s1100 + $0x18] sm:$0xff] %vm398, %v1036
          %1105 = vst.msk [vmem:[%s1100 + $0x20] sm:$0xff] %vm398, %v1041
          %1106 = vst.msk [vmem:[%s1100 + $0x28] sm:$0xff] %vm398, %v1046
          %1107 = vst.msk [vmem:[%s1100 + $0x30] sm:$0xff] %vm398, %v1051
          %1108 = vst.msk [vmem:[%s1100 + $0x38] sm:$0xff] %vm398, %v1056
          %1109 = vst.msk [vmem:[%s1100 + $0x40] sm:$0xff] %vm398, %v1061
          %1110 = vst.msk [vmem:[%s1100 + $0x48] sm:$0xff] %vm398, %v1066
          %1111 = vst.msk [vmem:[%s1100 + $0x50] sm:$0xff] %vm398, %v1071
          %1112 = vst.msk [vmem:[%s1100 + $0x58] sm:$0xff] %vm398, %v1076
          %1113 = vst.msk [vmem:[%s1100 + $0x60] sm:$0xff] %vm398, %v1081
          %1114 = vst.msk [vmem:[%s1100 + $0x68] sm:$0xff] %vm398, %v1086
          %1115 = vst.msk [vmem:[%s1100 + $0x70] sm:$0xff] %vm398, %v1091
          %1116 = vst.msk [vmem:[%s1100 + $0x78] sm:$0xff] %vm398, %v1096
          %s1117 = scalar_lea.vmem %s4, 8
          %v1118 = vld [vmem:[%s1117] sm:$0xf]
          %s1119 = scalar_lea.vmem %s5, 2
          %v1120 = vld [vmem:[%s1119] sm:$0x1]
          %v1122 = vlaneseq
          %v1123 = vshrl.u32 %v1122, 7
          %v1124 = vsub.s32 0, %v1123
          %v1125 = vrot.slane %v1120, %v1124
          %v1128 = vsel %vm402, %v1118, 0
          %1130 = vmatprep.subr.mxu0 0.0
          %1131 = vmatpush1.msra.mxu0 0.0
          %1132 = vmatprep.subr.mxu0 0.0
          %1133 = vmatpush1.msra.mxu0 0.0
          %1134 = vmatprep.subr.mxu0 0.0
          %1135 = vmatpush1.msra.mxu0 0.0
          %1136 = vmatprep.subr.mxu0 0.0
          %1137 = vmatpush1.msra.mxu0 0.0
          %1138 = vmatprep.subr.mxu0 0.0
          %1139 = vmatpush1.msra.mxu0 0.0
          %1140 = vmatprep.subr.mxu0 0.0
          %1141 = vmatpush1.msra.mxu0 0.0
          %1142 = vmatprep.subr.mxu0 0.0
          %1143 = vmatpush1.msra.mxu0 0.0
          %1144 = vmatprep.subr.mxu0 0.0
          %1145 = vmatpush1.msra.mxu0 0.0
          %1146 = vmatprep.subr.mxu0 0.0
          %1147 = vmatpush1.msra.mxu0 0.0
          %1148 = vmatprep.subr.mxu0 0.0
          %1149 = vmatpush1.msra.mxu0 0.0
          %1150 = vmatprep.subr.mxu0 0.0
          %1151 = vmatpush1.msra.mxu0 0.0
          %1152 = vmatprep.subr.mxu0 0.0
          %1153 = vmatpush1.msra.mxu0 0.0
          %1154 = vmatprep.subr.mxu0 0.0
          %1155 = vmatpush1.msra.mxu0 0.0
          %1156 = vmatprep.subr.mxu0 0.0
          %1157 = vmatpush1.msra.mxu0 0.0
          %1158 = vmatprep.subr.mxu0 0.0
          %1159 = vmatpush1.msra.mxu0 0.0
          %1160 = vmatprep.subr.mxu0 0.0
          %1161 = vmatpush1.msra.mxu0 %v1128
          %1162 = vmatprep.subr.mxu0 0.0
          %1163 = vmatpush2.msra.mxu0 0.0
          %1164 = vmatprep.subr.mxu0 0.0
          %1165 = vmatpush2.msra.mxu0 0.0
          %1166 = vmatprep.subr.mxu0 0.0
          %1167 = vmatpush2.msra.mxu0 0.0
          %1168 = vmatprep.subr.mxu0 0.0
          %1169 = vmatpush2.msra.mxu0 0.0
          %1170 = vmatprep.subr.mxu0 0.0
          %1171 = vmatpush2.msra.mxu0 0.0
          %1172 = vmatprep.subr.mxu0 0.0
          %1173 = vmatpush2.msra.mxu0 0.0
          %1174 = vmatprep.subr.mxu0 0.0
          %1175 = vmatpush2.msra.mxu0 0.0
          %1176 = vmatprep.subr.mxu0 0.0
          %1177 = vmatpush2.msra.mxu0 0.0
          %1178 = vmatprep.subr.mxu0 0.0
          %1179 = vmatpush2.msra.mxu0 0.0
          %1180 = vmatprep.subr.mxu0 0.0
          %1181 = vmatpush2.msra.mxu0 0.0
          %1182 = vmatprep.subr.mxu0 0.0
          %1183 = vmatpush2.msra.mxu0 0.0
          %1184 = vmatprep.subr.mxu0 0.0
          %1185 = vmatpush2.msra.mxu0 0.0
          %1186 = vmatprep.subr.mxu0 0.0
          %1187 = vmatpush2.msra.mxu0 0.0
          %1188 = vmatprep.subr.mxu0 0.0
          %1189 = vmatpush2.msra.mxu0 0.0
          %1190 = vmatprep.subr.mxu0 0.0
          %1191 = vmatpush2.msra.mxu0 0.0
          %1192 = vmatprep.subr.mxu0 0.0
          %1193 = vmatpush2.msra.mxu0 0.0
          %1194 = vmatprep.mubr.f32.mxu0 0.0
          %1195 = vmatmul.mubr.f32.gmra.mxu0 %v729
          %v1196 = vpop.f32.mrf.mxu0
          %v1197 = vadd.f32 %v1125, %v1196
          %v1198 = vpop.f32.mrf.mxu0
          %1199 = vmatprep.mubr.f32.mxu0 0.0
          %1200 = vmatmul.mubr.f32.gmra.mxu0 %v732
          %v1201 = vpop.f32.mrf.mxu0
          %v1202 = vadd.f32 %v1125, %v1201
          %v1203 = vpop.f32.mrf.mxu0
          %1204 = vmatprep.mubr.f32.mxu0 0.0
          %1205 = vmatmul.mubr.f32.gmra.mxu0 %v735
          %v1206 = vpop.f32.mrf.mxu0
          %v1207 = vadd.f32 %v1125, %v1206
          %v1208 = vpop.f32.mrf.mxu0
          %1209 = vmatprep.mubr.f32.mxu0 0.0
          %1210 = vmatmul.mubr.f32.gmra.mxu0 %v738
          %v1211 = vpop.f32.mrf.mxu0
          %v1212 = vadd.f32 %v1125, %v1211
          %v1213 = vpop.f32.mrf.mxu0
          %1214 = vmatprep.mubr.f32.mxu0 0.0
          %1215 = vmatmul.mubr.f32.gmra.mxu0 %v741
          %v1216 = vpop.f32.mrf.mxu0
          %v1217 = vadd.f32 %v1125, %v1216
          %v1218 = vpop.f32.mrf.mxu0
          %1219 = vmatprep.mubr.f32.mxu0 0.0
          %1220 = vmatmul.mubr.f32.gmra.mxu0 %v744
          %v1221 = vpop.f32.mrf.mxu0
          %v1222 = vadd.f32 %v1125, %v1221
          %v1223 = vpop.f32.mrf.mxu0
          %1224 = vmatprep.mubr.f32.mxu0 0.0
          %1225 = vmatmul.mubr.f32.gmra.mxu0 %v747
          %v1226 = vpop.f32.mrf.mxu0
          %v1227 = vadd.f32 %v1125, %v1226
          %v1228 = vpop.f32.mrf.mxu0
          %1229 = vmatprep.mubr.f32.mxu0 0.0
          %1230 = vmatmul.mubr.f32.gmra.mxu0 %v750
          %v1231 = vpop.f32.mrf.mxu0
          %v1232 = vadd.f32 %v1125, %v1231
          %v1233 = vpop.f32.mrf.mxu0
          %1234 = vmatprep.mubr.f32.mxu0 0.0
          %1235 = vmatmul.mubr.f32.gmra.mxu0 %v753
          %v1236 = vpop.f32.mrf.mxu0
          %v1237 = vadd.f32 %v1125, %v1236
          %v1238 = vpop.f32.mrf.mxu0
          %1239 = vmatprep.mubr.f32.mxu0 0.0
          %1240 = vmatmul.mubr.f32.gmra.mxu0 %v756
          %v1241 = vpop.f32.mrf.mxu0
          %v1242 = vadd.f32 %v1125, %v1241
          %v1243 = vpop.f32.mrf.mxu0
          %1244 = vmatprep.mubr.f32.mxu0 0.0
          %1245 = vmatmul.mubr.f32.gmra.mxu0 %v759
          %v1246 = vpop.f32.mrf.mxu0
          %v1247 = vadd.f32 %v1125, %v1246
          %v1248 = vpop.f32.mrf.mxu0
          %1249 = vmatprep.mubr.f32.mxu0 0.0
          %1250 = vmatmul.mubr.f32.gmra.mxu0 %v762
          %v1251 = vpop.f32.mrf.mxu0
          %v1252 = vadd.f32 %v1125, %v1251
          %v1253 = vpop.f32.mrf.mxu0
          %1254 = vmatprep.mubr.f32.mxu0 0.0
          %1255 = vmatmul.mubr.f32.gmra.mxu0 %v765
          %v1256 = vpop.f32.mrf.mxu0
          %v1257 = vadd.f32 %v1125, %v1256
          %v1258 = vpop.f32.mrf.mxu0
          %1259 = vmatprep.mubr.f32.mxu0 0.0
          %1260 = vmatmul.mubr.f32.gmra.mxu0 %v768
          %v1261 = vpop.f32.mrf.mxu0
          %v1262 = vadd.f32 %v1125, %v1261
          %v1263 = vpop.f32.mrf.mxu0
          %1264 = vmatprep.mubr.f32.mxu0 0.0
          %1265 = vmatmul.mubr.f32.gmra.mxu0 %v771
          %v1266 = vpop.f32.mrf.mxu0
          %v1267 = vadd.f32 %v1125, %v1266
          %v1268 = vpop.f32.mrf.mxu0
          %1269 = vmatprep.mubr.f32.mxu0 0.0
          %1270 = vmatmul.mubr.f32.gmra.mxu0 %v774
          %v1271 = vpop.f32.mrf.mxu0
          %v1272 = vadd.f32 %v1125, %v1271
          %v1273 = vpop.f32.mrf.mxu0
          %1274 = vdwg.mxu0
          %s1275 = sadd.s32 %s660, 512
          %s1276 = scalar_lea.vmem [#allocation2], %s1275
          %1277 = vst.msk [vmem:[%s1276] sm:$0xff] %vm398, %v1197
          %1278 = vst.msk [vmem:[%s1276 + $0x8] sm:$0xff] %vm398, %v1202
          %1279 = vst.msk [vmem:[%s1276 + $0x10] sm:$0xff] %vm398, %v1207
          %1280 = vst.msk [vmem:[%s1276 + $0x18] sm:$0xff] %vm398, %v1212
          %1281 = vst.msk [vmem:[%s1276 + $0x20] sm:$0xff] %vm398, %v1217
          %1282 = vst.msk [vmem:[%s1276 + $0x28] sm:$0xff] %vm398, %v1222
          %1283 = vst.msk [vmem:[%s1276 + $0x30] sm:$0xff] %vm398, %v1227
          %1284 = vst.msk [vmem:[%s1276 + $0x38] sm:$0xff] %vm398, %v1232
          %1285 = vst.msk [vmem:[%s1276 + $0x40] sm:$0xff] %vm398, %v1237
          %1286 = vst.msk [vmem:[%s1276 + $0x48] sm:$0xff] %vm398, %v1242
          %1287 = vst.msk [vmem:[%s1276 + $0x50] sm:$0xff] %vm398, %v1247
          %1288 = vst.msk [vmem:[%s1276 + $0x58] sm:$0xff] %vm398, %v1252
          %1289 = vst.msk [vmem:[%s1276 + $0x60] sm:$0xff] %vm398, %v1257
          %1290 = vst.msk [vmem:[%s1276 + $0x68] sm:$0xff] %vm398, %v1262
          %1291 = vst.msk [vmem:[%s1276 + $0x70] sm:$0xff] %vm398, %v1267
          %1292 = vst.msk [vmem:[%s1276 + $0x78] sm:$0xff] %vm398, %v1272
        $region75: #{tpu_custom_call.1} parent=55 // loop_footer
          %s659 = sadd.s32 1, %s655
        $region76: #{tpu_custom_call.1} parent=55 // loop_footer_branch
          %654 = sbr.rel target = $region72
        $region77: #{tpu_custom_call.1} parent=55 // loop_exit
          _
        %s1293 = scalar_lea.vmem [#allocation2], 256
        %v1294 = vld [vmem:[%s1293] sm:$0xff]
        %v1295 = vld [vmem:[%s1293 + $0x8] sm:$0xff]
        %v1296 = vld [vmem:[%s1293 + $0x10] sm:$0xff]
        %v1297 = vld [vmem:[%s1293 + $0x18] sm:$0xff]
        %v1298 = vld [vmem:[%s1293 + $0x20] sm:$0xff]
        %v1299 = vld [vmem:[%s1293 + $0x28] sm:$0xff]
        %v1300 = vld [vmem:[%s1293 + $0x30] sm:$0xff]
        %v1301 = vld [vmem:[%s1293 + $0x38] sm:$0xff]
        %v1302 = vld [vmem:[%s1293 + $0x40] sm:$0xff]
        %v1303 = vld [vmem:[%s1293 + $0x48] sm:$0xff]
        %v1304 = vld [vmem:[%s1293 + $0x50] sm:$0xff]
        %v1305 = vld [vmem:[%s1293 + $0x58] sm:$0xff]
        %v1306 = vld [vmem:[%s1293 + $0x60] sm:$0xff]
        %v1307 = vld [vmem:[%s1293 + $0x68] sm:$0xff]
        %v1308 = vld [vmem:[%s1293 + $0x70] sm:$0xff]
        %v1309 = vld [vmem:[%s1293 + $0x78] sm:$0xff]
        %v1310 = vld [vmem:[%s1293 + $0x80] sm:$0xff]
        %v1311 = vld [vmem:[%s1293 + $0x88] sm:$0xff]
        %v1312 = vld [vmem:[%s1293 + $0x90] sm:$0xff]
        %v1313 = vld [vmem:[%s1293 + $0x98] sm:$0xff]
        %v1314 = vld [vmem:[%s1293 + $0xa0] sm:$0xff]
        %v1315 = vld [vmem:[%s1293 + $0xa8] sm:$0xff]
        %v1316 = vld [vmem:[%s1293 + $0xb0] sm:$0xff]
        %v1317 = vld [vmem:[%s1293 + $0xb8] sm:$0xff]
        %v1318 = vld [vmem:[%s1293 + $0xc0] sm:$0xff]
        %v1319 = vld [vmem:[%s1293 + $0xc8] sm:$0xff]
        %v1320 = vld [vmem:[%s1293 + $0xd0] sm:$0xff]
        %v1321 = vld [vmem:[%s1293 + $0xd8] sm:$0xff]
        %v1322 = vld [vmem:[%s1293 + $0xe0] sm:$0xff]
        %v1323 = vld [vmem:[%s1293 + $0xe8] sm:$0xff]
        %v1324 = vld [vmem:[%s1293 + $0xf0] sm:$0xff]
        %v1325 = vld [vmem:[%s1293 + $0xf8] sm:$0xff]
        %1326 = vxpose.xlu0.b32.start [1/16] %v1294, 128
        %1327 = vxpose.xlu0.b32.cont [2/16] %v1295, 128
        %1328 = vxpose.xlu0.b32.cont [3/16] %v1296, 128
        %1329 = vxpose.xlu0.b32.cont [4/16] %v1297, 128
        %1330 = vxpose.xlu0.b32.cont [5/16] %v1298, 128
        %1331 = vxpose.xlu0.b32.cont [6/16] %v1299, 128
        %1332 = vxpose.xlu0.b32.cont [7/16] %v1300, 128
        %1333 = vxpose.xlu0.b32.cont [8/16] %v1301, 128
        %1334 = vxpose.xlu0.b32.cont [9/16] %v1302, 128
        %1335 = vxpose.xlu0.b32.cont [10/16] %v1303, 128
        %1336 = vxpose.xlu0.b32.cont [11/16] %v1304, 128
        %1337 = vxpose.xlu0.b32.cont [12/16] %v1305, 128
        %1338 = vxpose.xlu0.b32.cont [13/16] %v1306, 128
        %1339 = vxpose.xlu0.b32.cont [14/16] %v1307, 128
        %1340 = vxpose.xlu0.b32.cont [15/16] %v1308, 128
        %1341 = vxpose.xlu0.b32.end [16/16] %v1309, 128
        %v1342 = vpop.trf.xlu0
        %v1343 = vpop.trf.xlu0
        %v1344 = vpop.trf.xlu0
        %v1345 = vpop.trf.xlu0
        %v1346 = vpop.trf.xlu0
        %v1347 = vpop.trf.xlu0
        %v1348 = vpop.trf.xlu0
        %v1349 = vpop.trf.xlu0
        %v1350 = vpop.trf.xlu0
        %v1351 = vpop.trf.xlu0
        %v1352 = vpop.trf.xlu0
        %v1353 = vpop.trf.xlu0
        %v1354 = vpop.trf.xlu0
        %v1355 = vpop.trf.xlu0
        %v1356 = vpop.trf.xlu0
        %v1357 = vpop.trf.xlu0
        %1358 = vxpose.xlu0.b32.start [1/16] %v1310, 128
        %1359 = vxpose.xlu0.b32.cont [2/16] %v1311, 128
        %1360 = vxpose.xlu0.b32.cont [3/16] %v1312, 128
        %1361 = vxpose.xlu0.b32.cont [4/16] %v1313, 128
        %1362 = vxpose.xlu0.b32.cont [5/16] %v1314, 128
        %1363 = vxpose.xlu0.b32.cont [6/16] %v1315, 128
        %1364 = vxpose.xlu0.b32.cont [7/16] %v1316, 128
        %1365 = vxpose.xlu0.b32.cont [8/16] %v1317, 128
        %1366 = vxpose.xlu0.b32.cont [9/16] %v1318, 128
        %1367 = vxpose.xlu0.b32.cont [10/16] %v1319, 128
        %1368 = vxpose.xlu0.b32.cont [11/16] %v1320, 128
        %1369 = vxpose.xlu0.b32.cont [12/16] %v1321, 128
        %1370 = vxpose.xlu0.b32.cont [13/16] %v1322, 128
        %1371 = vxpose.xlu0.b32.cont [14/16] %v1323, 128
        %1372 = vxpose.xlu0.b32.cont [15/16] %v1324, 128
        %1373 = vxpose.xlu0.b32.end [16/16] %v1325, 128
        %v1374 = vpop.trf.xlu0
        %v1375 = vpop.trf.xlu0
        %v1376 = vpop.trf.xlu0
        %v1377 = vpop.trf.xlu0
        %v1378 = vpop.trf.xlu0
        %v1379 = vpop.trf.xlu0
        %v1380 = vpop.trf.xlu0
        %v1381 = vpop.trf.xlu0
        %v1382 = vpop.trf.xlu0
        %v1383 = vpop.trf.xlu0
        %v1384 = vpop.trf.xlu0
        %v1385 = vpop.trf.xlu0
        %v1386 = vpop.trf.xlu0
        %v1387 = vpop.trf.xlu0
        %v1388 = vpop.trf.xlu0
        %v1389 = vpop.trf.xlu0
        %v1392 = vcombine.low %v1342, %v1374
        %1394 = vst [vmem:[#allocation3] sm:$0xff] %v1392
      $region56: #{tpu_custom_call.1} parent=51 // pred_fallthru
        _
      %s1395 = smul.u32 %s24, 128
      %s1396 = scalar_lea.vmem %s318, %s1395
      %v1397 = vld [vmem:[%s1396] sm:$0xff]
      %v1398 = vld [vmem:[%s1396 + $0x8] sm:$0xff]
      %v1399 = vld [vmem:[%s1396 + $0x10] sm:$0xff]
      %v1400 = vld [vmem:[%s1396 + $0x18] sm:$0xff]
      %v1401 = vld [vmem:[%s1396 + $0x20] sm:$0xff]
      %v1402 = vld [vmem:[%s1396 + $0x28] sm:$0xff]
      %v1403 = vld [vmem:[%s1396 + $0x30] sm:$0xff]
      %v1404 = vld [vmem:[%s1396 + $0x38] sm:$0xff]
      %v1405 = vld [vmem:[%s1396 + $0x40] sm:$0xff]
      %v1406 = vld [vmem:[%s1396 + $0x48] sm:$0xff]
      %v1407 = vld [vmem:[%s1396 + $0x50] sm:$0xff]
      %v1408 = vld [vmem:[%s1396 + $0x58] sm:$0xff]
      %v1409 = vld [vmem:[%s1396 + $0x60] sm:$0xff]
      %v1410 = vld [vmem:[%s1396 + $0x68] sm:$0xff]
      %v1411 = vld [vmem:[%s1396 + $0x70] sm:$0xff]
      %v1412 = vld [vmem:[%s1396 + $0x78] sm:$0xff]
      %v1413 = vld [vmem:[%s7] sm:$0x1]
      %v1415 = vlaneseq
      %v1416 = vshrl.u32 %v1415, 7
      %v1417 = vsub.s32 0, %v1416
      %v1418 = vrot.slane %v1413, %v1417
      %v1420 = vadd.f32 %v1397, %v1418
      %v1421 = vadd.f32 %v1398, %v1418
      %v1422 = vadd.f32 %v1399, %v1418
      %v1423 = vadd.f32 %v1400, %v1418
      %v1424 = vadd.f32 %v1401, %v1418
      %v1425 = vadd.f32 %v1402, %v1418
      %v1426 = vadd.f32 %v1403, %v1418
      %v1427 = vadd.f32 %v1404, %v1418
      %v1428 = vadd.f32 %v1405, %v1418
      %v1429 = vadd.f32 %v1406, %v1418
      %v1430 = vadd.f32 %v1407, %v1418
      %v1431 = vadd.f32 %v1408, %v1418
      %v1432 = vadd.f32 %v1409, %v1418
      %v1433 = vadd.f32 %v1410, %v1418
      %v1434 = vadd.f32 %v1411, %v1418
      %v1435 = vadd.f32 %v1412, %v1418
      %s1436 = scalar_lea.vmem [#allocation2], %s1395
      %v1437 = vld [vmem:[%s1436] sm:$0xff]
      %v1438 = vld [vmem:[%s1436 + $0x8] sm:$0xff]
      %v1439 = vld [vmem:[%s1436 + $0x10] sm:$0xff]
      %v1440 = vld [vmem:[%s1436 + $0x18] sm:$0xff]
      %v1441 = vld [vmem:[%s1436 + $0x20] sm:$0xff]
      %v1442 = vld [vmem:[%s1436 + $0x28] sm:$0xff]
      %v1443 = vld [vmem:[%s1436 + $0x30] sm:$0xff]
      %v1444 = vld [vmem:[%s1436 + $0x38] sm:$0xff]
      %v1445 = vld [vmem:[%s1436 + $0x40] sm:$0xff]
      %v1446 = vld [vmem:[%s1436 + $0x48] sm:$0xff]
      %v1447 = vld [vmem:[%s1436 + $0x50] sm:$0xff]
      %v1448 = vld [vmem:[%s1436 + $0x58] sm:$0xff]
      %v1449 = vld [vmem:[%s1436 + $0x60] sm:$0xff]
      %v1450 = vld [vmem:[%s1436 + $0x68] sm:$0xff]
      %v1451 = vld [vmem:[%s1436 + $0x70] sm:$0xff]
      %v1452 = vld [vmem:[%s1436 + $0x78] sm:$0xff]
      %v1453 = vld [vmem:[#allocation3] sm:$0xff]
      %v1455 = vcombine.high %v1453, %v1453
      %vm1456 = vcmask 31744
      %v1458 = vsel %vm1456, %v1437, 0
      %v1461 = vsel %vm1456, %v1438, 0
      %v1464 = vsel %vm1456, %v1439, 0
      %v1467 = vsel %vm1456, %v1440, 0
      %v1470 = vsel %vm1456, %v1441, 0
      %v1473 = vsel %vm1456, %v1442, 0
      %v1476 = vsel %vm1456, %v1443, 0
      %v1479 = vsel %vm1456, %v1444, 0
      %v1482 = vsel %vm1456, %v1445, 0
      %v1485 = vsel %vm1456, %v1446, 0
      %v1488 = vsel %vm1456, %v1447, 0
      %v1491 = vsel %vm1456, %v1448, 0
      %v1494 = vsel %vm1456, %v1449, 0
      %v1497 = vsel %vm1456, %v1450, 0
      %v1500 = vsel %vm1456, %v1451, 0
      %v1503 = vsel %vm1456, %v1452, 0
      %vm1505 = vcmask 1043456
      %v1506 = vsel %vm1505, %v1453, 0
      %v1508 = vsel %vm1505, %v1455, 0
      %1510 = vmatprep.subr.mxu0 0.0
      %1511 = vmatpush1.msra.mxu0 0.0
      %1512 = vmatprep.subr.mxu0 0.0
      %1513 = vmatpush1.msra.mxu0 0.0
      %1514 = vmatprep.subr.mxu0 0.0
      %1515 = vmatpush1.msra.mxu0 0.0
      %1516 = vmatprep.subr.mxu0 0.0
      %1517 = vmatpush1.msra.mxu0 0.0
      %1518 = vmatprep.subr.mxu0 0.0
      %1519 = vmatpush1.msra.mxu0 0.0
      %1520 = vmatprep.subr.mxu0 0.0
      %1521 = vmatpush1.msra.mxu0 0.0
      %1522 = vmatprep.subr.mxu0 0.0
      %1523 = vmatpush1.msra.mxu0 0.0
      %1524 = vmatprep.subr.mxu0 0.0
      %1525 = vmatpush1.msra.mxu0 0.0
      %1526 = vmatprep.subr.mxu0 0.0
      %1527 = vmatpush1.msra.mxu0 0.0
      %1528 = vmatprep.subr.mxu0 0.0
      %1529 = vmatpush1.msra.mxu0 0.0
      %1530 = vmatprep.subr.mxu0 0.0
      %1531 = vmatpush1.msra.mxu0 0.0
      %1532 = vmatprep.subr.mxu0 0.0
      %1533 = vmatpush1.msra.mxu0 0.0
      %1534 = vmatprep.subr.mxu0 0.0
      %1535 = vmatpush1.msra.mxu0 0.0
      %1536 = vmatprep.subr.mxu0 0.0
      %1537 = vmatpush1.msra.mxu0 0.0
      %1538 = vmatprep.subr.mxu0 0.0
      %1539 = vmatpush1.msra.mxu0 0.0
      %1540 = vmatprep.subr.mxu0 %v1508
      %1541 = vmatpush1.msra.mxu0 %v1506
      %1542 = vmatprep.subr.mxu0 0.0
      %1543 = vmatpush2.msra.mxu0 0.0
      %1544 = vmatprep.subr.mxu0 0.0
      %1545 = vmatpush2.msra.mxu0 0.0
      %1546 = vmatprep.subr.mxu0 0.0
      %1547 = vmatpush2.msra.mxu0 0.0
      %1548 = vmatprep.subr.mxu0 0.0
      %1549 = vmatpush2.msra.mxu0 0.0
      %1550 = vmatprep.subr.mxu0 0.0
      %1551 = vmatpush2.msra.mxu0 0.0
      %1552 = vmatprep.subr.mxu0 0.0
      %1553 = vmatpush2.msra.mxu0 0.0
      %1554 = vmatprep.subr.mxu0 0.0
      %1555 = vmatpush2.msra.mxu0 0.0
      %1556 = vmatprep.subr.mxu0 0.0
      %1557 = vmatpush2.msra.mxu0 0.0
      %1558 = vmatprep.subr.mxu0 0.0
      %1559 = vmatpush2.msra.mxu0 0.0
      %1560 = vmatprep.subr.mxu0 0.0
      %1561 = vmatpush2.msra.mxu0 0.0
      %1562 = vmatprep.subr.mxu0 0.0
      %1563 = vmatpush2.msra.mxu0 0.0
      %1564 = vmatprep.subr.mxu0 0.0
      %1565 = vmatpush2.msra.mxu0 0.0
      %1566 = vmatprep.subr.mxu0 0.0
      %1567 = vmatpush2.msra.mxu0 0.0
      %1568 = vmatprep.subr.mxu0 0.0
      %1569 = vmatpush2.msra.mxu0 0.0
      %1570 = vmatprep.subr.mxu0 0.0
      %1571 = vmatpush2.msra.mxu0 0.0
      %1572 = vmatprep.subr.mxu0 0.0
      %1573 = vmatpush2.msra.mxu0 0.0
      %1574 = vmatprep.mubr.f32.mxu0 0.0
      %1575 = vmatmul.mubr.f32.gmra.mxu0 %v1458
      %v1576 = vpop.f32.mrf.mxu0
      %v1577 = vadd.f32 0.0, %v1576
      %v1578 = vpop.f32.mrf.mxu0
      %v1579 = vadd.f32 0.0, %v1578
      %1580 = vmatprep.mubr.f32.mxu0 0.0
      %1581 = vmatmul.mubr.f32.gmra.mxu0 %v1461
      %v1582 = vpop.f32.mrf.mxu0
      %v1583 = vadd.f32 0.0, %v1582
      %v1584 = vpop.f32.mrf.mxu0
      %v1585 = vadd.f32 0.0, %v1584
      %1586 = vmatprep.mubr.f32.mxu0 0.0
      %1587 = vmatmul.mubr.f32.gmra.mxu0 %v1464
      %v1588 = vpop.f32.mrf.mxu0
      %v1589 = vadd.f32 0.0, %v1588
      %v1590 = vpop.f32.mrf.mxu0
      %v1591 = vadd.f32 0.0, %v1590
      %1592 = vmatprep.mubr.f32.mxu0 0.0
      %1593 = vmatmul.mubr.f32.gmra.mxu0 %v1467
      %v1594 = vpop.f32.mrf.mxu0
      %v1595 = vadd.f32 0.0, %v1594
      %v1596 = vpop.f32.mrf.mxu0
      %v1597 = vadd.f32 0.0, %v1596
      %1598 = vmatprep.mubr.f32.mxu0 0.0
      %1599 = vmatmul.mubr.f32.gmra.mxu0 %v1470
      %v1600 = vpop.f32.mrf.mxu0
      %v1601 = vadd.f32 0.0, %v1600
      %v1602 = vpop.f32.mrf.mxu0
      %v1603 = vadd.f32 0.0, %v1602
      %1604 = vmatprep.mubr.f32.mxu0 0.0
      %1605 = vmatmul.mubr.f32.gmra.mxu0 %v1473
      %v1606 = vpop.f32.mrf.mxu0
      %v1607 = vadd.f32 0.0, %v1606
      %v1608 = vpop.f32.mrf.mxu0
      %v1609 = vadd.f32 0.0, %v1608
      %1610 = vmatprep.mubr.f32.mxu0 0.0
      %1611 = vmatmul.mubr.f32.gmra.mxu0 %v1476
      %v1612 = vpop.f32.mrf.mxu0
      %v1613 = vadd.f32 0.0, %v1612
      %v1614 = vpop.f32.mrf.mxu0
      %v1615 = vadd.f32 0.0, %v1614
      %1616 = vmatprep.mubr.f32.mxu0 0.0
      %1617 = vmatmul.mubr.f32.gmra.mxu0 %v1479
      %v1618 = vpop.f32.mrf.mxu0
      %v1619 = vadd.f32 0.0, %v1618
      %v1620 = vpop.f32.mrf.mxu0
      %v1621 = vadd.f32 0.0, %v1620
      %1622 = vmatprep.mubr.f32.mxu0 0.0
      %1623 = vmatmul.mubr.f32.gmra.mxu0 %v1482
      %v1624 = vpop.f32.mrf.mxu0
      %v1625 = vadd.f32 0.0, %v1624
      %v1626 = vpop.f32.mrf.mxu0
      %v1627 = vadd.f32 0.0, %v1626
      %1628 = vmatprep.mubr.f32.mxu0 0.0
      %1629 = vmatmul.mubr.f32.gmra.mxu0 %v1485
      %v1630 = vpop.f32.mrf.mxu0
      %v1631 = vadd.f32 0.0, %v1630
      %v1632 = vpop.f32.mrf.mxu0
      %v1633 = vadd.f32 0.0, %v1632
      %1634 = vmatprep.mubr.f32.mxu0 0.0
      %1635 = vmatmul.mubr.f32.gmra.mxu0 %v1488
      %v1636 = vpop.f32.mrf.mxu0
      %v1637 = vadd.f32 0.0, %v1636
      %v1638 = vpop.f32.mrf.mxu0
      %v1639 = vadd.f32 0.0, %v1638
      %1640 = vmatprep.mubr.f32.mxu0 0.0
      %1641 = vmatmul.mubr.f32.gmra.mxu0 %v1491
      %v1642 = vpop.f32.mrf.mxu0
      %v1643 = vadd.f32 0.0, %v1642
      %v1644 = vpop.f32.mrf.mxu0
      %v1645 = vadd.f32 0.0, %v1644
      %1646 = vmatprep.mubr.f32.mxu0 0.0
      %1647 = vmatmul.mubr.f32.gmra.mxu0 %v1494
      %v1648 = vpop.f32.mrf.mxu0
      %v1649 = vadd.f32 0.0, %v1648
      %v1650 = vpop.f32.mrf.mxu0
      %v1651 = vadd.f32 0.0, %v1650
      %1652 = vmatprep.mubr.f32.mxu0 0.0
      %1653 = vmatmul.mubr.f32.gmra.mxu0 %v1497
      %v1654 = vpop.f32.mrf.mxu0
      %v1655 = vadd.f32 0.0, %v1654
      %v1656 = vpop.f32.mrf.mxu0
      %v1657 = vadd.f32 0.0, %v1656
      %1658 = vmatprep.mubr.f32.mxu0 0.0
      %1659 = vmatmul.mubr.f32.gmra.mxu0 %v1500
      %v1660 = vpop.f32.mrf.mxu0
      %v1661 = vadd.f32 0.0, %v1660
      %v1662 = vpop.f32.mrf.mxu0
      %v1663 = vadd.f32 0.0, %v1662
      %1664 = vmatprep.mubr.f32.mxu0 0.0
      %1665 = vmatmul.mubr.f32.gmra.mxu0 %v1503
      %v1666 = vpop.f32.mrf.mxu0
      %v1667 = vadd.f32 0.0, %v1666
      %v1668 = vpop.f32.mrf.mxu0
      %v1669 = vadd.f32 0.0, %v1668
      %1670 = vdwg.mxu0
      %v1671 = vmax.f32 %v1577, %v1579
      %1672 = vmax.xlane.f32.xlu0 %v1671
      %v1673 = vpop.xlane.xlu0 %1672
      %v1674 = vmax.f32 %v1583, %v1585
      %1675 = vmax.xlane.f32.xlu0 %v1674
      %v1676 = vpop.xlane.xlu0 %1675
      %v1677 = vmax.f32 %v1589, %v1591
      %1678 = vmax.xlane.f32.xlu0 %v1677
      %v1679 = vpop.xlane.xlu0 %1678
      %v1680 = vmax.f32 %v1595, %v1597
      %1681 = vmax.xlane.f32.xlu0 %v1680
      %v1682 = vpop.xlane.xlu0 %1681
      %v1683 = vmax.f32 %v1601, %v1603
      %1684 = vmax.xlane.f32.xlu0 %v1683
      %v1685 = vpop.xlane.xlu0 %1684
      %v1686 = vmax.f32 %v1607, %v1609
      %1687 = vmax.xlane.f32.xlu0 %v1686
      %v1688 = vpop.xlane.xlu0 %1687
      %v1689 = vmax.f32 %v1613, %v1615
      %1690 = vmax.xlane.f32.xlu0 %v1689
      %v1691 = vpop.xlane.xlu0 %1690
      %v1692 = vmax.f32 %v1619, %v1621
      %1693 = vmax.xlane.f32.xlu0 %v1692
      %v1694 = vpop.xlane.xlu0 %1693
      %v1695 = vmax.f32 %v1625, %v1627
      %1696 = vmax.xlane.f32.xlu0 %v1695
      %v1697 = vpop.xlane.xlu0 %1696
      %v1698 = vmax.f32 %v1631, %v1633
      %1699 = vmax.xlane.f32.xlu0 %v1698
      %v1700 = vpop.xlane.xlu0 %1699
      %v1701 = vmax.f32 %v1637, %v1639
      %1702 = vmax.xlane.f32.xlu0 %v1701
      %v1703 = vpop.xlane.xlu0 %1702
      %v1704 = vmax.f32 %v1643, %v1645
      %1705 = vmax.xlane.f32.xlu0 %v1704
      %v1706 = vpop.xlane.xlu0 %1705
      %v1707 = vmax.f32 %v1649, %v1651
      %1708 = vmax.xlane.f32.xlu0 %v1707
      %v1709 = vpop.xlane.xlu0 %1708
      %v1710 = vmax.f32 %v1655, %v1657
      %1711 = vmax.xlane.f32.xlu0 %v1710
      %v1712 = vpop.xlane.xlu0 %1711
      %v1713 = vmax.f32 %v1661, %v1663
      %1714 = vmax.xlane.f32.xlu0 %v1713
      %v1715 = vpop.xlane.xlu0 %1714
      %v1716 = vmax.f32 %v1667, %v1669
      %1717 = vmax.xlane.f32.xlu0 %v1716
      %v1718 = vpop.xlane.xlu0 %1717
      %v1719 = vsub.f32 %v1577, %v1673
      %v1720 = vsub.f32 %v1579, %v1673
      %v1721 = vsub.f32 %v1583, %v1676
      %v1722 = vsub.f32 %v1585, %v1676
      %v1723 = vsub.f32 %v1589, %v1679
      %v1724 = vsub.f32 %v1591, %v1679
      %v1725 = vsub.f32 %v1595, %v1682
      %v1726 = vsub.f32 %v1597, %v1682
      %v1727 = vsub.f32 %v1601, %v1685
      %v1728 = vsub.f32 %v1603, %v1685
      %v1729 = vsub.f32 %v1607, %v1688
      %v1730 = vsub.f32 %v1609, %v1688
      %v1731 = vsub.f32 %v1613, %v1691
      %v1732 = vsub.f32 %v1615, %v1691
      %v1733 = vsub.f32 %v1619, %v1694
      %v1734 = vsub.f32 %v1621, %v1694
      %v1735 = vsub.f32 %v1625, %v1697
      %v1736 = vsub.f32 %v1627, %v1697
      %v1737 = vsub.f32 %v1631, %v1700
      %v1738 = vsub.f32 %v1633, %v1700
      %v1739 = vsub.f32 %v1637, %v1703
      %v1740 = vsub.f32 %v1639, %v1703
      %v1741 = vsub.f32 %v1643, %v1706
      %v1742 = vsub.f32 %v1645, %v1706
      %v1743 = vsub.f32 %v1649, %v1709
      %v1744 = vsub.f32 %v1651, %v1709
      %v1745 = vsub.f32 %v1655, %v1712
      %v1746 = vsub.f32 %v1657, %v1712
      %v1747 = vsub.f32 %v1661, %v1715
      %v1748 = vsub.f32 %v1663, %v1715
      %v1749 = vsub.f32 %v1667, %v1718
      %v1750 = vsub.f32 %v1669, %v1718
      %v1751 = vmul.f32 %v1719, 1.442695
      %v1752 = vpow.pop %v1751
      %v1753 = vmul.f32 %v1720, 1.442695
      %v1754 = vpow.pop %v1753
      %v1755 = vmul.f32 %v1721, 1.442695
      %v1756 = vpow.pop %v1755
      %v1757 = vmul.f32 %v1722, 1.442695
      %v1758 = vpow.pop %v1757
      %v1759 = vmul.f32 %v1723, 1.442695
      %v1760 = vpow.pop %v1759
      %v1761 = vmul.f32 %v1724, 1.442695
      %v1762 = vpow.pop %v1761
      %v1763 = vmul.f32 %v1725, 1.442695
      %v1764 = vpow.pop %v1763
      %v1765 = vmul.f32 %v1726, 1.442695
      %v1766 = vpow.pop %v1765
      %v1767 = vmul.f32 %v1727, 1.442695
      %v1768 = vpow.pop %v1767
      %v1769 = vmul.f32 %v1728, 1.442695
      %v1770 = vpow.pop %v1769
      %v1771 = vmul.f32 %v1729, 1.442695
      %v1772 = vpow.pop %v1771
      %v1773 = vmul.f32 %v1730, 1.442695
      %v1774 = vpow.pop %v1773
      %v1775 = vmul.f32 %v1731, 1.442695
      %v1776 = vpow.pop %v1775
      %v1777 = vmul.f32 %v1732, 1.442695
      %v1778 = vpow.pop %v1777
      %v1779 = vmul.f32 %v1733, 1.442695
      %v1780 = vpow.pop %v1779
      %v1781 = vmul.f32 %v1734, 1.442695
      %v1782 = vpow.pop %v1781
      %v1783 = vmul.f32 %v1735, 1.442695
      %v1784 = vpow.pop %v1783
      %v1785 = vmul.f32 %v1736, 1.442695
      %v1786 = vpow.pop %v1785
      %v1787 = vmul.f32 %v1737, 1.442695
      %v1788 = vpow.pop %v1787
      %v1789 = vmul.f32 %v1738, 1.442695
      %v1790 = vpow.pop %v1789
      %v1791 = vmul.f32 %v1739, 1.442695
      %v1792 = vpow.pop %v1791
      %v1793 = vmul.f32 %v1740, 1.442695
      %v1794 = vpow.pop %v1793
      %v1795 = vmul.f32 %v1741, 1.442695
      %v1796 = vpow.pop %v1795
      %v1797 = vmul.f32 %v1742, 1.442695
      %v1798 = vpow.pop %v1797
      %v1799 = vmul.f32 %v1743, 1.442695
      %v1800 = vpow.pop %v1799
      %v1801 = vmul.f32 %v1744, 1.442695
      %v1802 = vpow.pop %v1801
      %v1803 = vmul.f32 %v1745, 1.442695
      %v1804 = vpow.pop %v1803
      %v1805 = vmul.f32 %v1746, 1.442695
      %v1806 = vpow.pop %v1805
      %v1807 = vmul.f32 %v1747, 1.442695
      %v1808 = vpow.pop %v1807
      %v1809 = vmul.f32 %v1748, 1.442695
      %v1810 = vpow.pop %v1809
      %v1811 = vmul.f32 %v1749, 1.442695
      %v1812 = vpow.pop %v1811
      %v1813 = vmul.f32 %v1750, 1.442695
      %v1814 = vpow.pop %v1813
      %v1815 = vadd.f32 %v1752, %v1754
      %1816 = vadd.xlane.f32.xlu0 %v1815
      %v1817 = vpop.xlane.xlu0 %1816
      %v1818 = vadd.f32 %v1756, %v1758
      %1819 = vadd.xlane.f32.xlu0 %v1818
      %v1820 = vpop.xlane.xlu0 %1819
      %v1821 = vadd.f32 %v1760, %v1762
      %1822 = vadd.xlane.f32.xlu0 %v1821
      %v1823 = vpop.xlane.xlu0 %1822
      %v1824 = vadd.f32 %v1764, %v1766
      %1825 = vadd.xlane.f32.xlu0 %v1824
      %v1826 = vpop.xlane.xlu0 %1825
      %v1827 = vadd.f32 %v1768, %v1770
      %1828 = vadd.xlane.f32.xlu0 %v1827
      %v1829 = vpop.xlane.xlu0 %1828
      %v1830 = vadd.f32 %v1772, %v1774
      %1831 = vadd.xlane.f32.xlu0 %v1830
      %v1832 = vpop.xlane.xlu0 %1831
      %v1833 = vadd.f32 %v1776, %v1778
      %1834 = vadd.xlane.f32.xlu0 %v1833
      %v1835 = vpop.xlane.xlu0 %1834
      %v1836 = vadd.f32 %v1780, %v1782
      %1837 = vadd.xlane.f32.xlu0 %v1836
      %v1838 = vpop.xlane.xlu0 %1837
      %v1839 = vadd.f32 %v1784, %v1786
      %1840 = vadd.xlane.f32.xlu0 %v1839
      %v1841 = vpop.xlane.xlu0 %1840
      %v1842 = vadd.f32 %v1788, %v1790
      %1843 = vadd.xlane.f32.xlu0 %v1842
      %v1844 = vpop.xlane.xlu0 %1843
      %v1845 = vadd.f32 %v1792, %v1794
      %1846 = vadd.xlane.f32.xlu0 %v1845
      %v1847 = vpop.xlane.xlu0 %1846
      %v1848 = vadd.f32 %v1796, %v1798
      %1849 = vadd.xlane.f32.xlu0 %v1848
      %v1850 = vpop.xlane.xlu0 %1849
      %v1851 = vadd.f32 %v1800, %v1802
      %1852 = vadd.xlane.f32.xlu0 %v1851
      %v1853 = vpop.xlane.xlu0 %1852
      %v1854 = vadd.f32 %v1804, %v1806
      %1855 = vadd.xlane.f32.xlu0 %v1854
      %v1856 = vpop.xlane.xlu0 %1855
      %v1857 = vadd.f32 %v1808, %v1810
      %1858 = vadd.xlane.f32.xlu0 %v1857
      %v1859 = vpop.xlane.xlu0 %1858
      %v1860 = vadd.f32 %v1812, %v1814
      %1861 = vadd.xlane.f32.xlu0 %v1860
      %v1862 = vpop.xlane.xlu0 %1861
      %s1863 = scalar_lea.vmem [#allocation2], 512
      %v1864 = vld [vmem:[%s1863] sm:$0xff]
      %v1865 = vld [vmem:[%s1863 + $0x8] sm:$0xff]
      %v1866 = vld [vmem:[%s1863 + $0x10] sm:$0xff]
      %v1867 = vld [vmem:[%s1863 + $0x18] sm:$0xff]
      %v1868 = vld [vmem:[%s1863 + $0x20] sm:$0xff]
      %v1869 = vld [vmem:[%s1863 + $0x28] sm:$0xff]
      %v1870 = vld [vmem:[%s1863 + $0x30] sm:$0xff]
      %v1871 = vld [vmem:[%s1863 + $0x38] sm:$0xff]
      %v1872 = vld [vmem:[%s1863 + $0x40] sm:$0xff]
      %v1873 = vld [vmem:[%s1863 + $0x48] sm:$0xff]
      %v1874 = vld [vmem:[%s1863 + $0x50] sm:$0xff]
      %v1875 = vld [vmem:[%s1863 + $0x58] sm:$0xff]
      %v1876 = vld [vmem:[%s1863 + $0x60] sm:$0xff]
      %v1877 = vld [vmem:[%s1863 + $0x68] sm:$0xff]
      %v1878 = vld [vmem:[%s1863 + $0x70] sm:$0xff]
      %v1879 = vld [vmem:[%s1863 + $0x78] sm:$0xff]
      %v1880 = vld [vmem:[%s1863 + $0x80] sm:$0xff]
      %v1881 = vld [vmem:[%s1863 + $0x88] sm:$0xff]
      %v1882 = vld [vmem:[%s1863 + $0x90] sm:$0xff]
      %v1883 = vld [vmem:[%s1863 + $0x98] sm:$0xff]
      %v1884 = vld [vmem:[%s1863 + $0xa0] sm:$0xff]
      %v1885 = vld [vmem:[%s1863 + $0xa8] sm:$0xff]
      %v1886 = vld [vmem:[%s1863 + $0xb0] sm:$0xff]
      %v1887 = vld [vmem:[%s1863 + $0xb8] sm:$0xff]
      %v1888 = vld [vmem:[%s1863 + $0xc0] sm:$0xff]
      %v1889 = vld [vmem:[%s1863 + $0xc8] sm:$0xff]
      %v1890 = vld [vmem:[%s1863 + $0xd0] sm:$0xff]
      %v1891 = vld [vmem:[%s1863 + $0xd8] sm:$0xff]
      %v1892 = vld [vmem:[%s1863 + $0xe0] sm:$0xff]
      %v1893 = vld [vmem:[%s1863 + $0xe8] sm:$0xff]
      %v1894 = vld [vmem:[%s1863 + $0xf0] sm:$0xff]
      %v1895 = vld [vmem:[%s1863 + $0xf8] sm:$0xff]
      %1896 = vmatprep.subr.mxu0 0.0
      %1897 = vmatpush1.msra.mxu0 %v1879
      %1898 = vmatprep.subr.mxu0 0.0
      %1899 = vmatpush1.msra.mxu0 %v1878
      %1900 = vmatprep.subr.mxu0 0.0
      %1901 = vmatpush1.msra.mxu0 %v1877
      %1902 = vmatprep.subr.mxu0 0.0
      %1903 = vmatpush1.msra.mxu0 %v1876
      %1904 = vmatprep.subr.mxu0 0.0
      %1905 = vmatpush1.msra.mxu0 %v1875
      %1906 = vmatprep.subr.mxu0 0.0
      %1907 = vmatpush1.msra.mxu0 %v1874
      %1908 = vmatprep.subr.mxu0 0.0
      %1909 = vmatpush1.msra.mxu0 %v1873
      %1910 = vmatprep.subr.mxu0 0.0
      %1911 = vmatpush1.msra.mxu0 %v1872
      %1912 = vmatprep.subr.mxu0 0.0
      %1913 = vmatpush1.msra.mxu0 %v1871
      %1914 = vmatprep.subr.mxu0 0.0
      %1915 = vmatpush1.msra.mxu0 %v1870
      %1916 = vmatprep.subr.mxu0 0.0
      %1917 = vmatpush1.msra.mxu0 %v1869
      %1918 = vmatprep.subr.mxu0 0.0
      %1919 = vmatpush1.msra.mxu0 %v1868
      %1920 = vmatprep.subr.mxu0 0.0
      %1921 = vmatpush1.msra.mxu0 %v1867
      %1922 = vmatprep.subr.mxu0 0.0
      %1923 = vmatpush1.msra.mxu0 %v1866
      %1924 = vmatprep.subr.mxu0 0.0
      %1925 = vmatpush1.msra.mxu0 %v1865
      %1926 = vmatprep.subr.mxu0 0.0
      %1927 = vmatpush1.msra.mxu0 %v1864
      %1928 = vmatprep.subr.mxu0 0.0
      %1929 = vmatpush2.msra.mxu0 %v1895
      %1930 = vmatprep.subr.mxu0 0.0
      %1931 = vmatpush2.msra.mxu0 %v1894
      %1932 = vmatprep.subr.mxu0 0.0
      %1933 = vmatpush2.msra.mxu0 %v1893
      %1934 = vmatprep.subr.mxu0 0.0
      %1935 = vmatpush2.msra.mxu0 %v1892
      %1936 = vmatprep.subr.mxu0 0.0
      %1937 = vmatpush2.msra.mxu0 %v1891
      %1938 = vmatprep.subr.mxu0 0.0
      %1939 = vmatpush2.msra.mxu0 %v1890
      %1940 = vmatprep.subr.mxu0 0.0
      %1941 = vmatpush2.msra.mxu0 %v1889
      %1942 = vmatprep.subr.mxu0 0.0
      %1943 = vmatpush2.msra.mxu0 %v1888
      %1944 = vmatprep.subr.mxu0 0.0
      %1945 = vmatpush2.msra.mxu0 %v1887
      %1946 = vmatprep.subr.mxu0 0.0
      %1947 = vmatpush2.msra.mxu0 %v1886
      %1948 = vmatprep.subr.mxu0 0.0
      %1949 = vmatpush2.msra.mxu0 %v1885
      %1950 = vmatprep.subr.mxu0 0.0
      %1951 = vmatpush2.msra.mxu0 %v1884
      %1952 = vmatprep.subr.mxu0 0.0
      %1953 = vmatpush2.msra.mxu0 %v1883
      %1954 = vmatprep.subr.mxu0 0.0
      %1955 = vmatpush2.msra.mxu0 %v1882
      %1956 = vmatprep.subr.mxu0 0.0
      %1957 = vmatpush2.msra.mxu0 %v1881
      %1958 = vmatprep.subr.mxu0 0.0
      %1959 = vmatpush2.msra.mxu0 %v1880
      %1960 = vmatprep.mubr.f32.mxu0 %v1754
      %1961 = vmatmul.mubr.f32.gmra.mxu0 %v1752
      %v1962 = vpop.f32.mrf.mxu0
      %v1963 = vadd.f32 0.0, %v1962
      %v1964 = vpop.f32.mrf.mxu0
      %1965 = vmatprep.mubr.f32.mxu0 %v1758
      %1966 = vmatmul.mubr.f32.gmra.mxu0 %v1756
      %v1967 = vpop.f32.mrf.mxu0
      %v1968 = vadd.f32 0.0, %v1967
      %v1969 = vpop.f32.mrf.mxu0
      %1970 = vmatprep.mubr.f32.mxu0 %v1762
      %1971 = vmatmul.mubr.f32.gmra.mxu0 %v1760
      %v1972 = vpop.f32.mrf.mxu0
      %v1973 = vadd.f32 0.0, %v1972
      %v1974 = vpop.f32.mrf.mxu0
      %1975 = vmatprep.mubr.f32.mxu0 %v1766
      %1976 = vmatmul.mubr.f32.gmra.mxu0 %v1764
      %v1977 = vpop.f32.mrf.mxu0
      %v1978 = vadd.f32 0.0, %v1977
      %v1979 = vpop.f32.mrf.mxu0
      %1980 = vmatprep.mubr.f32.mxu0 %v1770
      %1981 = vmatmul.mubr.f32.gmra.mxu0 %v1768
      %v1982 = vpop.f32.mrf.mxu0
      %v1983 = vadd.f32 0.0, %v1982
      %v1984 = vpop.f32.mrf.mxu0
      %1985 = vmatprep.mubr.f32.mxu0 %v1774
      %1986 = vmatmul.mubr.f32.gmra.mxu0 %v1772
      %v1987 = vpop.f32.mrf.mxu0
      %v1988 = vadd.f32 0.0, %v1987
      %v1989 = vpop.f32.mrf.mxu0
      %1990 = vmatprep.mubr.f32.mxu0 %v1778
      %1991 = vmatmul.mubr.f32.gmra.mxu0 %v1776
      %v1992 = vpop.f32.mrf.mxu0
      %v1993 = vadd.f32 0.0, %v1992
      %v1994 = vpop.f32.mrf.mxu0
      %1995 = vmatprep.mubr.f32.mxu0 %v1782
      %1996 = vmatmul.mubr.f32.gmra.mxu0 %v1780
      %v1997 = vpop.f32.mrf.mxu0
      %v1998 = vadd.f32 0.0, %v1997
      %v1999 = vpop.f32.mrf.mxu0
      %2000 = vmatprep.mubr.f32.mxu0 %v1786
      %2001 = vmatmul.mubr.f32.gmra.mxu0 %v1784
      %v2002 = vpop.f32.mrf.mxu0
      %v2003 = vadd.f32 0.0, %v2002
      %v2004 = vpop.f32.mrf.mxu0
      %2005 = vmatprep.mubr.f32.mxu0 %v1790
      %2006 = vmatmul.mubr.f32.gmra.mxu0 %v1788
      %v2007 = vpop.f32.mrf.mxu0
      %v2008 = vadd.f32 0.0, %v2007
      %v2009 = vpop.f32.mrf.mxu0
      %2010 = vmatprep.mubr.f32.mxu0 %v1794
      %2011 = vmatmul.mubr.f32.gmra.mxu0 %v1792
      %v2012 = vpop.f32.mrf.mxu0
      %v2013 = vadd.f32 0.0, %v2012
      %v2014 = vpop.f32.mrf.mxu0
      %2015 = vmatprep.mubr.f32.mxu0 %v1798
      %2016 = vmatmul.mubr.f32.gmra.mxu0 %v1796
      %v2017 = vpop.f32.mrf.mxu0
      %v2018 = vadd.f32 0.0, %v2017
      %v2019 = vpop.f32.mrf.mxu0
      %2020 = vmatprep.mubr.f32.mxu0 %v1802
      %2021 = vmatmul.mubr.f32.gmra.mxu0 %v1800
      %v2022 = vpop.f32.mrf.mxu0
      %v2023 = vadd.f32 0.0, %v2022
      %v2024 = vpop.f32.mrf.mxu0
      %2025 = vmatprep.mubr.f32.mxu0 %v1806
      %2026 = vmatmul.mubr.f32.gmra.mxu0 %v1804
      %v2027 = vpop.f32.mrf.mxu0
      %v2028 = vadd.f32 0.0, %v2027
      %v2029 = vpop.f32.mrf.mxu0
      %2030 = vmatprep.mubr.f32.mxu0 %v1810
      %2031 = vmatmul.mubr.f32.gmra.mxu0 %v1808
      %v2032 = vpop.f32.mrf.mxu0
      %v2033 = vadd.f32 0.0, %v2032
      %v2034 = vpop.f32.mrf.mxu0
      %2035 = vmatprep.mubr.f32.mxu0 %v1814
      %2036 = vmatmul.mubr.f32.gmra.mxu0 %v1812
      %v2037 = vpop.f32.mrf.mxu0
      %v2038 = vadd.f32 0.0, %v2037
      %v2039 = vpop.f32.mrf.mxu0
      %2040 = vdwg.mxu0
      %v2041 = vrcp.pop %v1817
      %v2042 = vrcp.pop %v1820
      %v2043 = vrcp.pop %v1823
      %v2044 = vrcp.pop %v1826
      %v2045 = vrcp.pop %v1829
      %v2046 = vrcp.pop %v1832
      %v2047 = vrcp.pop %v1835
      %v2048 = vrcp.pop %v1838
      %v2049 = vrcp.pop %v1841
      %v2050 = vrcp.pop %v1844
      %v2051 = vrcp.pop %v1847
      %v2052 = vrcp.pop %v1850
      %v2053 = vrcp.pop %v1853
      %v2054 = vrcp.pop %v1856
      %v2055 = vrcp.pop %v1859
      %v2056 = vrcp.pop %v1862
      %v2057 = vmul.f32 %v1963, %v2041
      %v2058 = vmul.f32 %v1968, %v2042
      %v2059 = vmul.f32 %v1973, %v2043
      %v2060 = vmul.f32 %v1978, %v2044
      %v2061 = vmul.f32 %v1983, %v2045
      %v2062 = vmul.f32 %v1988, %v2046
      %v2063 = vmul.f32 %v1993, %v2047
      %v2064 = vmul.f32 %v1998, %v2048
      %v2065 = vmul.f32 %v2003, %v2049
      %v2066 = vmul.f32 %v2008, %v2050
      %v2067 = vmul.f32 %v2013, %v2051
      %v2068 = vmul.f32 %v2018, %v2052
      %v2069 = vmul.f32 %v2023, %v2053
      %v2070 = vmul.f32 %v2028, %v2054
      %v2071 = vmul.f32 %v2033, %v2055
      %v2072 = vmul.f32 %v2038, %v2056
      %v2073 = vld [vmem:[%s6] sm:$0xf]
      %v2075 = vsel %vm1456, %v2057, 0
      %v2078 = vsel %vm1456, %v2058, 0
      %v2081 = vsel %vm1456, %v2059, 0
      %v2084 = vsel %vm1456, %v2060, 0
      %v2087 = vsel %vm1456, %v2061, 0
      %v2090 = vsel %vm1456, %v2062, 0
      %v2093 = vsel %vm1456, %v2063, 0
      %v2096 = vsel %vm1456, %v2064, 0
      %v2099 = vsel %vm1456, %v2065, 0
      %v2102 = vsel %vm1456, %v2066, 0
      %v2105 = vsel %vm1456, %v2067, 0
      %v2108 = vsel %vm1456, %v2068, 0
      %v2111 = vsel %vm1456, %v2069, 0
      %v2114 = vsel %vm1456, %v2070, 0
      %v2117 = vsel %vm1456, %v2071, 0
      %v2120 = vsel %vm1456, %v2072, 0
      %v2123 = vsel %vm1505, %v2073, 0
      %2125 = vmatprep.subr.mxu0 0.0
      %2126 = vmatpush1.msra.mxu0 0.0
      %2127 = vmatprep.subr.mxu0 0.0
      %2128 = vmatpush1.msra.mxu0 0.0
      %2129 = vmatprep.subr.mxu0 0.0
      %2130 = vmatpush1.msra.mxu0 0.0
      %2131 = vmatprep.subr.mxu0 0.0
      %2132 = vmatpush1.msra.mxu0 0.0
      %2133 = vmatprep.subr.mxu0 0.0
      %2134 = vmatpush1.msra.mxu0 0.0
      %2135 = vmatprep.subr.mxu0 0.0
      %2136 = vmatpush1.msra.mxu0 0.0
      %2137 = vmatprep.subr.mxu0 0.0
      %2138 = vmatpush1.msra.mxu0 0.0
      %2139 = vmatprep.subr.mxu0 0.0
      %2140 = vmatpush1.msra.mxu0 0.0
      %2141 = vmatprep.subr.mxu0 0.0
      %2142 = vmatpush1.msra.mxu0 0.0
      %2143 = vmatprep.subr.mxu0 0.0
      %2144 = vmatpush1.msra.mxu0 0.0
      %2145 = vmatprep.subr.mxu0 0.0
      %2146 = vmatpush1.msra.mxu0 0.0
      %2147 = vmatprep.subr.mxu0 0.0
      %2148 = vmatpush1.msra.mxu0 0.0
      %2149 = vmatprep.subr.mxu0 0.0
      %2150 = vmatpush1.msra.mxu0 0.0
      %2151 = vmatprep.subr.mxu0 0.0
      %2152 = vmatpush1.msra.mxu0 0.0
      %2153 = vmatprep.subr.mxu0 0.0
      %2154 = vmatpush1.msra.mxu0 0.0
      %2155 = vmatprep.subr.mxu0 0.0
      %2156 = vmatpush1.msra.mxu0 %v2123
      %2157 = vmatprep.subr.mxu0 0.0
      %2158 = vmatpush2.msra.mxu0 0.0
      %2159 = vmatprep.subr.mxu0 0.0
      %2160 = vmatpush2.msra.mxu0 0.0
      %2161 = vmatprep.subr.mxu0 0.0
      %2162 = vmatpush2.msra.mxu0 0.0
      %2163 = vmatprep.subr.mxu0 0.0
      %2164 = vmatpush2.msra.mxu0 0.0
      %2165 = vmatprep.subr.mxu0 0.0
      %2166 = vmatpush2.msra.mxu0 0.0
      %2167 = vmatprep.subr.mxu0 0.0
      %2168 = vmatpush2.msra.mxu0 0.0
      %2169 = vmatprep.subr.mxu0 0.0
      %2170 = vmatpush2.msra.mxu0 0.0
      %2171 = vmatprep.subr.mxu0 0.0
      %2172 = vmatpush2.msra.mxu0 0.0
      %2173 = vmatprep.subr.mxu0 0.0
      %2174 = vmatpush2.msra.mxu0 0.0
      %2175 = vmatprep.subr.mxu0 0.0
      %2176 = vmatpush2.msra.mxu0 0.0
      %2177 = vmatprep.subr.mxu0 0.0
      %2178 = vmatpush2.msra.mxu0 0.0
      %2179 = vmatprep.subr.mxu0 0.0
      %2180 = vmatpush2.msra.mxu0 0.0
      %2181 = vmatprep.subr.mxu0 0.0
      %2182 = vmatpush2.msra.mxu0 0.0
      %2183 = vmatprep.subr.mxu0 0.0
      %2184 = vmatpush2.msra.mxu0 0.0
      %2185 = vmatprep.subr.mxu0 0.0
      %2186 = vmatpush2.msra.mxu0 0.0
      %2187 = vmatprep.subr.mxu0 0.0
      %2188 = vmatpush2.msra.mxu0 0.0
      %2189 = vmatprep.mubr.f32.mxu0 0.0
      %2190 = vmatmul.mubr.f32.gmra.mxu0 %v2075
      %v2191 = vpop.f32.mrf.mxu0
      %v2192 = vadd.f32 0.0, %v2191
      %v2193 = vpop.f32.mrf.mxu0
      %2194 = vmatprep.mubr.f32.mxu0 0.0
      %2195 = vmatmul.mubr.f32.gmra.mxu0 %v2078
      %v2196 = vpop.f32.mrf.mxu0
      %v2197 = vadd.f32 0.0, %v2196
      %v2198 = vpop.f32.mrf.mxu0
      %2199 = vmatprep.mubr.f32.mxu0 0.0
      %2200 = vmatmul.mubr.f32.gmra.mxu0 %v2081
      %v2201 = vpop.f32.mrf.mxu0
      %v2202 = vadd.f32 0.0, %v2201
      %v2203 = vpop.f32.mrf.mxu0
      %2204 = vmatprep.mubr.f32.mxu0 0.0
      %2205 = vmatmul.mubr.f32.gmra.mxu0 %v2084
      %v2206 = vpop.f32.mrf.mxu0
      %v2207 = vadd.f32 0.0, %v2206
      %v2208 = vpop.f32.mrf.mxu0
      %2209 = vmatprep.mubr.f32.mxu0 0.0
      %2210 = vmatmul.mubr.f32.gmra.mxu0 %v2087
      %v2211 = vpop.f32.mrf.mxu0
      %v2212 = vadd.f32 0.0, %v2211
      %v2213 = vpop.f32.mrf.mxu0
      %2214 = vmatprep.mubr.f32.mxu0 0.0
      %2215 = vmatmul.mubr.f32.gmra.mxu0 %v2090
      %v2216 = vpop.f32.mrf.mxu0
      %v2217 = vadd.f32 0.0, %v2216
      %v2218 = vpop.f32.mrf.mxu0
      %2219 = vmatprep.mubr.f32.mxu0 0.0
      %2220 = vmatmul.mubr.f32.gmra.mxu0 %v2093
      %v2221 = vpop.f32.mrf.mxu0
      %v2222 = vadd.f32 0.0, %v2221
      %v2223 = vpop.f32.mrf.mxu0
      %2224 = vmatprep.mubr.f32.mxu0 0.0
      %2225 = vmatmul.mubr.f32.gmra.mxu0 %v2096
      %v2226 = vpop.f32.mrf.mxu0
      %v2227 = vadd.f32 0.0, %v2226
      %v2228 = vpop.f32.mrf.mxu0
      %2229 = vmatprep.mubr.f32.mxu0 0.0
      %2230 = vmatmul.mubr.f32.gmra.mxu0 %v2099
      %v2231 = vpop.f32.mrf.mxu0
      %v2232 = vadd.f32 0.0, %v2231
      %v2233 = vpop.f32.mrf.mxu0
      %2234 = vmatprep.mubr.f32.mxu0 0.0
      %2235 = vmatmul.mubr.f32.gmra.mxu0 %v2102
      %v2236 = vpop.f32.mrf.mxu0
      %v2237 = vadd.f32 0.0, %v2236
      %v2238 = vpop.f32.mrf.mxu0
      %2239 = vmatprep.mubr.f32.mxu0 0.0
      %2240 = vmatmul.mubr.f32.gmra.mxu0 %v2105
      %v2241 = vpop.f32.mrf.mxu0
      %v2242 = vadd.f32 0.0, %v2241
      %v2243 = vpop.f32.mrf.mxu0
      %2244 = vmatprep.mubr.f32.mxu0 0.0
      %2245 = vmatmul.mubr.f32.gmra.mxu0 %v2108
      %v2246 = vpop.f32.mrf.mxu0
      %v2247 = vadd.f32 0.0, %v2246
      %v2248 = vpop.f32.mrf.mxu0
      %2249 = vmatprep.mubr.f32.mxu0 0.0
      %2250 = vmatmul.mubr.f32.gmra.mxu0 %v2111
      %v2251 = vpop.f32.mrf.mxu0
      %v2252 = vadd.f32 0.0, %v2251
      %v2253 = vpop.f32.mrf.mxu0
      %2254 = vmatprep.mubr.f32.mxu0 0.0
      %2255 = vmatmul.mubr.f32.gmra.mxu0 %v2114
      %v2256 = vpop.f32.mrf.mxu0
      %v2257 = vadd.f32 0.0, %v2256
      %v2258 = vpop.f32.mrf.mxu0
      %2259 = vmatprep.mubr.f32.mxu0 0.0
      %2260 = vmatmul.mubr.f32.gmra.mxu0 %v2117
      %v2261 = vpop.f32.mrf.mxu0
      %v2262 = vadd.f32 0.0, %v2261
      %v2263 = vpop.f32.mrf.mxu0
      %2264 = vmatprep.mubr.f32.mxu0 0.0
      %2265 = vmatmul.mubr.f32.gmra.mxu0 %v2120
      %v2266 = vpop.f32.mrf.mxu0
      %v2267 = vadd.f32 0.0, %v2266
      %v2268 = vpop.f32.mrf.mxu0
      %2269 = vdwg.mxu0
      %v2270 = vadd.f32 %v1420, %v2192
      %v2271 = vadd.f32 %v1421, %v2197
      %v2272 = vadd.f32 %v1422, %v2202
      %v2273 = vadd.f32 %v1423, %v2207
      %v2274 = vadd.f32 %v1424, %v2212
      %v2275 = vadd.f32 %v1425, %v2217
      %v2276 = vadd.f32 %v1426, %v2222
      %v2277 = vadd.f32 %v1427, %v2227
      %v2278 = vadd.f32 %v1428, %v2232
      %v2279 = vadd.f32 %v1429, %v2237
      %v2280 = vadd.f32 %v1430, %v2242
      %v2281 = vadd.f32 %v1431, %v2247
      %v2282 = vadd.f32 %v1432, %v2252
      %v2283 = vadd.f32 %v1433, %v2257
      %v2284 = vadd.f32 %v1434, %v2262
      %v2285 = vadd.f32 %v1435, %v2267
      %2286 = vst.msk [vmem:[%s327] sm:$0xff] %vm1456, %v2270
      %2287 = vst.msk [vmem:[%s327 + $0x8] sm:$0xff] %vm1456, %v2271
      %2288 = vst.msk [vmem:[%s327 + $0x10] sm:$0xff] %vm1456, %v2272
      %2289 = vst.msk [vmem:[%s327 + $0x18] sm:$0xff] %vm1456, %v2273
      %2290 = vst.msk [vmem:[%s327 + $0x20] sm:$0xff] %vm1456, %v2274
      %2291 = vst.msk [vmem:[%s327 + $0x28] sm:$0xff] %vm1456, %v2275
      %2292 = vst.msk [vmem:[%s327 + $0x30] sm:$0xff] %vm1456, %v2276
      %2293 = vst.msk [vmem:[%s327 + $0x38] sm:$0xff] %vm1456, %v2277
      %2294 = vst.msk [vmem:[%s327 + $0x40] sm:$0xff] %vm1456, %v2278
      %2295 = vst.msk [vmem:[%s327 + $0x48] sm:$0xff] %vm1456, %v2279
      %2296 = vst.msk [vmem:[%s327 + $0x50] sm:$0xff] %vm1456, %v2280
      %2297 = vst.msk [vmem:[%s327 + $0x58] sm:$0xff] %vm1456, %v2281
      %2298 = vst.msk [vmem:[%s327 + $0x60] sm:$0xff] %vm1456, %v2282
      %2299 = vst.msk [vmem:[%s327 + $0x68] sm:$0xff] %vm1456, %v2283
      %2300 = vst.msk [vmem:[%s327 + $0x70] sm:$0xff] %vm1456, %v2284
      %2301 = vst.msk [vmem:[%s327 + $0x78] sm:$0xff] %vm1456, %v2285
      %s2302 = smul.u32 16, %s24
      %p2303 = scmp.lt.s32.totalorder %s23, 1
      %s2304 = scalar_select %p2303, %s23, 1
      %p2305 = scmp.lt.s32.totalorder %s2302, 31
      %s2306 = scalar_select %p2305, %s2302, 31
      %s2307 = smul.addr %s2304, 32
      %s2308 = sadd.s32 %s2306, %s2307
      %s2309 = smul.addr %s2308, 8
      %s2310 = scalar_lea.vmem %s8, %s2309
      // Predicated region
      $region78: #{tpu_custom_call.1} parent=51 // pred_check
        %p2311 = pneg %p224
      $region79: #{tpu_custom_call.1} parent=51 // pred_check_branch
        %2313 = sbr.rel (%p2311) target = $region81
      $region80: #{tpu_custom_call.1} parent=51 // pred_region
        %s2314 = smul.u32 16, %s24
      $region81: #{tpu_custom_call.1} parent=51 // pred_fallthru
        _
    $region52: #{tpu_custom_call.1} parent=5 // pred_fallthru
      _
    %p2315 = scmp.le.s32.totalorder 2, %s14
    // Predicated region
    $region82: #{tpu_custom_call.1} parent=5 // pred_check
      %p2316 = pneg %p2315
    $region83: #{tpu_custom_call.1} parent=5 // pred_check_branch
      %2318 = sbr.rel (%p2316) target = $region85
    $region84: #{tpu_custom_call.1} parent=5 // pred_region
      %s2319 = ssub.s32 %s14, 2
      // Predicated region
      $region86: #{tpu_custom_call.1} parent=84 // pred_check
        %p2320 = pneg %p230
      $region87: #{tpu_custom_call.1} parent=84 // pred_check_branch
        %2322 = sbr.rel (%p2320) target = $region89
      $region88: #{tpu_custom_call.1} parent=84 // pred_region
        %s2323 = smul.u32 16, %s26
        %p2324 = scmp.lt.s32.totalorder %s25, 1
        %s2325 = scalar_select %p2324, %s25, 1
        %p2326 = scmp.lt.s32.totalorder %s2323, 31
        %s2327 = scalar_select %p2326, %s2323, 31
        %s2328 = smul.addr %s2325, 32
        %s2329 = sadd.s32 %s2327, %s2328
        %s2330 = smul.addr %s2329, 8
        %s2331 = scalar_lea.vmem %s8, %s2330
      $region89: #{tpu_custom_call.1} parent=84 // pred_fallthru
        _
    $region85: #{tpu_custom_call.1} parent=5 // pred_fallthru
      _
  $region6: #{tpu_custom_call.1} parent=0 // loop_footer
    %s18 = sadd.s32 1, %s14
  $region7: #{tpu_custom_call.1} parent=0 // loop_footer_branch
    %13 = sbr.rel target = $region3
  $region8: #{tpu_custom_call.1} parent=0 // loop_exit
    _

</llo_original>
